<compile_context>
chip_gen: v5e
topology: v5e:2x2
jax: 0.10.0
libtpu: 0.0.40
codegen_flags: <defaults>
</compile_context>

<pallas_src>
import jax
import jax.numpy as jnp
from jax import lax
from jax.experimental import pallas as pl
from jax.experimental.pallas import tpu as pltpu


def discriminator_kernel(labels_ref, x_ref, emb_ref,
                         w1_ref, b1_ref, w2_ref, b2_ref,
                         w3_ref, b3_ref, w4_ref, b4_ref,
                         o_ref):
    """Fused: (features * Embedding(labels)) -> 4-layer MLP (LeakyReLU 0.2) -> sigmoid.

    Dropout layers are identity (inference semantics).
    """
    tb = x_ref.shape[0]
    nc = emb_ref.shape[0]

    # ---- in-kernel embedding gather (exact): select row per label via VPU selects ----
    labels = labels_ref[...]                               # (TB, 1) int32
    emb_full = emb_ref[...]                                # (NC, F_pad) f32, tiny & VMEM-resident
    f_pad = emb_full.shape[1]
    label_emb = jnp.zeros((tb, f_pad), jnp.float32)
    for c in range(nc):                                    # NC is small; static unroll, exact
        row = emb_full[c:c + 1, :]                         # (1, F_pad)
        label_emb = label_emb + jnp.where(labels == c, row, 0.0)

    d = x_ref[...] * label_emb                             # f32 elementwise conditioning

    def linear(h, w_ref, b_ref):
        # bf16 x bf16 operands, f32 accumulation on the MXU.
        return jnp.dot(h.astype(jnp.bfloat16), w_ref[...],
                       preferred_element_type=jnp.float32) + b_ref[...]

    def leaky_relu(h):
        return jnp.where(h > 0, h, 0.2 * h)

    h1 = leaky_relu(linear(d, w1_ref, b1_ref))
    # TODO(synk): nn.Dropout(0.4) -> identity (eval-mode forward semantics)
    h2 = leaky_relu(linear(h1, w2_ref, b2_ref))
    h3 = leaky_relu(linear(h2, w3_ref, b3_ref))
    logits = linear(h3, w4_ref, b4_ref)                    # (TB, 128) lane-dense; col 0 is real

    # numerically stable sigmoid (exp -> EUP; no overflow for very negative logits)
    z = jnp.exp(-jnp.abs(logits))
    o_ref[...] = jnp.where(logits >= 0, 1.0 / (1.0 + z), z / (1.0 + z))


def discriminator_forward(features, labels, params, *, tile_b=128):
    """features: (B, out_shape) f32; labels: (B,) int."""
    B, F = features.shape
    emb = params["emb"]
    NC = emb.shape[0]

    f32, bf16 = jnp.float32, jnp.bfloat16

    # tile_b: 128 minimum (MXU rows on v5e); 256/512 preferred at large B on v6e/v7x.
    F_pad = max(128, pl.cdiv(F, 128) * 128)        # lane-dense K for layer 1 (zero pad = exact)
    OUT_pad = 128                                  # lane-dense final layer / output store
    B_pad = pl.cdiv(B, tile_b) * tile_b
    n_tiles = B_pad // tile_b

    # zero padding is numerically exact; padded batch rows/cols are sliced off below
    x_p = jnp.zeros((B_pad, F_pad), f32).at[:B, :F].set(features.astype(f32))
    lab_p = jnp.zeros((B_pad, 1), jnp.int32).at[:B, 0].set(labels.astype(jnp.int32))
    emb_p = jnp.zeros((NC, F_pad), f32).at[:, :F].set(emb.astype(f32))

    w1 = jnp.zeros((F_pad, 512), bf16).at[:F, :].set(params["w1"].astype(bf16))
    b1 = params["b1"].astype(f32)
    w2 = params["w2"].astype(bf16)
    b2 = params["b2"].astype(f32)
    w3 = params["w3"].astype(bf16)
    b3 = params["b3"].astype(f32)
    w4 = jnp.zeros((128, OUT_pad), bf16).at[:, :1].set(params["w4"].astype(bf16))
    b4 = jnp.zeros((1, OUT_pad), f32).at[:, :1].set(params["b4"].astype(f32))

    def batch_spec(shape):
        # batch-tiled arrays follow the grid index
        return pl.BlockSpec((tile_b,) + tuple(shape[1:]),
                            lambda i: (i,) + (0,) * (len(shape) - 1))

    def resident_spec(shape):
        # constant block index -> Pallas keeps the block VMEM-resident (no redundant DMA)
        return pl.BlockSpec(tuple(shape), lambda i: (0,) * len(shape))

    in_specs = [
        batch_spec(lab_p.shape),
        batch_spec(x_p.shape),
        resident_spec(emb_p.shape),
        resident_spec(w1.shape), resident_spec(b1.shape),
        resident_spec(w2.shape), resident_spec(b2.shape),
        resident_spec(w3.shape), resident_spec(b3.shape),
        resident_spec(w4.shape), resident_spec(b4.shape),
    ]

    out = pl.pallas_call(
        discriminator_kernel,
        out_shape=jax.ShapeDtypeStruct((B_pad, OUT_pad), f32),
        grid=(n_tiles,),
        in_specs=in_specs,
        out_specs=pl.BlockSpec((tile_b, OUT_pad), lambda i: (i, 0)),
        compiler_params=pltpu.CompilerParams(
            dimension_semantics=("parallel",)),    # v7x: split batch tiles across the 2 TCs
    )(lab_p, x_p, emb_p, w1, b1, w2, b2, w3, b3, w4, b4)

    return out[:B, :1]


def init_params(key, out_shape, num_classes):
    """Deterministic parameter init matching the PyTorch module's shapes (f32 master copy)."""
    ks = jax.random.split(key, 9)
    dims = [(out_shape, 512), (512, 256), (256, 128), (128, 1)]
    params = {"emb": jax.random.normal(ks[0], (num_classes, out_shape), jnp.float32)}
    for li, (din, dout) in enumerate(dims, start=1):
        bound = 1.0 / jnp.sqrt(din)
        params[f"w{li}"] = jax.random.uniform(
            ks[2 * li - 1], (din, dout), jnp.float32, -bound, bound)
        params[f"b{li}"] = jax.random.uniform(
            ks[2 * li], (1, dout), jnp.float32, -bound, bound)
    return params


if __name__ == "__main__":
    B = 8
    OUT_SHAPE = 32        # feature dimension (the module's `out_shape`)
    NUM_CLASSES = 10

    key = jax.random.PRNGKey(0)
    k_feat, k_lab, k_par = jax.random.split(key, 3)

    features = jax.random.normal(k_feat, (B, OUT_SHAPE), jnp.float32)
    labels = jax.random.randint(k_lab, (B,), 0, NUM_CLASSES, jnp.int32)
    params = init_params(k_par, OUT_SHAPE, NUM_CLASSES)

    out = discriminator_forward(features, labels, params, tile_b=128)
    out = jax.block_until_ready(out)

    # sanity: correct shape, values in (0, 1) from sigmoid
    assert out.shape == (B, 1)
    assert bool(jnp.all((out > 0.0) & (out < 1.0)))

    # reference 1: mirrors kernel numerics (bf16 matmul operands, f32 accumulate)
    def ref_bf16(features, labels, p):
        d = features * jnp.take(p["emb"], labels, axis=0)
        h = d
        for i, act in [(1, True), (2, True), (3, True), (4, False)]:
            w = p[f"w{i}"].astype(jnp.bfloat16)
            h = jnp.dot(h.astype(jnp.bfloat16), w,
                        preferred_element_type=jnp.float32) + p[f"b{i}"]
            if act:
                h = jnp.where(h > 0, h, 0.2 * h)
        return jax.nn.sigmoid(h)

    # reference 2: full-f32 semantics of the original PyTorch module
    def ref_f32(features, labels, p):
        d = features * jnp.take(p["emb"], labels, axis=0)
        h = d
        for i, act in [(1, True), (2, True), (3, True), (4, False)]:
            h = h @ p[f"w{i}"] + p[f"b{i}"]
            if act:
                h = jnp.where(h > 0, h, 0.2 * h)
        return jax.nn.sigmoid(h)

    assert jnp.allclose(out, ref_bf16(features, labels, params), atol=2e-3, rtol=2e-3)
    assert jnp.allclose(out, ref_f32(features, labels, params), atol=3e-2, rtol=3e-2)

    print("KERNEL_OK")
</pallas_src>

<mosaic_0001>
module attributes {stable_mosaic.version = 11 : i64} {
  func.func @discriminator_kernel(%arg0: i32, %arg1: memref<128x1xi32, #tpu.memory_space<vmem>>, %arg2: memref<128x128xf32, #tpu.memory_space<vmem>>, %arg3: memref<10x128xf32, #tpu.memory_space<vmem>>, %arg4: memref<128x512xbf16, #tpu.memory_space<vmem>>, %arg5: memref<1x512xf32, #tpu.memory_space<vmem>>, %arg6: memref<512x256xbf16, #tpu.memory_space<vmem>>, %arg7: memref<1x256xf32, #tpu.memory_space<vmem>>, %arg8: memref<256x128xbf16, #tpu.memory_space<vmem>>, %arg9: memref<1x128xf32, #tpu.memory_space<vmem>>, %arg10: memref<128x128xbf16, #tpu.memory_space<vmem>>, %arg11: memref<1x128xf32, #tpu.memory_space<vmem>>, %arg12: memref<128x128xf32, #tpu.memory_space<vmem>>) attributes {dimension_semantics = [#tpu.dimension_semantics<parallel>], iteration_bounds = array<i64: 1>, scalar_prefetch = 0 : i64, scratch_operands = 0 : i64, tpu.core_type = #tpu.core_type<tc>, window_params = [{transform_indices = @transform_0, window_bounds = array<i64: 128, 1>}, {transform_indices = @transform_1, window_bounds = array<i64: 128, 128>}, {pipeline_mode = #tpu.pipeline_mode<synchronous>, transform_indices = @transform_2, window_bounds = array<i64: 10, 128>}, {pipeline_mode = #tpu.pipeline_mode<synchronous>, transform_indices = @transform_3, window_bounds = array<i64: 128, 512>}, {pipeline_mode = #tpu.pipeline_mode<synchronous>, transform_indices = @transform_4, window_bounds = array<i64: 1, 512>}, {pipeline_mode = #tpu.pipeline_mode<synchronous>, transform_indices = @transform_5, window_bounds = array<i64: 512, 256>}, {pipeline_mode = #tpu.pipeline_mode<synchronous>, transform_indices = @transform_6, window_bounds = array<i64: 1, 256>}, {pipeline_mode = #tpu.pipeline_mode<synchronous>, transform_indices = @transform_7, window_bounds = array<i64: 256, 128>}, {pipeline_mode = #tpu.pipeline_mode<synchronous>, transform_indices = @transform_8, window_bounds = array<i64: 1, 128>}, {pipeline_mode = #tpu.pipeline_mode<synchronous>, transform_indices = @transform_9, window_bounds = array<i64: 128, 128>}, {pipeline_mode = #tpu.pipeline_mode<synchronous>, transform_indices = @transform_10, window_bounds = array<i64: 1, 128>}, {transform_indices = @transform_11, window_bounds = array<i64: 128, 128>}]} {
    %c0 = arith.constant 0 : index
    %c0_0 = arith.constant 0 : index
    %0 = vector.load %arg1[%c0, %c0_0] : memref<128x1xi32, #tpu.memory_space<vmem>>, vector<128x1xi32>
    %c0_1 = arith.constant 0 : index
    %c0_2 = arith.constant 0 : index
    %1 = vector.load %arg3[%c0_1, %c0_2] : memref<10x128xf32, #tpu.memory_space<vmem>>, vector<10x128xf32>
    %cst = arith.constant 0.000000e+00 : f32
    %2 = vector.broadcast %cst : f32 to vector<128x128xf32>
    %3 = vector.extract_strided_slice %1 {offsets = [0, 0], sizes = [1, 128], strides = [1, 1]} : vector<10x128xf32> to vector<1x128xf32>
    %c0_i32 = arith.constant 0 : i32
    %4 = vector.broadcast %c0_i32 : i32 to vector<128x1xi32>
    %5 = arith.cmpi eq, %0, %4 : vector<128x1xi32>
    %cst_3 = arith.constant 0.000000e+00 : f32
    %6 = vector.shape_cast %5 : vector<128x1xi1> to vector<128x1xi1>
    %7 = vector.broadcast %6 : vector<128x1xi1> to vector<128x128xi1>
    %8 = vector.shape_cast %3 : vector<1x128xf32> to vector<1x128xf32>
    %9 = vector.broadcast %8 : vector<1x128xf32> to vector<128x128xf32>
    %10 = vector.broadcast %cst_3 : f32 to vector<128x128xf32>
    %11 = arith.select %7, %9, %10 : vector<128x128xi1>, vector<128x128xf32>
    %12 = arith.addf %2, %11 : vector<128x128xf32>
    %13 = vector.extract_strided_slice %1 {offsets = [1, 0], sizes = [1, 128], strides = [1, 1]} : vector<10x128xf32> to vector<1x128xf32>
    %c1_i32 = arith.constant 1 : i32
    %14 = vector.broadcast %c1_i32 : i32 to vector<128x1xi32>
    %15 = arith.cmpi eq, %0, %14 : vector<128x1xi32>
    %cst_4 = arith.constant 0.000000e+00 : f32
    %16 = vector.shape_cast %15 : vector<128x1xi1> to vector<128x1xi1>
    %17 = vector.broadcast %16 : vector<128x1xi1> to vector<128x128xi1>
    %18 = vector.shape_cast %13 : vector<1x128xf32> to vector<1x128xf32>
    %19 = vector.broadcast %18 : vector<1x128xf32> to vector<128x128xf32>
    %20 = vector.broadcast %cst_4 : f32 to vector<128x128xf32>
    %21 = arith.select %17, %19, %20 : vector<128x128xi1>, vector<128x128xf32>
    %22 = arith.addf %12, %21 : vector<128x128xf32>
    %23 = vector.extract_strided_slice %1 {offsets = [2, 0], sizes = [1, 128], strides = [1, 1]} : vector<10x128xf32> to vector<1x128xf32>
    %c2_i32 = arith.constant 2 : i32
    %24 = vector.broadcast %c2_i32 : i32 to vector<128x1xi32>
    %25 = arith.cmpi eq, %0, %24 : vector<128x1xi32>
    %cst_5 = arith.constant 0.000000e+00 : f32
    %26 = vector.shape_cast %25 : vector<128x1xi1> to vector<128x1xi1>
    %27 = vector.broadcast %26 : vector<128x1xi1> to vector<128x128xi1>
    %28 = vector.shape_cast %23 : vector<1x128xf32> to vector<1x128xf32>
    %29 = vector.broadcast %28 : vector<1x128xf32> to vector<128x128xf32>
    %30 = vector.broadcast %cst_5 : f32 to vector<128x128xf32>
    %31 = arith.select %27, %29, %30 : vector<128x128xi1>, vector<128x128xf32>
    %32 = arith.addf %22, %31 : vector<128x128xf32>
    %33 = vector.extract_strided_slice %1 {offsets = [3, 0], sizes = [1, 128], strides = [1, 1]} : vector<10x128xf32> to vector<1x128xf32>
    %c3_i32 = arith.constant 3 : i32
    %34 = vector.broadcast %c3_i32 : i32 to vector<128x1xi32>
    %35 = arith.cmpi eq, %0, %34 : vector<128x1xi32>
    %cst_6 = arith.constant 0.000000e+00 : f32
    %36 = vector.shape_cast %35 : vector<128x1xi1> to vector<128x1xi1>
    %37 = vector.broadcast %36 : vector<128x1xi1> to vector<128x128xi1>
    %38 = vector.shape_cast %33 : vector<1x128xf32> to vector<1x128xf32>
    %39 = vector.broadcast %38 : vector<1x128xf32> to vector<128x128xf32>
    %40 = vector.broadcast %cst_6 : f32 to vector<128x128xf32>
    %41 = arith.select %37, %39, %40 : vector<128x128xi1>, vector<128x128xf32>
    %42 = arith.addf %32, %41 : vector<128x128xf32>
    %43 = vector.extract_strided_slice %1 {offsets = [4, 0], sizes = [1, 128], strides = [1, 1]} : vector<10x128xf32> to vector<1x128xf32>
    %c4_i32 = arith.constant 4 : i32
    %44 = vector.broadcast %c4_i32 : i32 to vector<128x1xi32>
    %45 = arith.cmpi eq, %0, %44 : vector<128x1xi32>
    %cst_7 = arith.constant 0.000000e+00 : f32
    %46 = vector.shape_cast %45 : vector<128x1xi1> to vector<128x1xi1>
    %47 = vector.broadcast %46 : vector<128x1xi1> to vector<128x128xi1>
    %48 = vector.shape_cast %43 : vector<1x128xf32> to vector<1x128xf32>
    %49 = vector.broadcast %48 : vector<1x128xf32> to vector<128x128xf32>
    %50 = vector.broadcast %cst_7 : f32 to vector<128x128xf32>
    %51 = arith.select %47, %49, %50 : vector<128x128xi1>, vector<128x128xf32>
    %52 = arith.addf %42, %51 : vector<128x128xf32>
    %53 = vector.extract_strided_slice %1 {offsets = [5, 0], sizes = [1, 128], strides = [1, 1]} : vector<10x128xf32> to vector<1x128xf32>
    %c5_i32 = arith.constant 5 : i32
    %54 = vector.broadcast %c5_i32 : i32 to vector<128x1xi32>
    %55 = arith.cmpi eq, %0, %54 : vector<128x1xi32>
    %cst_8 = arith.constant 0.000000e+00 : f32
    %56 = vector.shape_cast %55 : vector<128x1xi1> to vector<128x1xi1>
    %57 = vector.broadcast %56 : vector<128x1xi1> to vector<128x128xi1>
    %58 = vector.shape_cast %53 : vector<1x128xf32> to vector<1x128xf32>
    %59 = vector.broadcast %58 : vector<1x128xf32> to vector<128x128xf32>
    %60 = vector.broadcast %cst_8 : f32 to vector<128x128xf32>
    %61 = arith.select %57, %59, %60 : vector<128x128xi1>, vector<128x128xf32>
    %62 = arith.addf %52, %61 : vector<128x128xf32>
    %63 = vector.extract_strided_slice %1 {offsets = [6, 0], sizes = [1, 128], strides = [1, 1]} : vector<10x128xf32> to vector<1x128xf32>
    %c6_i32 = arith.constant 6 : i32
    %64 = vector.broadcast %c6_i32 : i32 to vector<128x1xi32>
    %65 = arith.cmpi eq, %0, %64 : vector<128x1xi32>
    %cst_9 = arith.constant 0.000000e+00 : f32
    %66 = vector.shape_cast %65 : vector<128x1xi1> to vector<128x1xi1>
    %67 = vector.broadcast %66 : vector<128x1xi1> to vector<128x128xi1>
    %68 = vector.shape_cast %63 : vector<1x128xf32> to vector<1x128xf32>
    %69 = vector.broadcast %68 : vector<1x128xf32> to vector<128x128xf32>
    %70 = vector.broadcast %cst_9 : f32 to vector<128x128xf32>
    %71 = arith.select %67, %69, %70 : vector<128x128xi1>, vector<128x128xf32>
    %72 = arith.addf %62, %71 : vector<128x128xf32>
    %73 = vector.extract_strided_slice %1 {offsets = [7, 0], sizes = [1, 128], strides = [1, 1]} : vector<10x128xf32> to vector<1x128xf32>
    %c7_i32 = arith.constant 7 : i32
    %74 = vector.broadcast %c7_i32 : i32 to vector<128x1xi32>
    %75 = arith.cmpi eq, %0, %74 : vector<128x1xi32>
    %cst_10 = arith.constant 0.000000e+00 : f32
    %76 = vector.shape_cast %75 : vector<128x1xi1> to vector<128x1xi1>
    %77 = vector.broadcast %76 : vector<128x1xi1> to vector<128x128xi1>
    %78 = vector.shape_cast %73 : vector<1x128xf32> to vector<1x128xf32>
    %79 = vector.broadcast %78 : vector<1x128xf32> to vector<128x128xf32>
    %80 = vector.broadcast %cst_10 : f32 to vector<128x128xf32>
    %81 = arith.select %77, %79, %80 : vector<128x128xi1>, vector<128x128xf32>
    %82 = arith.addf %72, %81 : vector<128x128xf32>
    %83 = vector.extract_strided_slice %1 {offsets = [8, 0], sizes = [1, 128], strides = [1, 1]} : vector<10x128xf32> to vector<1x128xf32>
    %c8_i32 = arith.constant 8 : i32
    %84 = vector.broadcast %c8_i32 : i32 to vector<128x1xi32>
    %85 = arith.cmpi eq, %0, %84 : vector<128x1xi32>
    %cst_11 = arith.constant 0.000000e+00 : f32
    %86 = vector.shape_cast %85 : vector<128x1xi1> to vector<128x1xi1>
    %87 = vector.broadcast %86 : vector<128x1xi1> to vector<128x128xi1>
    %88 = vector.shape_cast %83 : vector<1x128xf32> to vector<1x128xf32>
    %89 = vector.broadcast %88 : vector<1x128xf32> to vector<128x128xf32>
    %90 = vector.broadcast %cst_11 : f32 to vector<128x128xf32>
    %91 = arith.select %87, %89, %90 : vector<128x128xi1>, vector<128x128xf32>
    %92 = arith.addf %82, %91 : vector<128x128xf32>
    %93 = vector.extract_strided_slice %1 {offsets = [9, 0], sizes = [1, 128], strides = [1, 1]} : vector<10x128xf32> to vector<1x128xf32>
    %c9_i32 = arith.constant 9 : i32
    %94 = vector.broadcast %c9_i32 : i32 to vector<128x1xi32>
    %95 = arith.cmpi eq, %0, %94 : vector<128x1xi32>
    %cst_12 = arith.constant 0.000000e+00 : f32
    %96 = vector.shape_cast %95 : vector<128x1xi1> to vector<128x1xi1>
    %97 = vector.broadcast %96 : vector<128x1xi1> to vector<128x128xi1>
    %98 = vector.shape_cast %93 : vector<1x128xf32> to vector<1x128xf32>
    %99 = vector.broadcast %98 : vector<1x128xf32> to vector<128x128xf32>
    %100 = vector.broadcast %cst_12 : f32 to vector<128x128xf32>
    %101 = arith.select %97, %99, %100 : vector<128x128xi1>, vector<128x128xf32>
    %102 = arith.addf %92, %101 : vector<128x128xf32>
    %c0_13 = arith.constant 0 : index
    %c0_14 = arith.constant 0 : index
    %103 = vector.load %arg2[%c0_13, %c0_14] : memref<128x128xf32, #tpu.memory_space<vmem>>, vector<128x128xf32>
    %104 = arith.mulf %103, %102 : vector<128x128xf32>
    %105 = arith.truncf %104 : vector<128x128xf32> to vector<128x128xbf16>
    %c0_15 = arith.constant 0 : index
    %c0_16 = arith.constant 0 : index
    %106 = vector.load %arg4[%c0_15, %c0_16] : memref<128x512xbf16, #tpu.memory_space<vmem>>, vector<128x512xbf16>
    %cst_17 = arith.constant dense<0.000000e+00> : vector<128x512xf32>
    %107 = tpu.matmul %105, %106, %cst_17 {dimension_numbers = #tpu.dot_dimension_numbers<[1], [0], [0], [1], [0, 0, 1, 1], [], []>} : vector<128x128xbf16>, vector<128x512xbf16>, vector<128x512xf32> -> vector<128x512xf32>
    %c0_18 = arith.constant 0 : index
    %c0_19 = arith.constant 0 : index
    %108 = vector.load %arg5[%c0_18, %c0_19] : memref<1x512xf32, #tpu.memory_space<vmem>>, vector<1x512xf32>
    %109 = vector.broadcast %108 : vector<1x512xf32> to vector<128x512xf32>
    %110 = arith.addf %107, %109 : vector<128x512xf32>
    %cst_20 = arith.constant 0.000000e+00 : f32
    %111 = vector.broadcast %cst_20 : f32 to vector<128x512xf32>
    %112 = arith.cmpf ogt, %110, %111 : vector<128x512xf32>
    %cst_21 = arith.constant 2.000000e-01 : f32
    %113 = vector.broadcast %cst_21 : f32 to vector<128x512xf32>
    %114 = arith.mulf %113, %110 : vector<128x512xf32>
    %115 = arith.select %112, %110, %114 : vector<128x512xi1>, vector<128x512xf32>
    %116 = arith.truncf %115 : vector<128x512xf32> to vector<128x512xbf16>
    %c0_22 = arith.constant 0 : index
    %c0_23 = arith.constant 0 : index
    %117 = vector.load %arg6[%c0_22, %c0_23] : memref<512x256xbf16, #tpu.memory_space<vmem>>, vector<512x256xbf16>
    %cst_24 = arith.constant dense<0.000000e+00> : vector<128x256xf32>
    %118 = tpu.matmul %116, %117, %cst_24 {dimension_numbers = #tpu.dot_dimension_numbers<[1], [0], [0], [1], [0, 0, 1, 1], [], []>} : vector<128x512xbf16>, vector<512x256xbf16>, vector<128x256xf32> -> vector<128x256xf32>
    %c0_25 = arith.constant 0 : index
    %c0_26 = arith.constant 0 : index
    %119 = vector.load %arg7[%c0_25, %c0_26] : memref<1x256xf32, #tpu.memory_space<vmem>>, vector<1x256xf32>
    %120 = vector.broadcast %119 : vector<1x256xf32> to vector<128x256xf32>
    %121 = arith.addf %118, %120 : vector<128x256xf32>
    %cst_27 = arith.constant 0.000000e+00 : f32
    %122 = vector.broadcast %cst_27 : f32 to vector<128x256xf32>
    %123 = arith.cmpf ogt, %121, %122 : vector<128x256xf32>
    %cst_28 = arith.constant 2.000000e-01 : f32
    %124 = vector.broadcast %cst_28 : f32 to vector<128x256xf32>
    %125 = arith.mulf %124, %121 : vector<128x256xf32>
    %126 = arith.select %123, %121, %125 : vector<128x256xi1>, vector<128x256xf32>
    %127 = arith.truncf %126 : vector<128x256xf32> to vector<128x256xbf16>
    %c0_29 = arith.constant 0 : index
    %c0_30 = arith.constant 0 : index
    %128 = vector.load %arg8[%c0_29, %c0_30] : memref<256x128xbf16, #tpu.memory_space<vmem>>, vector<256x128xbf16>
    %cst_31 = arith.constant dense<0.000000e+00> : vector<128x128xf32>
    %129 = tpu.matmul %127, %128, %cst_31 {dimension_numbers = #tpu.dot_dimension_numbers<[1], [0], [0], [1], [0, 0, 1, 1], [], []>} : vector<128x256xbf16>, vector<256x128xbf16>, vector<128x128xf32> -> vector<128x128xf32>
    %c0_32 = arith.constant 0 : index
    %c0_33 = arith.constant 0 : index
    %130 = vector.load %arg9[%c0_32, %c0_33] : memref<1x128xf32, #tpu.memory_space<vmem>>, vector<1x128xf32>
    %131 = vector.broadcast %130 : vector<1x128xf32> to vector<128x128xf32>
    %132 = arith.addf %129, %131 : vector<128x128xf32>
    %cst_34 = arith.constant 0.000000e+00 : f32
    %133 = vector.broadcast %cst_34 : f32 to vector<128x128xf32>
    %134 = arith.cmpf ogt, %132, %133 : vector<128x128xf32>
    %cst_35 = arith.constant 2.000000e-01 : f32
    %135 = vector.broadcast %cst_35 : f32 to vector<128x128xf32>
    %136 = arith.mulf %135, %132 : vector<128x128xf32>
    %137 = arith.select %134, %132, %136 : vector<128x128xi1>, vector<128x128xf32>
    %138 = arith.truncf %137 : vector<128x128xf32> to vector<128x128xbf16>
    %c0_36 = arith.constant 0 : index
    %c0_37 = arith.constant 0 : index
    %139 = vector.load %arg10[%c0_36, %c0_37] : memref<128x128xbf16, #tpu.memory_space<vmem>>, vector<128x128xbf16>
    %cst_38 = arith.constant dense<0.000000e+00> : vector<128x128xf32>
    %140 = tpu.matmul %138, %139, %cst_38 {dimension_numbers = #tpu.dot_dimension_numbers<[1], [0], [0], [1], [0, 0, 1, 1], [], []>} : vector<128x128xbf16>, vector<128x128xbf16>, vector<128x128xf32> -> vector<128x128xf32>
    %c0_39 = arith.constant 0 : index
    %c0_40 = arith.constant 0 : index
    %141 = vector.load %arg11[%c0_39, %c0_40] : memref<1x128xf32, #tpu.memory_space<vmem>>, vector<1x128xf32>
    %142 = vector.broadcast %141 : vector<1x128xf32> to vector<128x128xf32>
    %143 = arith.addf %140, %142 : vector<128x128xf32>
    %144 = math.absf %143 : vector<128x128xf32>
    %cst_41 = arith.constant 0.000000e+00 : f32
    %145 = vector.broadcast %cst_41 : f32 to vector<128x128xf32>
    %146 = arith.subf %145, %144 : vector<128x128xf32>
    %147 = math.exp %146 : vector<128x128xf32>
    %cst_42 = arith.constant 0.000000e+00 : f32
    %148 = vector.broadcast %cst_42 : f32 to vector<128x128xf32>
    %149 = arith.cmpf oge, %143, %148 : vector<128x128xf32>
    %cst_43 = arith.constant 1.000000e+00 : f32
    %150 = vector.broadcast %cst_43 : f32 to vector<128x128xf32>
    %151 = arith.addf %150, %147 : vector<128x128xf32>
    %cst_44 = arith.constant 1.000000e+00 : f32
    %152 = vector.broadcast %cst_44 : f32 to vector<128x128xf32>
    %153 = arith.divf %152, %151 : vector<128x128xf32>
    %cst_45 = arith.constant 1.000000e+00 : f32
    %154 = vector.broadcast %cst_45 : f32 to vector<128x128xf32>
    %155 = arith.addf %154, %147 : vector<128x128xf32>
    %156 = arith.divf %147, %155 : vector<128x128xf32>
    %157 = arith.select %149, %153, %156 : vector<128x128xi1>, vector<128x128xf32>
    %c0_46 = arith.constant 0 : index
    %c0_47 = arith.constant 0 : index
    %158 = vector.load %arg12[%c0_46, %c0_47] : memref<128x128xf32, #tpu.memory_space<vmem>>, vector<128x128xf32>
    tpu.vector_store %arg12[%c0_46, %c0_47], %157 {strides = array<i32>} : memref<128x128xf32, #tpu.memory_space<vmem>>, vector<128x128xf32>,
    return
  }
  func.func @transform_0(%arg0: i32) -> (i32, i32) {
    %c0_i32 = arith.constant 0 : i32
    %c0_i32_0 = arith.constant 0 : i32
    return %arg0, %c0_i32 : i32, i32
  }
  func.func @transform_1(%arg0: i32) -> (i32, i32) {
    %c0_i32 = arith.constant 0 : i32
    %c0_i32_0 = arith.constant 0 : i32
    return %arg0, %c0_i32 : i32, i32
  }
  func.func @transform_2(%arg0: i32) -> (i32, i32) {
    %c0_i32 = arith.constant 0 : i32
    %c0_i32_0 = arith.constant 0 : i32
    %c0_i32_1 = arith.constant 0 : i32
    return %c0_i32, %c0_i32_0 : i32, i32
  }
  func.func @transform_3(%arg0: i32) -> (i32, i32) {
    %c0_i32 = arith.constant 0 : i32
    %c0_i32_0 = arith.constant 0 : i32
    %c0_i32_1 = arith.constant 0 : i32
    return %c0_i32, %c0_i32_0 : i32, i32
  }
  func.func @transform_4(%arg0: i32) -> (i32, i32) {
    %c0_i32 = arith.constant 0 : i32
    %c0_i32_0 = arith.constant 0 : i32
    %c0_i32_1 = arith.constant 0 : i32
    return %c0_i32, %c0_i32_0 : i32, i32
  }
  func.func @transform_5(%arg0: i32) -> (i32, i32) {
    %c0_i32 = arith.constant 0 : i32
    %c0_i32_0 = arith.constant 0 : i32
    %c0_i32_1 = arith.constant 0 : i32
    return %c0_i32, %c0_i32_0 : i32, i32
  }
  func.func @transform_6(%arg0: i32) -> (i32, i32) {
    %c0_i32 = arith.constant 0 : i32
    %c0_i32_0 = arith.constant 0 : i32
    %c0_i32_1 = arith.constant 0 : i32
    return %c0_i32, %c0_i32_0 : i32, i32
  }
  func.func @transform_7(%arg0: i32) -> (i32, i32) {
    %c0_i32 = arith.constant 0 : i32
    %c0_i32_0 = arith.constant 0 : i32
    %c0_i32_1 = arith.constant 0 : i32
    return %c0_i32, %c0_i32_0 : i32, i32
  }
  func.func @transform_8(%arg0: i32) -> (i32, i32) {
    %c0_i32 = arith.constant 0 : i32
    %c0_i32_0 = arith.constant 0 : i32
    %c0_i32_1 = arith.constant 0 : i32
    return %c0_i32, %c0_i32_0 : i32, i32
  }
  func.func @transform_9(%arg0: i32) -> (i32, i32) {
    %c0_i32 = arith.constant 0 : i32
    %c0_i32_0 = arith.constant 0 : i32
    %c0_i32_1 = arith.constant 0 : i32
    return %c0_i32, %c0_i32_0 : i32, i32
  }
  func.func @transform_10(%arg0: i32) -> (i32, i32) {
    %c0_i32 = arith.constant 0 : i32
    %c0_i32_0 = arith.constant 0 : i32
    %c0_i32_1 = arith.constant 0 : i32
    return %c0_i32, %c0_i32_0 : i32, i32
  }
  func.func @transform_11(%arg0: i32) -> (i32, i32) {
    %c0_i32 = arith.constant 0 : i32
    %c0_i32_0 = arith.constant 0 : i32
    return %arg0, %c0_i32 : i32, i32
  }
}

</mosaic_0001>

<llo_original>
// kernel: tpu_custom_call.1
$region0: #{tpu_custom_call.1}
  #allocation0 [shape = 'u32[]', space=smem, size = 0x4, offset = 0x4, fixed_abs, tag = 'smem constant byte address 0x4 - core index']
  #allocation1 [shape = 'u32[72,128]{1,0:T(1,128)}', space=vmem, size = 0x9000, scoped, tag = 'internal scratch']
  %s0 = inlined_call_operand.vmem [shape: s32[128,1], index: 0, kind: input, shape index: {}]
  %s1 = inlined_call_operand.vmem [shape: f32[128,128], index: 1, kind: input, shape index: {}]
  %s2 = inlined_call_operand.hbm [shape: f32[10,128], index: 2, kind: input, shape index: {}]
  %s3 = inlined_call_operand.hbm [shape: bf16[128,512], index: 3, kind: input, shape index: {}]
  %s4 = inlined_call_operand.vmem [shape: f32[1,512], index: 4, kind: input, shape index: {}]
  %s5 = inlined_call_operand.hbm [shape: bf16[512,256], index: 5, kind: input, shape index: {}]
  %s6 = inlined_call_operand.vmem [shape: f32[1,256], index: 6, kind: input, shape index: {}]
  %s7 = inlined_call_operand.hbm [shape: bf16[256,128], index: 7, kind: input, shape index: {}]
  %s8 = inlined_call_operand.vmem [shape: f32[1,128], index: 8, kind: input, shape index: {}]
  %s9 = inlined_call_operand.hbm [shape: bf16[128,128], index: 9, kind: input, shape index: {}]
  %s10 = inlined_call_operand.vmem [shape: f32[1,128], index: 10, kind: input, shape index: {}]
  %s11 = inlined_call_operand.hbm [shape: f32[128,128], index: 11, kind: output, shape index: {}]
  %s12 = sld [smem:[#allocation0]]
  $region74: #{tpu_custom_call.1} parent=0
    _
  %s14 = ssub.s32 1, %s12
  %s15 = scalar_select 0, %s14, %s12
  $region1: #{tpu_custom_call.1} parent=0
    #allocation2 [shape = 'u8[8192]{0}', space=vmem, size = 0x2000, scoped, tag = 'input window, operand 2, single buffered']
    #allocation3 [shape = 's32[1]{0}', space=sflag, size = 0x4, scoped, tag = 'scoped memory for tpu_custom_call.1']
    #allocation4 [shape = 's32[1]{0}', space=sflag, size = 0x4, scoped, tag = 'scoped memory for tpu_custom_call.1']
    #allocation5 [shape = 'u8[131072]{0}', space=vmem, size = 0x20000, scoped, tag = 'input window, operand 3, single buffered']
    #allocation6 [shape = 's32[1]{0}', space=sflag, size = 0x4, scoped, tag = 'scoped memory for tpu_custom_call.1']
    #allocation7 [shape = 'u8[262144]{0}', space=vmem, size = 0x40000, scoped, tag = 'input window, operand 5, single buffered']
    #allocation8 [shape = 'u8[65536]{0}', space=vmem, size = 0x10000, scoped, tag = 'input window, operand 7, single buffered']
    #allocation9 [shape = 's32[1]{0}', space=sflag, size = 0x4, scoped, tag = 'scoped memory for tpu_custom_call.1']
    #allocation10 [shape = 'u8[32768]{0}', space=vmem, size = 0x8000, scoped, tag = 'input window, operand 9, single buffered']
    #allocation11 [shape = 'u8[65536]{0}', space=vmem, size = 0x10000, scoped, tag = 'output window, operand 0, single buffered']
    %16 = vsyncpa [#allocation3], 0
    %17 = vsyncpa [#allocation6], 0
    %18 = vsyncpa [#allocation9], 0
    %19 = vsyncpa [#allocation4], 0
    // Predicated region
    $region2: #{tpu_custom_call.1} parent=1 // pred_check
      _
    $region3: #{tpu_custom_call.1} parent=1 // pred_check_branch
      %21 = sbr.rel (0) target = $region5
    $region4: #{tpu_custom_call.1} parent=1 // pred_region
      _
    $region5: #{tpu_custom_call.1} parent=1 // pred_fallthru
      _
    // Predicated region
    $region6: #{tpu_custom_call.1} parent=1 // pred_check
      _
    $region7: #{tpu_custom_call.1} parent=1 // pred_check_branch
      %23 = sbr.rel (0) target = $region9
    $region8: #{tpu_custom_call.1} parent=1 // pred_region
      _
    $region9: #{tpu_custom_call.1} parent=1 // pred_fallthru
      _
    // Predicated region
    $region10: #{tpu_custom_call.1} parent=1 // pred_check
      _
    $region11: #{tpu_custom_call.1} parent=1 // pred_check_branch
      %25 = sbr.rel (0) target = $region13
    $region12: #{tpu_custom_call.1} parent=1 // pred_region
      %27 = vsyncadd [#allocation3], 0
      %s28 = sshll.u32 %s2, 4
      %s29 = int_to_ptr.hbm [resolvable:$true] %s28
      %s30 = sshll.u32 [#allocation2], 4
      %s31 = int_to_ptr.vmem [resolvable:$true] %s30
      %36 = dma.hbm_to_vmem [thread:$0]  %s29, 256, %s31, [#allocation3], 128, 128, 8
    $region13: #{tpu_custom_call.1} parent=1 // pred_fallthru
      _
    // Predicated region
    $region14: #{tpu_custom_call.1} parent=1 // pred_check
      _
    $region15: #{tpu_custom_call.1} parent=1 // pred_check_branch
      %38 = sbr.rel (0) target = $region17
    $region16: #{tpu_custom_call.1} parent=1 // pred_region
      %40 = vsyncadd [#allocation6], 0
      %s41 = sshll.u32 %s3, 4
      %s42 = int_to_ptr.hbm [resolvable:$true] %s41
      %s43 = sshll.u32 [#allocation5], 4
      %s44 = int_to_ptr.vmem [resolvable:$true] %s43
      %49 = dma.hbm_to_vmem [thread:$0]  %s42, 4096, %s44, [#allocation6], 256, 256, 16
    $region17: #{tpu_custom_call.1} parent=1 // pred_fallthru
      _
    // Predicated region
    $region18: #{tpu_custom_call.1} parent=1 // pred_check
      _
    $region19: #{tpu_custom_call.1} parent=1 // pred_check_branch
      %51 = sbr.rel (0) target = $region21
    $region20: #{tpu_custom_call.1} parent=1 // pred_region
      _
    $region21: #{tpu_custom_call.1} parent=1 // pred_fallthru
      _
    // Predicated region
    $region22: #{tpu_custom_call.1} parent=1 // pred_check
      _
    $region23: #{tpu_custom_call.1} parent=1 // pred_check_branch
      %53 = sbr.rel (0) target = $region25
    $region24: #{tpu_custom_call.1} parent=1 // pred_region
      %55 = vsyncadd [#allocation6], 0
      %s56 = sshll.u32 %s5, 4
      %s57 = int_to_ptr.hbm [resolvable:$true] %s56
      %s58 = sshll.u32 [#allocation7], 4
      %s59 = int_to_ptr.vmem [resolvable:$true] %s58
      %64 = dma.hbm_to_vmem [thread:$0]  %s57, 8192, %s59, [#allocation6], 128, 128, 8
    $region25: #{tpu_custom_call.1} parent=1 // pred_fallthru
      _
    // Predicated region
    $region26: #{tpu_custom_call.1} parent=1 // pred_check
      _
    $region27: #{tpu_custom_call.1} parent=1 // pred_check_branch
      %66 = sbr.rel (0) target = $region29
    $region28: #{tpu_custom_call.1} parent=1 // pred_region
      _
    $region29: #{tpu_custom_call.1} parent=1 // pred_fallthru
      _
    // Predicated region
    $region30: #{tpu_custom_call.1} parent=1 // pred_check
      _
    $region31: #{tpu_custom_call.1} parent=1 // pred_check_branch
      %68 = sbr.rel (0) target = $region33
    $region32: #{tpu_custom_call.1} parent=1 // pred_region
      %70 = vsyncadd [#allocation9], 0
      %s71 = sshll.u32 %s7, 4
      %s72 = int_to_ptr.hbm [resolvable:$true] %s71
      %s73 = sshll.u32 [#allocation8], 4
      %s74 = int_to_ptr.vmem [resolvable:$true] %s73
      %79 = dma.hbm_to_vmem [thread:$0]  %s72, 2048, %s74, [#allocation9], 64, 64, 4
    $region33: #{tpu_custom_call.1} parent=1 // pred_fallthru
      _
    // Predicated region
    $region34: #{tpu_custom_call.1} parent=1 // pred_check
      _
    $region35: #{tpu_custom_call.1} parent=1 // pred_check_branch
      %81 = sbr.rel (0) target = $region37
    $region36: #{tpu_custom_call.1} parent=1 // pred_region
      _
    $region37: #{tpu_custom_call.1} parent=1 // pred_fallthru
      _
    // Predicated region
    $region38: #{tpu_custom_call.1} parent=1 // pred_check
      _
    $region39: #{tpu_custom_call.1} parent=1 // pred_check_branch
      %83 = sbr.rel (0) target = $region41
    $region40: #{tpu_custom_call.1} parent=1 // pred_region
      %85 = vsyncadd [#allocation9], 0
      %s86 = sshll.u32 %s9, 4
      %s87 = int_to_ptr.hbm [resolvable:$true] %s86
      %s88 = sshll.u32 [#allocation10], 4
      %s89 = int_to_ptr.vmem [resolvable:$true] %s88
      %94 = dma.hbm_to_vmem [thread:$0]  %s87, 1024, %s89, [#allocation9], 64, 64, 4
    $region41: #{tpu_custom_call.1} parent=1 // pred_fallthru
      _
    // Predicated region
    $region42: #{tpu_custom_call.1} parent=1 // pred_check
      _
    $region43: #{tpu_custom_call.1} parent=1 // pred_check_branch
      %96 = sbr.rel (0) target = $region45
    $region44: #{tpu_custom_call.1} parent=1 // pred_region
      _
    $region45: #{tpu_custom_call.1} parent=1 // pred_fallthru
      _
    // Predicated region
    $region46: #{tpu_custom_call.1} parent=1 // pred_check
      _
    $region47: #{tpu_custom_call.1} parent=1 // pred_check_branch
      %98 = sbr.rel (0) target = $region49
    $region48: #{tpu_custom_call.1} parent=1 // pred_region
      %100 = dma.done [#allocation3], 256
    $region49: #{tpu_custom_call.1} parent=1 // pred_fallthru
      _
    // Predicated region
    $region50: #{tpu_custom_call.1} parent=1 // pred_check
      _
    $region51: #{tpu_custom_call.1} parent=1 // pred_check_branch
      %102 = sbr.rel (0) target = $region53
    $region52: #{tpu_custom_call.1} parent=1 // pred_region
      %104 = dma.done [#allocation6], 4096
    $region53: #{tpu_custom_call.1} parent=1 // pred_fallthru
      _
    // Predicated region
    $region54: #{tpu_custom_call.1} parent=1 // pred_check
      _
    $region55: #{tpu_custom_call.1} parent=1 // pred_check_branch
      %106 = sbr.rel (0) target = $region57
    $region56: #{tpu_custom_call.1} parent=1 // pred_region
      %108 = dma.done [#allocation6], 8192
    $region57: #{tpu_custom_call.1} parent=1 // pred_fallthru
      _
    // Predicated region
    $region58: #{tpu_custom_call.1} parent=1 // pred_check
      _
    $region59: #{tpu_custom_call.1} parent=1 // pred_check_branch
      %110 = sbr.rel (0) target = $region61
    $region60: #{tpu_custom_call.1} parent=1 // pred_region
      %112 = dma.done [#allocation9], 2048
    $region61: #{tpu_custom_call.1} parent=1 // pred_fallthru
      _
    // Predicated region
    $region62: #{tpu_custom_call.1} parent=1 // pred_check
      _
    $region63: #{tpu_custom_call.1} parent=1 // pred_check_branch
      %114 = sbr.rel (0) target = $region65
    $region64: #{tpu_custom_call.1} parent=1 // pred_region
      %116 = dma.done [#allocation9], 1024
    $region65: #{tpu_custom_call.1} parent=1 // pred_fallthru
      _
    %v117 = vld [vmem:[%s0] sm:$0xff]
    %v118 = vld [vmem:[%s0 + $0x8] sm:$0xff]
    %v119 = vld [vmem:[%s0 + $0x10] sm:$0xff]
    %v120 = vld [vmem:[%s0 + $0x18] sm:$0xff]
    %v121 = vld [vmem:[%s0 + $0x20] sm:$0xff]
    %v122 = vld [vmem:[%s0 + $0x28] sm:$0xff]
    %v123 = vld [vmem:[%s0 + $0x30] sm:$0xff]
    %v124 = vld [vmem:[%s0 + $0x38] sm:$0xff]
    %v125 = vld [vmem:[%s0 + $0x40] sm:$0xff]
    %v126 = vld [vmem:[%s0 + $0x48] sm:$0xff]
    %v127 = vld [vmem:[%s0 + $0x50] sm:$0xff]
    %v128 = vld [vmem:[%s0 + $0x58] sm:$0xff]
    %v129 = vld [vmem:[%s0 + $0x60] sm:$0xff]
    %v130 = vld [vmem:[%s0 + $0x68] sm:$0xff]
    %v131 = vld [vmem:[%s0 + $0x70] sm:$0xff]
    %v132 = vld [vmem:[%s0 + $0x78] sm:$0xff]
    %v133 = vld [vmem:[#allocation2] sm:$0xff]
    %v134 = vld [vmem:[#allocation2 + $0x8] sm:$0x3]
    %vm135 = vcmp.eq.s32.totalorder %v117, 0
    %vm136 = vcmp.eq.s32.totalorder %v118, 0
    %vm137 = vcmp.eq.s32.totalorder %v119, 0
    %vm138 = vcmp.eq.s32.totalorder %v120, 0
    %vm139 = vcmp.eq.s32.totalorder %v121, 0
    %vm140 = vcmp.eq.s32.totalorder %v122, 0
    %vm141 = vcmp.eq.s32.totalorder %v123, 0
    %vm142 = vcmp.eq.s32.totalorder %v124, 0
    %vm143 = vcmp.eq.s32.totalorder %v125, 0
    %vm144 = vcmp.eq.s32.totalorder %v126, 0
    %vm145 = vcmp.eq.s32.totalorder %v127, 0
    %vm146 = vcmp.eq.s32.totalorder %v128, 0
    %vm147 = vcmp.eq.s32.totalorder %v129, 0
    %vm148 = vcmp.eq.s32.totalorder %v130, 0
    %vm149 = vcmp.eq.s32.totalorder %v131, 0
    %vm150 = vcmp.eq.s32.totalorder %v132, 0
    %v151 = vsel %vm135, 1, 0
    %v152 = vsel %vm136, 1, 0
    %v153 = vsel %vm137, 1, 0
    %v154 = vsel %vm138, 1, 0
    %v155 = vsel %vm139, 1, 0
    %v156 = vsel %vm140, 1, 0
    %v157 = vsel %vm141, 1, 0
    %v158 = vsel %vm142, 1, 0
    %v159 = vsel %vm143, 1, 0
    %v160 = vsel %vm144, 1, 0
    %v161 = vsel %vm145, 1, 0
    %v162 = vsel %vm146, 1, 0
    %v163 = vsel %vm147, 1, 0
    %v164 = vsel %vm148, 1, 0
    %v165 = vsel %vm149, 1, 0
    %v166 = vsel %vm150, 1, 0
    %167 = vset.pattern.permute.xlu0 0
    %168 = vperm.xlu0 %167, %v151
    %v169 = vpop.permute.xlu0 %168
    %170 = vset.pattern.permute.xlu0 0
    %171 = vperm.xlu0 %170, %v152
    %v172 = vpop.permute.xlu0 %171
    %173 = vset.pattern.permute.xlu0 0
    %174 = vperm.xlu0 %173, %v153
    %v175 = vpop.permute.xlu0 %174
    %176 = vset.pattern.permute.xlu0 0
    %177 = vperm.xlu0 %176, %v154
    %v178 = vpop.permute.xlu0 %177
    %179 = vset.pattern.permute.xlu0 0
    %180 = vperm.xlu0 %179, %v155
    %v181 = vpop.permute.xlu0 %180
    %182 = vset.pattern.permute.xlu0 0
    %183 = vperm.xlu0 %182, %v156
    %v184 = vpop.permute.xlu0 %183
    %185 = vset.pattern.permute.xlu0 0
    %186 = vperm.xlu0 %185, %v157
    %v187 = vpop.permute.xlu0 %186
    %188 = vset.pattern.permute.xlu0 0
    %189 = vperm.xlu0 %188, %v158
    %v190 = vpop.permute.xlu0 %189
    %191 = vset.pattern.permute.xlu0 0
    %192 = vperm.xlu0 %191, %v159
    %v193 = vpop.permute.xlu0 %192
    %194 = vset.pattern.permute.xlu0 0
    %195 = vperm.xlu0 %194, %v160
    %v196 = vpop.permute.xlu0 %195
    %197 = vset.pattern.permute.xlu0 0
    %198 = vperm.xlu0 %197, %v161
    %v199 = vpop.permute.xlu0 %198
    %200 = vset.pattern.permute.xlu0 0
    %201 = vperm.xlu0 %200, %v162
    %v202 = vpop.permute.xlu0 %201
    %203 = vset.pattern.permute.xlu0 0
    %204 = vperm.xlu0 %203, %v163
    %v205 = vpop.permute.xlu0 %204
    %206 = vset.pattern.permute.xlu0 0
    %207 = vperm.xlu0 %206, %v164
    %v208 = vpop.permute.xlu0 %207
    %209 = vset.pattern.permute.xlu0 0
    %210 = vperm.xlu0 %209, %v165
    %v211 = vpop.permute.xlu0 %210
    %212 = vset.pattern.permute.xlu0 0
    %213 = vperm.xlu0 %212, %v166
    %v214 = vpop.permute.xlu0 %213
    %vm215 = vcmp.eq.s32.totalorder %v169, 1
    %vm216 = vcmp.eq.s32.totalorder %v172, 1
    %vm217 = vcmp.eq.s32.totalorder %v175, 1
    %vm218 = vcmp.eq.s32.totalorder %v178, 1
    %vm219 = vcmp.eq.s32.totalorder %v181, 1
    %vm220 = vcmp.eq.s32.totalorder %v184, 1
    %vm221 = vcmp.eq.s32.totalorder %v187, 1
    %vm222 = vcmp.eq.s32.totalorder %v190, 1
    %vm223 = vcmp.eq.s32.totalorder %v193, 1
    %vm224 = vcmp.eq.s32.totalorder %v196, 1
    %vm225 = vcmp.eq.s32.totalorder %v199, 1
    %vm226 = vcmp.eq.s32.totalorder %v202, 1
    %vm227 = vcmp.eq.s32.totalorder %v205, 1
    %vm228 = vcmp.eq.s32.totalorder %v208, 1
    %vm229 = vcmp.eq.s32.totalorder %v211, 1
    %vm230 = vcmp.eq.s32.totalorder %v214, 1
    %v231 = vperm.slane %v133, 0
    %v232 = vsel %vm215, %v231, 0.0
    %v233 = vsel %vm216, %v231, 0.0
    %v234 = vsel %vm217, %v231, 0.0
    %v235 = vsel %vm218, %v231, 0.0
    %v236 = vsel %vm219, %v231, 0.0
    %v237 = vsel %vm220, %v231, 0.0
    %v238 = vsel %vm221, %v231, 0.0
    %v239 = vsel %vm222, %v231, 0.0
    %v240 = vsel %vm223, %v231, 0.0
    %v241 = vsel %vm224, %v231, 0.0
    %v242 = vsel %vm225, %v231, 0.0
    %v243 = vsel %vm226, %v231, 0.0
    %v244 = vsel %vm227, %v231, 0.0
    %v245 = vsel %vm228, %v231, 0.0
    %v246 = vsel %vm229, %v231, 0.0
    %v247 = vsel %vm230, %v231, 0.0
    %v248 = vadd.f32 %v232, 0.0
    %v249 = vadd.f32 %v233, 0.0
    %v250 = vadd.f32 %v234, 0.0
    %v251 = vadd.f32 %v235, 0.0
    %v252 = vadd.f32 %v236, 0.0
    %v253 = vadd.f32 %v237, 0.0
    %v254 = vadd.f32 %v238, 0.0
    %v255 = vadd.f32 %v239, 0.0
    %v256 = vadd.f32 %v240, 0.0
    %v257 = vadd.f32 %v241, 0.0
    %v258 = vadd.f32 %v242, 0.0
    %v259 = vadd.f32 %v243, 0.0
    %v260 = vadd.f32 %v244, 0.0
    %v261 = vadd.f32 %v245, 0.0
    %v262 = vadd.f32 %v246, 0.0
    %v263 = vadd.f32 %v247, 0.0
    %vm264 = vcmp.eq.s32.totalorder %v117, 1
    %vm265 = vcmp.eq.s32.totalorder %v118, 1
    %vm266 = vcmp.eq.s32.totalorder %v119, 1
    %vm267 = vcmp.eq.s32.totalorder %v120, 1
    %vm268 = vcmp.eq.s32.totalorder %v121, 1
    %vm269 = vcmp.eq.s32.totalorder %v122, 1
    %vm270 = vcmp.eq.s32.totalorder %v123, 1
    %vm271 = vcmp.eq.s32.totalorder %v124, 1
    %vm272 = vcmp.eq.s32.totalorder %v125, 1
    %vm273 = vcmp.eq.s32.totalorder %v126, 1
    %vm274 = vcmp.eq.s32.totalorder %v127, 1
    %vm275 = vcmp.eq.s32.totalorder %v128, 1
    %vm276 = vcmp.eq.s32.totalorder %v129, 1
    %vm277 = vcmp.eq.s32.totalorder %v130, 1
    %vm278 = vcmp.eq.s32.totalorder %v131, 1
    %vm279 = vcmp.eq.s32.totalorder %v132, 1
    %v280 = vsel %vm264, 1, 0
    %v281 = vsel %vm265, 1, 0
    %v282 = vsel %vm266, 1, 0
    %v283 = vsel %vm267, 1, 0
    %v284 = vsel %vm268, 1, 0
    %v285 = vsel %vm269, 1, 0
    %v286 = vsel %vm270, 1, 0
    %v287 = vsel %vm271, 1, 0
    %v288 = vsel %vm272, 1, 0
    %v289 = vsel %vm273, 1, 0
    %v290 = vsel %vm274, 1, 0
    %v291 = vsel %vm275, 1, 0
    %v292 = vsel %vm276, 1, 0
    %v293 = vsel %vm277, 1, 0
    %v294 = vsel %vm278, 1, 0
    %v295 = vsel %vm279, 1, 0
    %296 = vset.pattern.permute.xlu0 0
    %297 = vperm.xlu0 %296, %v280
    %v298 = vpop.permute.xlu0 %297
    %299 = vset.pattern.permute.xlu0 0
    %300 = vperm.xlu0 %299, %v281
    %v301 = vpop.permute.xlu0 %300
    %302 = vset.pattern.permute.xlu0 0
    %303 = vperm.xlu0 %302, %v282
    %v304 = vpop.permute.xlu0 %303
    %305 = vset.pattern.permute.xlu0 0
    %306 = vperm.xlu0 %305, %v283
    %v307 = vpop.permute.xlu0 %306
    %308 = vset.pattern.permute.xlu0 0
    %309 = vperm.xlu0 %308, %v284
    %v310 = vpop.permute.xlu0 %309
    %311 = vset.pattern.permute.xlu0 0
    %312 = vperm.xlu0 %311, %v285
    %v313 = vpop.permute.xlu0 %312
    %314 = vset.pattern.permute.xlu0 0
    %315 = vperm.xlu0 %314, %v286
    %v316 = vpop.permute.xlu0 %315
    %317 = vset.pattern.permute.xlu0 0
    %318 = vperm.xlu0 %317, %v287
    %v319 = vpop.permute.xlu0 %318
    %320 = vset.pattern.permute.xlu0 0
    %321 = vperm.xlu0 %320, %v288
    %v322 = vpop.permute.xlu0 %321
    %323 = vset.pattern.permute.xlu0 0
    %324 = vperm.xlu0 %323, %v289
    %v325 = vpop.permute.xlu0 %324
    %326 = vset.pattern.permute.xlu0 0
    %327 = vperm.xlu0 %326, %v290
    %v328 = vpop.permute.xlu0 %327
    %329 = vset.pattern.permute.xlu0 0
    %330 = vperm.xlu0 %329, %v291
    %v331 = vpop.permute.xlu0 %330
    %332 = vset.pattern.permute.xlu0 0
    %333 = vperm.xlu0 %332, %v292
    %v334 = vpop.permute.xlu0 %333
    %335 = vset.pattern.permute.xlu0 0
    %336 = vperm.xlu0 %335, %v293
    %v337 = vpop.permute.xlu0 %336
    %338 = vset.pattern.permute.xlu0 0
    %339 = vperm.xlu0 %338, %v294
    %v340 = vpop.permute.xlu0 %339
    %341 = vset.pattern.permute.xlu0 0
    %342 = vperm.xlu0 %341, %v295
    %v343 = vpop.permute.xlu0 %342
    %vm344 = vcmp.eq.s32.totalorder %v298, 1
    %vm345 = vcmp.eq.s32.totalorder %v301, 1
    %vm346 = vcmp.eq.s32.totalorder %v304, 1
    %vm347 = vcmp.eq.s32.totalorder %v307, 1
    %vm348 = vcmp.eq.s32.totalorder %v310, 1
    %vm349 = vcmp.eq.s32.totalorder %v313, 1
    %vm350 = vcmp.eq.s32.totalorder %v316, 1
    %vm351 = vcmp.eq.s32.totalorder %v319, 1
    %vm352 = vcmp.eq.s32.totalorder %v322, 1
    %vm353 = vcmp.eq.s32.totalorder %v325, 1
    %vm354 = vcmp.eq.s32.totalorder %v328, 1
    %vm355 = vcmp.eq.s32.totalorder %v331, 1
    %vm356 = vcmp.eq.s32.totalorder %v334, 1
    %vm357 = vcmp.eq.s32.totalorder %v337, 1
    %vm358 = vcmp.eq.s32.totalorder %v340, 1
    %vm359 = vcmp.eq.s32.totalorder %v343, 1
    %v360 = vperm.slane %v133, 1
    %v361 = vsel %vm344, %v360, 0.0
    %v362 = vsel %vm345, %v360, 0.0
    %v363 = vsel %vm346, %v360, 0.0
    %v364 = vsel %vm347, %v360, 0.0
    %v365 = vsel %vm348, %v360, 0.0
    %v366 = vsel %vm349, %v360, 0.0
    %v367 = vsel %vm350, %v360, 0.0
    %v368 = vsel %vm351, %v360, 0.0
    %v369 = vsel %vm352, %v360, 0.0
    %v370 = vsel %vm353, %v360, 0.0
    %v371 = vsel %vm354, %v360, 0.0
    %v372 = vsel %vm355, %v360, 0.0
    %v373 = vsel %vm356, %v360, 0.0
    %v374 = vsel %vm357, %v360, 0.0
    %v375 = vsel %vm358, %v360, 0.0
    %v376 = vsel %vm359, %v360, 0.0
    %v377 = vadd.f32 %v248, %v361
    %v378 = vadd.f32 %v249, %v362
    %v379 = vadd.f32 %v250, %v363
    %v380 = vadd.f32 %v251, %v364
    %v381 = vadd.f32 %v252, %v365
    %v382 = vadd.f32 %v253, %v366
    %v383 = vadd.f32 %v254, %v367
    %v384 = vadd.f32 %v255, %v368
    %v385 = vadd.f32 %v256, %v369
    %v386 = vadd.f32 %v257, %v370
    %v387 = vadd.f32 %v258, %v371
    %v388 = vadd.f32 %v259, %v372
    %v389 = vadd.f32 %v260, %v373
    %v390 = vadd.f32 %v261, %v374
    %v391 = vadd.f32 %v262, %v375
    %v392 = vadd.f32 %v263, %v376
    %vm393 = vcmp.eq.s32.totalorder %v117, 2
    %vm394 = vcmp.eq.s32.totalorder %v118, 2
    %vm395 = vcmp.eq.s32.totalorder %v119, 2
    %vm396 = vcmp.eq.s32.totalorder %v120, 2
    %vm397 = vcmp.eq.s32.totalorder %v121, 2
    %vm398 = vcmp.eq.s32.totalorder %v122, 2
    %vm399 = vcmp.eq.s32.totalorder %v123, 2
    %vm400 = vcmp.eq.s32.totalorder %v124, 2
    %vm401 = vcmp.eq.s32.totalorder %v125, 2
    %vm402 = vcmp.eq.s32.totalorder %v126, 2
    %vm403 = vcmp.eq.s32.totalorder %v127, 2
    %vm404 = vcmp.eq.s32.totalorder %v128, 2
    %vm405 = vcmp.eq.s32.totalorder %v129, 2
    %vm406 = vcmp.eq.s32.totalorder %v130, 2
    %vm407 = vcmp.eq.s32.totalorder %v131, 2
    %vm408 = vcmp.eq.s32.totalorder %v132, 2
    %v409 = vsel %vm393, 1, 0
    %v410 = vsel %vm394, 1, 0
    %v411 = vsel %vm395, 1, 0
    %v412 = vsel %vm396, 1, 0
    %v413 = vsel %vm397, 1, 0
    %v414 = vsel %vm398, 1, 0
    %v415 = vsel %vm399, 1, 0
    %v416 = vsel %vm400, 1, 0
    %v417 = vsel %vm401, 1, 0
    %v418 = vsel %vm402, 1, 0
    %v419 = vsel %vm403, 1, 0
    %v420 = vsel %vm404, 1, 0
    %v421 = vsel %vm405, 1, 0
    %v422 = vsel %vm406, 1, 0
    %v423 = vsel %vm407, 1, 0
    %v424 = vsel %vm408, 1, 0
    %425 = vset.pattern.permute.xlu0 0
    %426 = vperm.xlu0 %425, %v409
    %v427 = vpop.permute.xlu0 %426
    %428 = vset.pattern.permute.xlu0 0
    %429 = vperm.xlu0 %428, %v410
    %v430 = vpop.permute.xlu0 %429
    %431 = vset.pattern.permute.xlu0 0
    %432 = vperm.xlu0 %431, %v411
    %v433 = vpop.permute.xlu0 %432
    %434 = vset.pattern.permute.xlu0 0
    %435 = vperm.xlu0 %434, %v412
    %v436 = vpop.permute.xlu0 %435
    %437 = vset.pattern.permute.xlu0 0
    %438 = vperm.xlu0 %437, %v413
    %v439 = vpop.permute.xlu0 %438
    %440 = vset.pattern.permute.xlu0 0
    %441 = vperm.xlu0 %440, %v414
    %v442 = vpop.permute.xlu0 %441
    %443 = vset.pattern.permute.xlu0 0
    %444 = vperm.xlu0 %443, %v415
    %v445 = vpop.permute.xlu0 %444
    %446 = vset.pattern.permute.xlu0 0
    %447 = vperm.xlu0 %446, %v416
    %v448 = vpop.permute.xlu0 %447
    %449 = vset.pattern.permute.xlu0 0
    %450 = vperm.xlu0 %449, %v417
    %v451 = vpop.permute.xlu0 %450
    %452 = vset.pattern.permute.xlu0 0
    %453 = vperm.xlu0 %452, %v418
    %v454 = vpop.permute.xlu0 %453
    %455 = vset.pattern.permute.xlu0 0
    %456 = vperm.xlu0 %455, %v419
    %v457 = vpop.permute.xlu0 %456
    %458 = vset.pattern.permute.xlu0 0
    %459 = vperm.xlu0 %458, %v420
    %v460 = vpop.permute.xlu0 %459
    %461 = vset.pattern.permute.xlu0 0
    %462 = vperm.xlu0 %461, %v421
    %v463 = vpop.permute.xlu0 %462
    %464 = vset.pattern.permute.xlu0 0
    %465 = vperm.xlu0 %464, %v422
    %v466 = vpop.permute.xlu0 %465
    %467 = vset.pattern.permute.xlu0 0
    %468 = vperm.xlu0 %467, %v423
    %v469 = vpop.permute.xlu0 %468
    %470 = vset.pattern.permute.xlu0 0
    %471 = vperm.xlu0 %470, %v424
    %v472 = vpop.permute.xlu0 %471
    %vm473 = vcmp.eq.s32.totalorder %v427, 1
    %vm474 = vcmp.eq.s32.totalorder %v430, 1
    %vm475 = vcmp.eq.s32.totalorder %v433, 1
    %vm476 = vcmp.eq.s32.totalorder %v436, 1
    %vm477 = vcmp.eq.s32.totalorder %v439, 1
    %vm478 = vcmp.eq.s32.totalorder %v442, 1
    %vm479 = vcmp.eq.s32.totalorder %v445, 1
    %vm480 = vcmp.eq.s32.totalorder %v448, 1
    %vm481 = vcmp.eq.s32.totalorder %v451, 1
    %vm482 = vcmp.eq.s32.totalorder %v454, 1
    %vm483 = vcmp.eq.s32.totalorder %v457, 1
    %vm484 = vcmp.eq.s32.totalorder %v460, 1
    %vm485 = vcmp.eq.s32.totalorder %v463, 1
    %vm486 = vcmp.eq.s32.totalorder %v466, 1
    %vm487 = vcmp.eq.s32.totalorder %v469, 1
    %vm488 = vcmp.eq.s32.totalorder %v472, 1
    %v489 = vperm.slane %v133, 2
    %v490 = vsel %vm473, %v489, 0.0
    %v491 = vsel %vm474, %v489, 0.0
    %v492 = vsel %vm475, %v489, 0.0
    %v493 = vsel %vm476, %v489, 0.0
    %v494 = vsel %vm477, %v489, 0.0
    %v495 = vsel %vm478, %v489, 0.0
    %v496 = vsel %vm479, %v489, 0.0
    %v497 = vsel %vm480, %v489, 0.0
    %v498 = vsel %vm481, %v489, 0.0
    %v499 = vsel %vm482, %v489, 0.0
    %v500 = vsel %vm483, %v489, 0.0
    %v501 = vsel %vm484, %v489, 0.0
    %v502 = vsel %vm485, %v489, 0.0
    %v503 = vsel %vm486, %v489, 0.0
    %v504 = vsel %vm487, %v489, 0.0
    %v505 = vsel %vm488, %v489, 0.0
    %v506 = vadd.f32 %v377, %v490
    %v507 = vadd.f32 %v378, %v491
    %v508 = vadd.f32 %v379, %v492
    %v509 = vadd.f32 %v380, %v493
    %v510 = vadd.f32 %v381, %v494
    %v511 = vadd.f32 %v382, %v495
    %v512 = vadd.f32 %v383, %v496
    %v513 = vadd.f32 %v384, %v497
    %v514 = vadd.f32 %v385, %v498
    %v515 = vadd.f32 %v386, %v499
    %v516 = vadd.f32 %v387, %v500
    %v517 = vadd.f32 %v388, %v501
    %v518 = vadd.f32 %v389, %v502
    %v519 = vadd.f32 %v390, %v503
    %v520 = vadd.f32 %v391, %v504
    %v521 = vadd.f32 %v392, %v505
    %vm522 = vcmp.eq.s32.totalorder %v117, 3
    %vm523 = vcmp.eq.s32.totalorder %v118, 3
    %vm524 = vcmp.eq.s32.totalorder %v119, 3
    %vm525 = vcmp.eq.s32.totalorder %v120, 3
    %vm526 = vcmp.eq.s32.totalorder %v121, 3
    %vm527 = vcmp.eq.s32.totalorder %v122, 3
    %vm528 = vcmp.eq.s32.totalorder %v123, 3
    %vm529 = vcmp.eq.s32.totalorder %v124, 3
    %vm530 = vcmp.eq.s32.totalorder %v125, 3
    %vm531 = vcmp.eq.s32.totalorder %v126, 3
    %vm532 = vcmp.eq.s32.totalorder %v127, 3
    %vm533 = vcmp.eq.s32.totalorder %v128, 3
    %vm534 = vcmp.eq.s32.totalorder %v129, 3
    %vm535 = vcmp.eq.s32.totalorder %v130, 3
    %vm536 = vcmp.eq.s32.totalorder %v131, 3
    %vm537 = vcmp.eq.s32.totalorder %v132, 3
    %v538 = vsel %vm522, 1, 0
    %v539 = vsel %vm523, 1, 0
    %v540 = vsel %vm524, 1, 0
    %v541 = vsel %vm525, 1, 0
    %v542 = vsel %vm526, 1, 0
    %v543 = vsel %vm527, 1, 0
    %v544 = vsel %vm528, 1, 0
    %v545 = vsel %vm529, 1, 0
    %v546 = vsel %vm530, 1, 0
    %v547 = vsel %vm531, 1, 0
    %v548 = vsel %vm532, 1, 0
    %v549 = vsel %vm533, 1, 0
    %v550 = vsel %vm534, 1, 0
    %v551 = vsel %vm535, 1, 0
    %v552 = vsel %vm536, 1, 0
    %v553 = vsel %vm537, 1, 0
    %554 = vset.pattern.permute.xlu0 0
    %555 = vperm.xlu0 %554, %v538
    %v556 = vpop.permute.xlu0 %555
    %557 = vset.pattern.permute.xlu0 0
    %558 = vperm.xlu0 %557, %v539
    %v559 = vpop.permute.xlu0 %558
    %560 = vset.pattern.permute.xlu0 0
    %561 = vperm.xlu0 %560, %v540
    %v562 = vpop.permute.xlu0 %561
    %563 = vset.pattern.permute.xlu0 0
    %564 = vperm.xlu0 %563, %v541
    %v565 = vpop.permute.xlu0 %564
    %566 = vset.pattern.permute.xlu0 0
    %567 = vperm.xlu0 %566, %v542
    %v568 = vpop.permute.xlu0 %567
    %569 = vset.pattern.permute.xlu0 0
    %570 = vperm.xlu0 %569, %v543
    %v571 = vpop.permute.xlu0 %570
    %572 = vset.pattern.permute.xlu0 0
    %573 = vperm.xlu0 %572, %v544
    %v574 = vpop.permute.xlu0 %573
    %575 = vset.pattern.permute.xlu0 0
    %576 = vperm.xlu0 %575, %v545
    %v577 = vpop.permute.xlu0 %576
    %578 = vset.pattern.permute.xlu0 0
    %579 = vperm.xlu0 %578, %v546
    %v580 = vpop.permute.xlu0 %579
    %581 = vset.pattern.permute.xlu0 0
    %582 = vperm.xlu0 %581, %v547
    %v583 = vpop.permute.xlu0 %582
    %584 = vset.pattern.permute.xlu0 0
    %585 = vperm.xlu0 %584, %v548
    %v586 = vpop.permute.xlu0 %585
    %587 = vset.pattern.permute.xlu0 0
    %588 = vperm.xlu0 %587, %v549
    %v589 = vpop.permute.xlu0 %588
    %590 = vset.pattern.permute.xlu0 0
    %591 = vperm.xlu0 %590, %v550
    %v592 = vpop.permute.xlu0 %591
    %593 = vset.pattern.permute.xlu0 0
    %594 = vperm.xlu0 %593, %v551
    %v595 = vpop.permute.xlu0 %594
    %596 = vset.pattern.permute.xlu0 0
    %597 = vperm.xlu0 %596, %v552
    %v598 = vpop.permute.xlu0 %597
    %599 = vset.pattern.permute.xlu0 0
    %600 = vperm.xlu0 %599, %v553
    %v601 = vpop.permute.xlu0 %600
    %vm602 = vcmp.eq.s32.totalorder %v556, 1
    %vm603 = vcmp.eq.s32.totalorder %v559, 1
    %vm604 = vcmp.eq.s32.totalorder %v562, 1
    %vm605 = vcmp.eq.s32.totalorder %v565, 1
    %vm606 = vcmp.eq.s32.totalorder %v568, 1
    %vm607 = vcmp.eq.s32.totalorder %v571, 1
    %vm608 = vcmp.eq.s32.totalorder %v574, 1
    %vm609 = vcmp.eq.s32.totalorder %v577, 1
    %vm610 = vcmp.eq.s32.totalorder %v580, 1
    %vm611 = vcmp.eq.s32.totalorder %v583, 1
    %vm612 = vcmp.eq.s32.totalorder %v586, 1
    %vm613 = vcmp.eq.s32.totalorder %v589, 1
    %vm614 = vcmp.eq.s32.totalorder %v592, 1
    %vm615 = vcmp.eq.s32.totalorder %v595, 1
    %vm616 = vcmp.eq.s32.totalorder %v598, 1
    %vm617 = vcmp.eq.s32.totalorder %v601, 1
    %v618 = vperm.slane %v133, 3
    %v619 = vsel %vm602, %v618, 0.0
    %v620 = vsel %vm603, %v618, 0.0
    %v621 = vsel %vm604, %v618, 0.0
    %v622 = vsel %vm605, %v618, 0.0
    %v623 = vsel %vm606, %v618, 0.0
    %v624 = vsel %vm607, %v618, 0.0
    %v625 = vsel %vm608, %v618, 0.0
    %v626 = vsel %vm609, %v618, 0.0
    %v627 = vsel %vm610, %v618, 0.0
    %v628 = vsel %vm611, %v618, 0.0
    %v629 = vsel %vm612, %v618, 0.0
    %v630 = vsel %vm613, %v618, 0.0
    %v631 = vsel %vm614, %v618, 0.0
    %v632 = vsel %vm615, %v618, 0.0
    %v633 = vsel %vm616, %v618, 0.0
    %v634 = vsel %vm617, %v618, 0.0
    %v635 = vadd.f32 %v506, %v619
    %v636 = vadd.f32 %v507, %v620
    %v637 = vadd.f32 %v508, %v621
    %v638 = vadd.f32 %v509, %v622
    %v639 = vadd.f32 %v510, %v623
    %v640 = vadd.f32 %v511, %v624
    %v641 = vadd.f32 %v512, %v625
    %v642 = vadd.f32 %v513, %v626
    %v643 = vadd.f32 %v514, %v627
    %v644 = vadd.f32 %v515, %v628
    %v645 = vadd.f32 %v516, %v629
    %v646 = vadd.f32 %v517, %v630
    %v647 = vadd.f32 %v518, %v631
    %v648 = vadd.f32 %v519, %v632
    %v649 = vadd.f32 %v520, %v633
    %v650 = vadd.f32 %v521, %v634
    %vm651 = vcmp.eq.s32.totalorder %v117, 4
    %vm652 = vcmp.eq.s32.totalorder %v118, 4
    %vm653 = vcmp.eq.s32.totalorder %v119, 4
    %vm654 = vcmp.eq.s32.totalorder %v120, 4
    %vm655 = vcmp.eq.s32.totalorder %v121, 4
    %vm656 = vcmp.eq.s32.totalorder %v122, 4
    %vm657 = vcmp.eq.s32.totalorder %v123, 4
    %vm658 = vcmp.eq.s32.totalorder %v124, 4
    %vm659 = vcmp.eq.s32.totalorder %v125, 4
    %vm660 = vcmp.eq.s32.totalorder %v126, 4
    %vm661 = vcmp.eq.s32.totalorder %v127, 4
    %vm662 = vcmp.eq.s32.totalorder %v128, 4
    %vm663 = vcmp.eq.s32.totalorder %v129, 4
    %vm664 = vcmp.eq.s32.totalorder %v130, 4
    %vm665 = vcmp.eq.s32.totalorder %v131, 4
    %vm666 = vcmp.eq.s32.totalorder %v132, 4
    %v667 = vsel %vm651, 1, 0
    %v668 = vsel %vm652, 1, 0
    %v669 = vsel %vm653, 1, 0
    %v670 = vsel %vm654, 1, 0
    %v671 = vsel %vm655, 1, 0
    %v672 = vsel %vm656, 1, 0
    %v673 = vsel %vm657, 1, 0
    %v674 = vsel %vm658, 1, 0
    %v675 = vsel %vm659, 1, 0
    %v676 = vsel %vm660, 1, 0
    %v677 = vsel %vm661, 1, 0
    %v678 = vsel %vm662, 1, 0
    %v679 = vsel %vm663, 1, 0
    %v680 = vsel %vm664, 1, 0
    %v681 = vsel %vm665, 1, 0
    %v682 = vsel %vm666, 1, 0
    %683 = vset.pattern.permute.xlu0 0
    %684 = vperm.xlu0 %683, %v667
    %v685 = vpop.permute.xlu0 %684
    %686 = vset.pattern.permute.xlu0 0
    %687 = vperm.xlu0 %686, %v668
    %v688 = vpop.permute.xlu0 %687
    %689 = vset.pattern.permute.xlu0 0
    %690 = vperm.xlu0 %689, %v669
    %v691 = vpop.permute.xlu0 %690
    %692 = vset.pattern.permute.xlu0 0
    %693 = vperm.xlu0 %692, %v670
    %v694 = vpop.permute.xlu0 %693
    %695 = vset.pattern.permute.xlu0 0
    %696 = vperm.xlu0 %695, %v671
    %v697 = vpop.permute.xlu0 %696
    %698 = vset.pattern.permute.xlu0 0
    %699 = vperm.xlu0 %698, %v672
    %v700 = vpop.permute.xlu0 %699
    %701 = vset.pattern.permute.xlu0 0
    %702 = vperm.xlu0 %701, %v673
    %v703 = vpop.permute.xlu0 %702
    %704 = vset.pattern.permute.xlu0 0
    %705 = vperm.xlu0 %704, %v674
    %v706 = vpop.permute.xlu0 %705
    %707 = vset.pattern.permute.xlu0 0
    %708 = vperm.xlu0 %707, %v675
    %v709 = vpop.permute.xlu0 %708
    %710 = vset.pattern.permute.xlu0 0
    %711 = vperm.xlu0 %710, %v676
    %v712 = vpop.permute.xlu0 %711
    %713 = vset.pattern.permute.xlu0 0
    %714 = vperm.xlu0 %713, %v677
    %v715 = vpop.permute.xlu0 %714
    %716 = vset.pattern.permute.xlu0 0
    %717 = vperm.xlu0 %716, %v678
    %v718 = vpop.permute.xlu0 %717
    %719 = vset.pattern.permute.xlu0 0
    %720 = vperm.xlu0 %719, %v679
    %v721 = vpop.permute.xlu0 %720
    %722 = vset.pattern.permute.xlu0 0
    %723 = vperm.xlu0 %722, %v680
    %v724 = vpop.permute.xlu0 %723
    %725 = vset.pattern.permute.xlu0 0
    %726 = vperm.xlu0 %725, %v681
    %v727 = vpop.permute.xlu0 %726
    %728 = vset.pattern.permute.xlu0 0
    %729 = vperm.xlu0 %728, %v682
    %v730 = vpop.permute.xlu0 %729
    %vm731 = vcmp.eq.s32.totalorder %v685, 1
    %vm732 = vcmp.eq.s32.totalorder %v688, 1
    %vm733 = vcmp.eq.s32.totalorder %v691, 1
    %vm734 = vcmp.eq.s32.totalorder %v694, 1
    %vm735 = vcmp.eq.s32.totalorder %v697, 1
    %vm736 = vcmp.eq.s32.totalorder %v700, 1
    %vm737 = vcmp.eq.s32.totalorder %v703, 1
    %vm738 = vcmp.eq.s32.totalorder %v706, 1
    %vm739 = vcmp.eq.s32.totalorder %v709, 1
    %vm740 = vcmp.eq.s32.totalorder %v712, 1
    %vm741 = vcmp.eq.s32.totalorder %v715, 1
    %vm742 = vcmp.eq.s32.totalorder %v718, 1
    %vm743 = vcmp.eq.s32.totalorder %v721, 1
    %vm744 = vcmp.eq.s32.totalorder %v724, 1
    %vm745 = vcmp.eq.s32.totalorder %v727, 1
    %vm746 = vcmp.eq.s32.totalorder %v730, 1
    %v747 = vperm.slane %v133, 4
    %v748 = vsel %vm731, %v747, 0.0
    %v749 = vsel %vm732, %v747, 0.0
    %v750 = vsel %vm733, %v747, 0.0
    %v751 = vsel %vm734, %v747, 0.0
    %v752 = vsel %vm735, %v747, 0.0
    %v753 = vsel %vm736, %v747, 0.0
    %v754 = vsel %vm737, %v747, 0.0
    %v755 = vsel %vm738, %v747, 0.0
    %v756 = vsel %vm739, %v747, 0.0
    %v757 = vsel %vm740, %v747, 0.0
    %v758 = vsel %vm741, %v747, 0.0
    %v759 = vsel %vm742, %v747, 0.0
    %v760 = vsel %vm743, %v747, 0.0
    %v761 = vsel %vm744, %v747, 0.0
    %v762 = vsel %vm745, %v747, 0.0
    %v763 = vsel %vm746, %v747, 0.0
    %v764 = vadd.f32 %v635, %v748
    %v765 = vadd.f32 %v636, %v749
    %v766 = vadd.f32 %v637, %v750
    %v767 = vadd.f32 %v638, %v751
    %v768 = vadd.f32 %v639, %v752
    %v769 = vadd.f32 %v640, %v753
    %v770 = vadd.f32 %v641, %v754
    %v771 = vadd.f32 %v642, %v755
    %v772 = vadd.f32 %v643, %v756
    %v773 = vadd.f32 %v644, %v757
    %v774 = vadd.f32 %v645, %v758
    %v775 = vadd.f32 %v646, %v759
    %v776 = vadd.f32 %v647, %v760
    %v777 = vadd.f32 %v648, %v761
    %v778 = vadd.f32 %v649, %v762
    %v779 = vadd.f32 %v650, %v763
    %vm780 = vcmp.eq.s32.totalorder %v117, 5
    %vm781 = vcmp.eq.s32.totalorder %v118, 5
    %vm782 = vcmp.eq.s32.totalorder %v119, 5
    %vm783 = vcmp.eq.s32.totalorder %v120, 5
    %vm784 = vcmp.eq.s32.totalorder %v121, 5
    %vm785 = vcmp.eq.s32.totalorder %v122, 5
    %vm786 = vcmp.eq.s32.totalorder %v123, 5
    %vm787 = vcmp.eq.s32.totalorder %v124, 5
    %vm788 = vcmp.eq.s32.totalorder %v125, 5
    %vm789 = vcmp.eq.s32.totalorder %v126, 5
    %vm790 = vcmp.eq.s32.totalorder %v127, 5
    %vm791 = vcmp.eq.s32.totalorder %v128, 5
    %vm792 = vcmp.eq.s32.totalorder %v129, 5
    %vm793 = vcmp.eq.s32.totalorder %v130, 5
    %vm794 = vcmp.eq.s32.totalorder %v131, 5
    %vm795 = vcmp.eq.s32.totalorder %v132, 5
    %v796 = vsel %vm780, 1, 0
    %v797 = vsel %vm781, 1, 0
    %v798 = vsel %vm782, 1, 0
    %v799 = vsel %vm783, 1, 0
    %v800 = vsel %vm784, 1, 0
    %v801 = vsel %vm785, 1, 0
    %v802 = vsel %vm786, 1, 0
    %v803 = vsel %vm787, 1, 0
    %v804 = vsel %vm788, 1, 0
    %v805 = vsel %vm789, 1, 0
    %v806 = vsel %vm790, 1, 0
    %v807 = vsel %vm791, 1, 0
    %v808 = vsel %vm792, 1, 0
    %v809 = vsel %vm793, 1, 0
    %v810 = vsel %vm794, 1, 0
    %v811 = vsel %vm795, 1, 0
    %812 = vset.pattern.permute.xlu0 0
    %813 = vperm.xlu0 %812, %v796
    %v814 = vpop.permute.xlu0 %813
    %815 = vset.pattern.permute.xlu0 0
    %816 = vperm.xlu0 %815, %v797
    %v817 = vpop.permute.xlu0 %816
    %818 = vset.pattern.permute.xlu0 0
    %819 = vperm.xlu0 %818, %v798
    %v820 = vpop.permute.xlu0 %819
    %821 = vset.pattern.permute.xlu0 0
    %822 = vperm.xlu0 %821, %v799
    %v823 = vpop.permute.xlu0 %822
    %824 = vset.pattern.permute.xlu0 0
    %825 = vperm.xlu0 %824, %v800
    %v826 = vpop.permute.xlu0 %825
    %827 = vset.pattern.permute.xlu0 0
    %828 = vperm.xlu0 %827, %v801
    %v829 = vpop.permute.xlu0 %828
    %830 = vset.pattern.permute.xlu0 0
    %831 = vperm.xlu0 %830, %v802
    %v832 = vpop.permute.xlu0 %831
    %833 = vset.pattern.permute.xlu0 0
    %834 = vperm.xlu0 %833, %v803
    %v835 = vpop.permute.xlu0 %834
    %836 = vset.pattern.permute.xlu0 0
    %837 = vperm.xlu0 %836, %v804
    %v838 = vpop.permute.xlu0 %837
    %839 = vset.pattern.permute.xlu0 0
    %840 = vperm.xlu0 %839, %v805
    %v841 = vpop.permute.xlu0 %840
    %842 = vset.pattern.permute.xlu0 0
    %843 = vperm.xlu0 %842, %v806
    %v844 = vpop.permute.xlu0 %843
    %845 = vset.pattern.permute.xlu0 0
    %846 = vperm.xlu0 %845, %v807
    %v847 = vpop.permute.xlu0 %846
    %848 = vset.pattern.permute.xlu0 0
    %849 = vperm.xlu0 %848, %v808
    %v850 = vpop.permute.xlu0 %849
    %851 = vset.pattern.permute.xlu0 0
    %852 = vperm.xlu0 %851, %v809
    %v853 = vpop.permute.xlu0 %852
    %854 = vset.pattern.permute.xlu0 0
    %855 = vperm.xlu0 %854, %v810
    %v856 = vpop.permute.xlu0 %855
    %857 = vset.pattern.permute.xlu0 0
    %858 = vperm.xlu0 %857, %v811
    %v859 = vpop.permute.xlu0 %858
    %vm860 = vcmp.eq.s32.totalorder %v814, 1
    %vm861 = vcmp.eq.s32.totalorder %v817, 1
    %vm862 = vcmp.eq.s32.totalorder %v820, 1
    %vm863 = vcmp.eq.s32.totalorder %v823, 1
    %vm864 = vcmp.eq.s32.totalorder %v826, 1
    %vm865 = vcmp.eq.s32.totalorder %v829, 1
    %vm866 = vcmp.eq.s32.totalorder %v832, 1
    %vm867 = vcmp.eq.s32.totalorder %v835, 1
    %vm868 = vcmp.eq.s32.totalorder %v838, 1
    %vm869 = vcmp.eq.s32.totalorder %v841, 1
    %vm870 = vcmp.eq.s32.totalorder %v844, 1
    %vm871 = vcmp.eq.s32.totalorder %v847, 1
    %vm872 = vcmp.eq.s32.totalorder %v850, 1
    %vm873 = vcmp.eq.s32.totalorder %v853, 1
    %vm874 = vcmp.eq.s32.totalorder %v856, 1
    %vm875 = vcmp.eq.s32.totalorder %v859, 1
    %v876 = vperm.slane %v133, 5
    %v877 = vsel %vm860, %v876, 0.0
    %v878 = vsel %vm861, %v876, 0.0
    %v879 = vsel %vm862, %v876, 0.0
    %v880 = vsel %vm863, %v876, 0.0
    %v881 = vsel %vm864, %v876, 0.0
    %v882 = vsel %vm865, %v876, 0.0
    %v883 = vsel %vm866, %v876, 0.0
    %v884 = vsel %vm867, %v876, 0.0
    %v885 = vsel %vm868, %v876, 0.0
    %v886 = vsel %vm869, %v876, 0.0
    %v887 = vsel %vm870, %v876, 0.0
    %v888 = vsel %vm871, %v876, 0.0
    %v889 = vsel %vm872, %v876, 0.0
    %v890 = vsel %vm873, %v876, 0.0
    %v891 = vsel %vm874, %v876, 0.0
    %v892 = vsel %vm875, %v876, 0.0
    %v893 = vadd.f32 %v764, %v877
    %v894 = vadd.f32 %v765, %v878
    %v895 = vadd.f32 %v766, %v879
    %v896 = vadd.f32 %v767, %v880
    %v897 = vadd.f32 %v768, %v881
    %v898 = vadd.f32 %v769, %v882
    %v899 = vadd.f32 %v770, %v883
    %v900 = vadd.f32 %v771, %v884
    %v901 = vadd.f32 %v772, %v885
    %v902 = vadd.f32 %v773, %v886
    %v903 = vadd.f32 %v774, %v887
    %v904 = vadd.f32 %v775, %v888
    %v905 = vadd.f32 %v776, %v889
    %v906 = vadd.f32 %v777, %v890
    %v907 = vadd.f32 %v778, %v891
    %v908 = vadd.f32 %v779, %v892
    %vm909 = vcmp.eq.s32.totalorder %v117, 6
    %vm910 = vcmp.eq.s32.totalorder %v118, 6
    %vm911 = vcmp.eq.s32.totalorder %v119, 6
    %vm912 = vcmp.eq.s32.totalorder %v120, 6
    %vm913 = vcmp.eq.s32.totalorder %v121, 6
    %vm914 = vcmp.eq.s32.totalorder %v122, 6
    %vm915 = vcmp.eq.s32.totalorder %v123, 6
    %vm916 = vcmp.eq.s32.totalorder %v124, 6
    %vm917 = vcmp.eq.s32.totalorder %v125, 6
    %vm918 = vcmp.eq.s32.totalorder %v126, 6
    %vm919 = vcmp.eq.s32.totalorder %v127, 6
    %vm920 = vcmp.eq.s32.totalorder %v128, 6
    %vm921 = vcmp.eq.s32.totalorder %v129, 6
    %vm922 = vcmp.eq.s32.totalorder %v130, 6
    %vm923 = vcmp.eq.s32.totalorder %v131, 6
    %vm924 = vcmp.eq.s32.totalorder %v132, 6
    %v925 = vsel %vm909, 1, 0
    %v926 = vsel %vm910, 1, 0
    %v927 = vsel %vm911, 1, 0
    %v928 = vsel %vm912, 1, 0
    %v929 = vsel %vm913, 1, 0
    %v930 = vsel %vm914, 1, 0
    %v931 = vsel %vm915, 1, 0
    %v932 = vsel %vm916, 1, 0
    %v933 = vsel %vm917, 1, 0
    %v934 = vsel %vm918, 1, 0
    %v935 = vsel %vm919, 1, 0
    %v936 = vsel %vm920, 1, 0
    %v937 = vsel %vm921, 1, 0
    %v938 = vsel %vm922, 1, 0
    %v939 = vsel %vm923, 1, 0
    %v940 = vsel %vm924, 1, 0
    %941 = vset.pattern.permute.xlu0 0
    %942 = vperm.xlu0 %941, %v925
    %v943 = vpop.permute.xlu0 %942
    %944 = vset.pattern.permute.xlu0 0
    %945 = vperm.xlu0 %944, %v926
    %v946 = vpop.permute.xlu0 %945
    %947 = vset.pattern.permute.xlu0 0
    %948 = vperm.xlu0 %947, %v927
    %v949 = vpop.permute.xlu0 %948
    %950 = vset.pattern.permute.xlu0 0
    %951 = vperm.xlu0 %950, %v928
    %v952 = vpop.permute.xlu0 %951
    %953 = vset.pattern.permute.xlu0 0
    %954 = vperm.xlu0 %953, %v929
    %v955 = vpop.permute.xlu0 %954
    %956 = vset.pattern.permute.xlu0 0
    %957 = vperm.xlu0 %956, %v930
    %v958 = vpop.permute.xlu0 %957
    %959 = vset.pattern.permute.xlu0 0
    %960 = vperm.xlu0 %959, %v931
    %v961 = vpop.permute.xlu0 %960
    %962 = vset.pattern.permute.xlu0 0
    %963 = vperm.xlu0 %962, %v932
    %v964 = vpop.permute.xlu0 %963
    %965 = vset.pattern.permute.xlu0 0
    %966 = vperm.xlu0 %965, %v933
    %v967 = vpop.permute.xlu0 %966
    %968 = vset.pattern.permute.xlu0 0
    %969 = vperm.xlu0 %968, %v934
    %v970 = vpop.permute.xlu0 %969
    %971 = vset.pattern.permute.xlu0 0
    %972 = vperm.xlu0 %971, %v935
    %v973 = vpop.permute.xlu0 %972
    %974 = vset.pattern.permute.xlu0 0
    %975 = vperm.xlu0 %974, %v936
    %v976 = vpop.permute.xlu0 %975
    %977 = vset.pattern.permute.xlu0 0
    %978 = vperm.xlu0 %977, %v937
    %v979 = vpop.permute.xlu0 %978
    %980 = vset.pattern.permute.xlu0 0
    %981 = vperm.xlu0 %980, %v938
    %v982 = vpop.permute.xlu0 %981
    %983 = vset.pattern.permute.xlu0 0
    %984 = vperm.xlu0 %983, %v939
    %v985 = vpop.permute.xlu0 %984
    %986 = vset.pattern.permute.xlu0 0
    %987 = vperm.xlu0 %986, %v940
    %v988 = vpop.permute.xlu0 %987
    %vm989 = vcmp.eq.s32.totalorder %v943, 1
    %vm990 = vcmp.eq.s32.totalorder %v946, 1
    %vm991 = vcmp.eq.s32.totalorder %v949, 1
    %vm992 = vcmp.eq.s32.totalorder %v952, 1
    %vm993 = vcmp.eq.s32.totalorder %v955, 1
    %vm994 = vcmp.eq.s32.totalorder %v958, 1
    %vm995 = vcmp.eq.s32.totalorder %v961, 1
    %vm996 = vcmp.eq.s32.totalorder %v964, 1
    %vm997 = vcmp.eq.s32.totalorder %v967, 1
    %vm998 = vcmp.eq.s32.totalorder %v970, 1
    %vm999 = vcmp.eq.s32.totalorder %v973, 1
    %vm1000 = vcmp.eq.s32.totalorder %v976, 1
    %vm1001 = vcmp.eq.s32.totalorder %v979, 1
    %vm1002 = vcmp.eq.s32.totalorder %v982, 1
    %vm1003 = vcmp.eq.s32.totalorder %v985, 1
    %vm1004 = vcmp.eq.s32.totalorder %v988, 1
    %v1005 = vperm.slane %v133, 6
    %v1006 = vsel %vm989, %v1005, 0.0
    %v1007 = vsel %vm990, %v1005, 0.0
    %v1008 = vsel %vm991, %v1005, 0.0
    %v1009 = vsel %vm992, %v1005, 0.0
    %v1010 = vsel %vm993, %v1005, 0.0
    %v1011 = vsel %vm994, %v1005, 0.0
    %v1012 = vsel %vm995, %v1005, 0.0
    %v1013 = vsel %vm996, %v1005, 0.0
    %v1014 = vsel %vm997, %v1005, 0.0
    %v1015 = vsel %vm998, %v1005, 0.0
    %v1016 = vsel %vm999, %v1005, 0.0
    %v1017 = vsel %vm1000, %v1005, 0.0
    %v1018 = vsel %vm1001, %v1005, 0.0
    %v1019 = vsel %vm1002, %v1005, 0.0
    %v1020 = vsel %vm1003, %v1005, 0.0
    %v1021 = vsel %vm1004, %v1005, 0.0
    %v1022 = vadd.f32 %v893, %v1006
    %v1023 = vadd.f32 %v894, %v1007
    %v1024 = vadd.f32 %v895, %v1008
    %v1025 = vadd.f32 %v896, %v1009
    %v1026 = vadd.f32 %v897, %v1010
    %v1027 = vadd.f32 %v898, %v1011
    %v1028 = vadd.f32 %v899, %v1012
    %v1029 = vadd.f32 %v900, %v1013
    %v1030 = vadd.f32 %v901, %v1014
    %v1031 = vadd.f32 %v902, %v1015
    %v1032 = vadd.f32 %v903, %v1016
    %v1033 = vadd.f32 %v904, %v1017
    %v1034 = vadd.f32 %v905, %v1018
    %v1035 = vadd.f32 %v906, %v1019
    %v1036 = vadd.f32 %v907, %v1020
    %v1037 = vadd.f32 %v908, %v1021
    %vm1038 = vcmp.eq.s32.totalorder %v117, 7
    %vm1039 = vcmp.eq.s32.totalorder %v118, 7
    %vm1040 = vcmp.eq.s32.totalorder %v119, 7
    %vm1041 = vcmp.eq.s32.totalorder %v120, 7
    %vm1042 = vcmp.eq.s32.totalorder %v121, 7
    %vm1043 = vcmp.eq.s32.totalorder %v122, 7
    %vm1044 = vcmp.eq.s32.totalorder %v123, 7
    %vm1045 = vcmp.eq.s32.totalorder %v124, 7
    %vm1046 = vcmp.eq.s32.totalorder %v125, 7
    %vm1047 = vcmp.eq.s32.totalorder %v126, 7
    %vm1048 = vcmp.eq.s32.totalorder %v127, 7
    %vm1049 = vcmp.eq.s32.totalorder %v128, 7
    %vm1050 = vcmp.eq.s32.totalorder %v129, 7
    %vm1051 = vcmp.eq.s32.totalorder %v130, 7
    %vm1052 = vcmp.eq.s32.totalorder %v131, 7
    %vm1053 = vcmp.eq.s32.totalorder %v132, 7
    %v1054 = vsel %vm1038, 1, 0
    %v1055 = vsel %vm1039, 1, 0
    %v1056 = vsel %vm1040, 1, 0
    %v1057 = vsel %vm1041, 1, 0
    %v1058 = vsel %vm1042, 1, 0
    %v1059 = vsel %vm1043, 1, 0
    %v1060 = vsel %vm1044, 1, 0
    %v1061 = vsel %vm1045, 1, 0
    %v1062 = vsel %vm1046, 1, 0
    %v1063 = vsel %vm1047, 1, 0
    %v1064 = vsel %vm1048, 1, 0
    %v1065 = vsel %vm1049, 1, 0
    %v1066 = vsel %vm1050, 1, 0
    %v1067 = vsel %vm1051, 1, 0
    %v1068 = vsel %vm1052, 1, 0
    %v1069 = vsel %vm1053, 1, 0
    %1070 = vset.pattern.permute.xlu0 0
    %1071 = vperm.xlu0 %1070, %v1054
    %v1072 = vpop.permute.xlu0 %1071
    %1073 = vset.pattern.permute.xlu0 0
    %1074 = vperm.xlu0 %1073, %v1055
    %v1075 = vpop.permute.xlu0 %1074
    %1076 = vset.pattern.permute.xlu0 0
    %1077 = vperm.xlu0 %1076, %v1056
    %v1078 = vpop.permute.xlu0 %1077
    %1079 = vset.pattern.permute.xlu0 0
    %1080 = vperm.xlu0 %1079, %v1057
    %v1081 = vpop.permute.xlu0 %1080
    %1082 = vset.pattern.permute.xlu0 0
    %1083 = vperm.xlu0 %1082, %v1058
    %v1084 = vpop.permute.xlu0 %1083
    %1085 = vset.pattern.permute.xlu0 0
    %1086 = vperm.xlu0 %1085, %v1059
    %v1087 = vpop.permute.xlu0 %1086
    %1088 = vset.pattern.permute.xlu0 0
    %1089 = vperm.xlu0 %1088, %v1060
    %v1090 = vpop.permute.xlu0 %1089
    %1091 = vset.pattern.permute.xlu0 0
    %1092 = vperm.xlu0 %1091, %v1061
    %v1093 = vpop.permute.xlu0 %1092
    %1094 = vset.pattern.permute.xlu0 0
    %1095 = vperm.xlu0 %1094, %v1062
    %v1096 = vpop.permute.xlu0 %1095
    %1097 = vset.pattern.permute.xlu0 0
    %1098 = vperm.xlu0 %1097, %v1063
    %v1099 = vpop.permute.xlu0 %1098
    %1100 = vset.pattern.permute.xlu0 0
    %1101 = vperm.xlu0 %1100, %v1064
    %v1102 = vpop.permute.xlu0 %1101
    %1103 = vset.pattern.permute.xlu0 0
    %1104 = vperm.xlu0 %1103, %v1065
    %v1105 = vpop.permute.xlu0 %1104
    %1106 = vset.pattern.permute.xlu0 0
    %1107 = vperm.xlu0 %1106, %v1066
    %v1108 = vpop.permute.xlu0 %1107
    %1109 = vset.pattern.permute.xlu0 0
    %1110 = vperm.xlu0 %1109, %v1067
    %v1111 = vpop.permute.xlu0 %1110
    %1112 = vset.pattern.permute.xlu0 0
    %1113 = vperm.xlu0 %1112, %v1068
    %v1114 = vpop.permute.xlu0 %1113
    %1115 = vset.pattern.permute.xlu0 0
    %1116 = vperm.xlu0 %1115, %v1069
    %v1117 = vpop.permute.xlu0 %1116
    %vm1118 = vcmp.eq.s32.totalorder %v1072, 1
    %vm1119 = vcmp.eq.s32.totalorder %v1075, 1
    %vm1120 = vcmp.eq.s32.totalorder %v1078, 1
    %vm1121 = vcmp.eq.s32.totalorder %v1081, 1
    %vm1122 = vcmp.eq.s32.totalorder %v1084, 1
    %vm1123 = vcmp.eq.s32.totalorder %v1087, 1
    %vm1124 = vcmp.eq.s32.totalorder %v1090, 1
    %vm1125 = vcmp.eq.s32.totalorder %v1093, 1
    %vm1126 = vcmp.eq.s32.totalorder %v1096, 1
    %vm1127 = vcmp.eq.s32.totalorder %v1099, 1
    %vm1128 = vcmp.eq.s32.totalorder %v1102, 1
    %vm1129 = vcmp.eq.s32.totalorder %v1105, 1
    %vm1130 = vcmp.eq.s32.totalorder %v1108, 1
    %vm1131 = vcmp.eq.s32.totalorder %v1111, 1
    %vm1132 = vcmp.eq.s32.totalorder %v1114, 1
    %vm1133 = vcmp.eq.s32.totalorder %v1117, 1
    %v1134 = vperm.slane %v133, 7
    %v1135 = vsel %vm1118, %v1134, 0.0
    %v1136 = vsel %vm1119, %v1134, 0.0
    %v1137 = vsel %vm1120, %v1134, 0.0
    %v1138 = vsel %vm1121, %v1134, 0.0
    %v1139 = vsel %vm1122, %v1134, 0.0
    %v1140 = vsel %vm1123, %v1134, 0.0
    %v1141 = vsel %vm1124, %v1134, 0.0
    %v1142 = vsel %vm1125, %v1134, 0.0
    %v1143 = vsel %vm1126, %v1134, 0.0
    %v1144 = vsel %vm1127, %v1134, 0.0
    %v1145 = vsel %vm1128, %v1134, 0.0
    %v1146 = vsel %vm1129, %v1134, 0.0
    %v1147 = vsel %vm1130, %v1134, 0.0
    %v1148 = vsel %vm1131, %v1134, 0.0
    %v1149 = vsel %vm1132, %v1134, 0.0
    %v1150 = vsel %vm1133, %v1134, 0.0
    %v1151 = vadd.f32 %v1022, %v1135
    %v1152 = vadd.f32 %v1023, %v1136
    %v1153 = vadd.f32 %v1024, %v1137
    %v1154 = vadd.f32 %v1025, %v1138
    %v1155 = vadd.f32 %v1026, %v1139
    %v1156 = vadd.f32 %v1027, %v1140
    %v1157 = vadd.f32 %v1028, %v1141
    %v1158 = vadd.f32 %v1029, %v1142
    %v1159 = vadd.f32 %v1030, %v1143
    %v1160 = vadd.f32 %v1031, %v1144
    %v1161 = vadd.f32 %v1032, %v1145
    %v1162 = vadd.f32 %v1033, %v1146
    %v1163 = vadd.f32 %v1034, %v1147
    %v1164 = vadd.f32 %v1035, %v1148
    %v1165 = vadd.f32 %v1036, %v1149
    %v1166 = vadd.f32 %v1037, %v1150
    %vm1167 = vcmp.eq.s32.totalorder %v117, 8
    %vm1168 = vcmp.eq.s32.totalorder %v118, 8
    %vm1169 = vcmp.eq.s32.totalorder %v119, 8
    %vm1170 = vcmp.eq.s32.totalorder %v120, 8
    %vm1171 = vcmp.eq.s32.totalorder %v121, 8
    %vm1172 = vcmp.eq.s32.totalorder %v122, 8
    %vm1173 = vcmp.eq.s32.totalorder %v123, 8
    %vm1174 = vcmp.eq.s32.totalorder %v124, 8
    %vm1175 = vcmp.eq.s32.totalorder %v125, 8
    %vm1176 = vcmp.eq.s32.totalorder %v126, 8
    %vm1177 = vcmp.eq.s32.totalorder %v127, 8
    %vm1178 = vcmp.eq.s32.totalorder %v128, 8
    %vm1179 = vcmp.eq.s32.totalorder %v129, 8
    %vm1180 = vcmp.eq.s32.totalorder %v130, 8
    %vm1181 = vcmp.eq.s32.totalorder %v131, 8
    %vm1182 = vcmp.eq.s32.totalorder %v132, 8
    %v1183 = vsel %vm1167, 1, 0
    %v1184 = vsel %vm1168, 1, 0
    %v1185 = vsel %vm1169, 1, 0
    %v1186 = vsel %vm1170, 1, 0
    %v1187 = vsel %vm1171, 1, 0
    %v1188 = vsel %vm1172, 1, 0
    %v1189 = vsel %vm1173, 1, 0
    %v1190 = vsel %vm1174, 1, 0
    %v1191 = vsel %vm1175, 1, 0
    %v1192 = vsel %vm1176, 1, 0
    %v1193 = vsel %vm1177, 1, 0
    %v1194 = vsel %vm1178, 1, 0
    %v1195 = vsel %vm1179, 1, 0
    %v1196 = vsel %vm1180, 1, 0
    %v1197 = vsel %vm1181, 1, 0
    %v1198 = vsel %vm1182, 1, 0
    %1199 = vset.pattern.permute.xlu0 0
    %1200 = vperm.xlu0 %1199, %v1183
    %v1201 = vpop.permute.xlu0 %1200
    %1202 = vset.pattern.permute.xlu0 0
    %1203 = vperm.xlu0 %1202, %v1184
    %v1204 = vpop.permute.xlu0 %1203
    %1205 = vset.pattern.permute.xlu0 0
    %1206 = vperm.xlu0 %1205, %v1185
    %v1207 = vpop.permute.xlu0 %1206
    %1208 = vset.pattern.permute.xlu0 0
    %1209 = vperm.xlu0 %1208, %v1186
    %v1210 = vpop.permute.xlu0 %1209
    %1211 = vset.pattern.permute.xlu0 0
    %1212 = vperm.xlu0 %1211, %v1187
    %v1213 = vpop.permute.xlu0 %1212
    %1214 = vset.pattern.permute.xlu0 0
    %1215 = vperm.xlu0 %1214, %v1188
    %v1216 = vpop.permute.xlu0 %1215
    %1217 = vset.pattern.permute.xlu0 0
    %1218 = vperm.xlu0 %1217, %v1189
    %v1219 = vpop.permute.xlu0 %1218
    %1220 = vset.pattern.permute.xlu0 0
    %1221 = vperm.xlu0 %1220, %v1190
    %v1222 = vpop.permute.xlu0 %1221
    %1223 = vset.pattern.permute.xlu0 0
    %1224 = vperm.xlu0 %1223, %v1191
    %v1225 = vpop.permute.xlu0 %1224
    %1226 = vset.pattern.permute.xlu0 0
    %1227 = vperm.xlu0 %1226, %v1192
    %v1228 = vpop.permute.xlu0 %1227
    %1229 = vset.pattern.permute.xlu0 0
    %1230 = vperm.xlu0 %1229, %v1193
    %v1231 = vpop.permute.xlu0 %1230
    %1232 = vset.pattern.permute.xlu0 0
    %1233 = vperm.xlu0 %1232, %v1194
    %v1234 = vpop.permute.xlu0 %1233
    %1235 = vset.pattern.permute.xlu0 0
    %1236 = vperm.xlu0 %1235, %v1195
    %v1237 = vpop.permute.xlu0 %1236
    %1238 = vset.pattern.permute.xlu0 0
    %1239 = vperm.xlu0 %1238, %v1196
    %v1240 = vpop.permute.xlu0 %1239
    %1241 = vset.pattern.permute.xlu0 0
    %1242 = vperm.xlu0 %1241, %v1197
    %v1243 = vpop.permute.xlu0 %1242
    %1244 = vset.pattern.permute.xlu0 0
    %1245 = vperm.xlu0 %1244, %v1198
    %v1246 = vpop.permute.xlu0 %1245
    %vm1247 = vcmp.eq.s32.totalorder %v1201, 1
    %vm1248 = vcmp.eq.s32.totalorder %v1204, 1
    %vm1249 = vcmp.eq.s32.totalorder %v1207, 1
    %vm1250 = vcmp.eq.s32.totalorder %v1210, 1
    %vm1251 = vcmp.eq.s32.totalorder %v1213, 1
    %vm1252 = vcmp.eq.s32.totalorder %v1216, 1
    %vm1253 = vcmp.eq.s32.totalorder %v1219, 1
    %vm1254 = vcmp.eq.s32.totalorder %v1222, 1
    %vm1255 = vcmp.eq.s32.totalorder %v1225, 1
    %vm1256 = vcmp.eq.s32.totalorder %v1228, 1
    %vm1257 = vcmp.eq.s32.totalorder %v1231, 1
    %vm1258 = vcmp.eq.s32.totalorder %v1234, 1
    %vm1259 = vcmp.eq.s32.totalorder %v1237, 1
    %vm1260 = vcmp.eq.s32.totalorder %v1240, 1
    %vm1261 = vcmp.eq.s32.totalorder %v1243, 1
    %vm1262 = vcmp.eq.s32.totalorder %v1246, 1
    %v1263 = vperm.slane %v134, 0
    %v1264 = vsel %vm1247, %v1263, 0.0
    %v1265 = vsel %vm1248, %v1263, 0.0
    %v1266 = vsel %vm1249, %v1263, 0.0
    %v1267 = vsel %vm1250, %v1263, 0.0
    %v1268 = vsel %vm1251, %v1263, 0.0
    %v1269 = vsel %vm1252, %v1263, 0.0
    %v1270 = vsel %vm1253, %v1263, 0.0
    %v1271 = vsel %vm1254, %v1263, 0.0
    %v1272 = vsel %vm1255, %v1263, 0.0
    %v1273 = vsel %vm1256, %v1263, 0.0
    %v1274 = vsel %vm1257, %v1263, 0.0
    %v1275 = vsel %vm1258, %v1263, 0.0
    %v1276 = vsel %vm1259, %v1263, 0.0
    %v1277 = vsel %vm1260, %v1263, 0.0
    %v1278 = vsel %vm1261, %v1263, 0.0
    %v1279 = vsel %vm1262, %v1263, 0.0
    %v1280 = vadd.f32 %v1151, %v1264
    %v1281 = vadd.f32 %v1152, %v1265
    %v1282 = vadd.f32 %v1153, %v1266
    %v1283 = vadd.f32 %v1154, %v1267
    %v1284 = vadd.f32 %v1155, %v1268
    %v1285 = vadd.f32 %v1156, %v1269
    %v1286 = vadd.f32 %v1157, %v1270
    %v1287 = vadd.f32 %v1158, %v1271
    %v1288 = vadd.f32 %v1159, %v1272
    %v1289 = vadd.f32 %v1160, %v1273
    %v1290 = vadd.f32 %v1161, %v1274
    %v1291 = vadd.f32 %v1162, %v1275
    %v1292 = vadd.f32 %v1163, %v1276
    %v1293 = vadd.f32 %v1164, %v1277
    %v1294 = vadd.f32 %v1165, %v1278
    %v1295 = vadd.f32 %v1166, %v1279
    %vm1296 = vcmp.eq.s32.totalorder %v117, 9
    %vm1297 = vcmp.eq.s32.totalorder %v118, 9
    %vm1298 = vcmp.eq.s32.totalorder %v119, 9
    %vm1299 = vcmp.eq.s32.totalorder %v120, 9
    %vm1300 = vcmp.eq.s32.totalorder %v121, 9
    %vm1301 = vcmp.eq.s32.totalorder %v122, 9
    %vm1302 = vcmp.eq.s32.totalorder %v123, 9
    %vm1303 = vcmp.eq.s32.totalorder %v124, 9
    %vm1304 = vcmp.eq.s32.totalorder %v125, 9
    %vm1305 = vcmp.eq.s32.totalorder %v126, 9
    %vm1306 = vcmp.eq.s32.totalorder %v127, 9
    %vm1307 = vcmp.eq.s32.totalorder %v128, 9
    %vm1308 = vcmp.eq.s32.totalorder %v129, 9
    %vm1309 = vcmp.eq.s32.totalorder %v130, 9
    %vm1310 = vcmp.eq.s32.totalorder %v131, 9
    %vm1311 = vcmp.eq.s32.totalorder %v132, 9
    %v1312 = vsel %vm1296, 1, 0
    %v1313 = vsel %vm1297, 1, 0
    %v1314 = vsel %vm1298, 1, 0
    %v1315 = vsel %vm1299, 1, 0
    %v1316 = vsel %vm1300, 1, 0
    %v1317 = vsel %vm1301, 1, 0
    %v1318 = vsel %vm1302, 1, 0
    %v1319 = vsel %vm1303, 1, 0
    %v1320 = vsel %vm1304, 1, 0
    %v1321 = vsel %vm1305, 1, 0
    %v1322 = vsel %vm1306, 1, 0
    %v1323 = vsel %vm1307, 1, 0
    %v1324 = vsel %vm1308, 1, 0
    %v1325 = vsel %vm1309, 1, 0
    %v1326 = vsel %vm1310, 1, 0
    %v1327 = vsel %vm1311, 1, 0
    %1328 = vset.pattern.permute.xlu0 0
    %1329 = vperm.xlu0 %1328, %v1312
    %v1330 = vpop.permute.xlu0 %1329
    %1331 = vset.pattern.permute.xlu0 0
    %1332 = vperm.xlu0 %1331, %v1313
    %v1333 = vpop.permute.xlu0 %1332
    %1334 = vset.pattern.permute.xlu0 0
    %1335 = vperm.xlu0 %1334, %v1314
    %v1336 = vpop.permute.xlu0 %1335
    %1337 = vset.pattern.permute.xlu0 0
    %1338 = vperm.xlu0 %1337, %v1315
    %v1339 = vpop.permute.xlu0 %1338
    %1340 = vset.pattern.permute.xlu0 0
    %1341 = vperm.xlu0 %1340, %v1316
    %v1342 = vpop.permute.xlu0 %1341
    %1343 = vset.pattern.permute.xlu0 0
    %1344 = vperm.xlu0 %1343, %v1317
    %v1345 = vpop.permute.xlu0 %1344
    %1346 = vset.pattern.permute.xlu0 0
    %1347 = vperm.xlu0 %1346, %v1318
    %v1348 = vpop.permute.xlu0 %1347
    %1349 = vset.pattern.permute.xlu0 0
    %1350 = vperm.xlu0 %1349, %v1319
    %v1351 = vpop.permute.xlu0 %1350
    %1352 = vset.pattern.permute.xlu0 0
    %1353 = vperm.xlu0 %1352, %v1320
    %v1354 = vpop.permute.xlu0 %1353
    %1355 = vset.pattern.permute.xlu0 0
    %1356 = vperm.xlu0 %1355, %v1321
    %v1357 = vpop.permute.xlu0 %1356
    %1358 = vset.pattern.permute.xlu0 0
    %1359 = vperm.xlu0 %1358, %v1322
    %v1360 = vpop.permute.xlu0 %1359
    %1361 = vset.pattern.permute.xlu0 0
    %1362 = vperm.xlu0 %1361, %v1323
    %v1363 = vpop.permute.xlu0 %1362
    %1364 = vset.pattern.permute.xlu0 0
    %1365 = vperm.xlu0 %1364, %v1324
    %v1366 = vpop.permute.xlu0 %1365
    %1367 = vset.pattern.permute.xlu0 0
    %1368 = vperm.xlu0 %1367, %v1325
    %v1369 = vpop.permute.xlu0 %1368
    %1370 = vset.pattern.permute.xlu0 0
    %1371 = vperm.xlu0 %1370, %v1326
    %v1372 = vpop.permute.xlu0 %1371
    %1373 = vset.pattern.permute.xlu0 0
    %1374 = vperm.xlu0 %1373, %v1327
    %v1375 = vpop.permute.xlu0 %1374
    %vm1376 = vcmp.eq.s32.totalorder %v1330, 1
    %vm1377 = vcmp.eq.s32.totalorder %v1333, 1
    %vm1378 = vcmp.eq.s32.totalorder %v1336, 1
    %vm1379 = vcmp.eq.s32.totalorder %v1339, 1
    %vm1380 = vcmp.eq.s32.totalorder %v1342, 1
    %vm1381 = vcmp.eq.s32.totalorder %v1345, 1
    %vm1382 = vcmp.eq.s32.totalorder %v1348, 1
    %vm1383 = vcmp.eq.s32.totalorder %v1351, 1
    %vm1384 = vcmp.eq.s32.totalorder %v1354, 1
    %vm1385 = vcmp.eq.s32.totalorder %v1357, 1
    %vm1386 = vcmp.eq.s32.totalorder %v1360, 1
    %vm1387 = vcmp.eq.s32.totalorder %v1363, 1
    %vm1388 = vcmp.eq.s32.totalorder %v1366, 1
    %vm1389 = vcmp.eq.s32.totalorder %v1369, 1
    %vm1390 = vcmp.eq.s32.totalorder %v1372, 1
    %vm1391 = vcmp.eq.s32.totalorder %v1375, 1
    %v1392 = vperm.slane %v134, 1
    %v1393 = vsel %vm1376, %v1392, 0.0
    %v1394 = vsel %vm1377, %v1392, 0.0
    %v1395 = vsel %vm1378, %v1392, 0.0
    %v1396 = vsel %vm1379, %v1392, 0.0
    %v1397 = vsel %vm1380, %v1392, 0.0
    %v1398 = vsel %vm1381, %v1392, 0.0
    %v1399 = vsel %vm1382, %v1392, 0.0
    %v1400 = vsel %vm1383, %v1392, 0.0
    %v1401 = vsel %vm1384, %v1392, 0.0
    %v1402 = vsel %vm1385, %v1392, 0.0
    %v1403 = vsel %vm1386, %v1392, 0.0
    %v1404 = vsel %vm1387, %v1392, 0.0
    %v1405 = vsel %vm1388, %v1392, 0.0
    %v1406 = vsel %vm1389, %v1392, 0.0
    %v1407 = vsel %vm1390, %v1392, 0.0
    %v1408 = vsel %vm1391, %v1392, 0.0
    %v1409 = vadd.f32 %v1280, %v1393
    %v1410 = vadd.f32 %v1281, %v1394
    %v1411 = vadd.f32 %v1282, %v1395
    %v1412 = vadd.f32 %v1283, %v1396
    %v1413 = vadd.f32 %v1284, %v1397
    %v1414 = vadd.f32 %v1285, %v1398
    %v1415 = vadd.f32 %v1286, %v1399
    %v1416 = vadd.f32 %v1287, %v1400
    %v1417 = vadd.f32 %v1288, %v1401
    %v1418 = vadd.f32 %v1289, %v1402
    %v1419 = vadd.f32 %v1290, %v1403
    %v1420 = vadd.f32 %v1291, %v1404
    %v1421 = vadd.f32 %v1292, %v1405
    %v1422 = vadd.f32 %v1293, %v1406
    %v1423 = vadd.f32 %v1294, %v1407
    %v1424 = vadd.f32 %v1295, %v1408
    %v1425 = vld [vmem:[%s1] sm:$0xff]
    %v1426 = vld [vmem:[%s1 + $0x8] sm:$0xff]
    %v1427 = vld [vmem:[%s1 + $0x10] sm:$0xff]
    %v1428 = vld [vmem:[%s1 + $0x18] sm:$0xff]
    %v1429 = vld [vmem:[%s1 + $0x20] sm:$0xff]
    %v1430 = vld [vmem:[%s1 + $0x28] sm:$0xff]
    %v1431 = vld [vmem:[%s1 + $0x30] sm:$0xff]
    %v1432 = vld [vmem:[%s1 + $0x38] sm:$0xff]
    %v1433 = vld [vmem:[%s1 + $0x40] sm:$0xff]
    %v1434 = vld [vmem:[%s1 + $0x48] sm:$0xff]
    %v1435 = vld [vmem:[%s1 + $0x50] sm:$0xff]
    %v1436 = vld [vmem:[%s1 + $0x58] sm:$0xff]
    %v1437 = vld [vmem:[%s1 + $0x60] sm:$0xff]
    %v1438 = vld [vmem:[%s1 + $0x68] sm:$0xff]
    %v1439 = vld [vmem:[%s1 + $0x70] sm:$0xff]
    %v1440 = vld [vmem:[%s1 + $0x78] sm:$0xff]
    %v1441 = vmul.f32 %v1425, %v1409
    %v1442 = vmul.f32 %v1426, %v1410
    %v1443 = vmul.f32 %v1427, %v1411
    %v1444 = vmul.f32 %v1428, %v1412
    %v1445 = vmul.f32 %v1429, %v1413
    %v1446 = vmul.f32 %v1430, %v1414
    %v1447 = vmul.f32 %v1431, %v1415
    %v1448 = vmul.f32 %v1432, %v1416
    %v1449 = vmul.f32 %v1433, %v1417
    %v1450 = vmul.f32 %v1434, %v1418
    %v1451 = vmul.f32 %v1435, %v1419
    %v1452 = vmul.f32 %v1436, %v1420
    %v1453 = vmul.f32 %v1437, %v1421
    %v1454 = vmul.f32 %v1438, %v1422
    %v1455 = vmul.f32 %v1439, %v1423
    %v1456 = vmul.f32 %v1440, %v1424
    %v1457 = vpack.c.bf16 %v1442, %v1441
    %v1458 = vpack.c.bf16 %v1444, %v1443
    %v1459 = vpack.c.bf16 %v1446, %v1445
    %v1460 = vpack.c.bf16 %v1448, %v1447
    %v1461 = vpack.c.bf16 %v1450, %v1449
    %v1462 = vpack.c.bf16 %v1452, %v1451
    %v1463 = vpack.c.bf16 %v1454, %v1453
    %v1464 = vpack.c.bf16 %v1456, %v1455
    %v1465 = vld [vmem:[#allocation5] sm:$0xff]
    %v1466 = vld [vmem:[#allocation5 + $0x8] sm:$0xff]
    %v1467 = vld [vmem:[#allocation5 + $0x10] sm:$0xff]
    %v1468 = vld [vmem:[#allocation5 + $0x18] sm:$0xff]
    %v1469 = vld [vmem:[#allocation5 + $0x20] sm:$0xff]
    %v1470 = vld [vmem:[#allocation5 + $0x28] sm:$0xff]
    %v1471 = vld [vmem:[#allocation5 + $0x30] sm:$0xff]
    %v1472 = vld [vmem:[#allocation5 + $0x38] sm:$0xff]
    %v1473 = vld [vmem:[#allocation5 + $0x40] sm:$0xff]
    %v1474 = vld [vmem:[#allocation5 + $0x48] sm:$0xff]
    %v1475 = vld [vmem:[#allocation5 + $0x50] sm:$0xff]
    %v1476 = vld [vmem:[#allocation5 + $0x58] sm:$0xff]
    %v1477 = vld [vmem:[#allocation5 + $0x60] sm:$0xff]
    %v1478 = vld [vmem:[#allocation5 + $0x68] sm:$0xff]
    %v1479 = vld [vmem:[#allocation5 + $0x70] sm:$0xff]
    %v1480 = vld [vmem:[#allocation5 + $0x78] sm:$0xff]
    %v1481 = vld [vmem:[#allocation5 + $0x80] sm:$0xff]
    %v1482 = vld [vmem:[#allocation5 + $0x88] sm:$0xff]
    %v1483 = vld [vmem:[#allocation5 + $0x90] sm:$0xff]
    %v1484 = vld [vmem:[#allocation5 + $0x98] sm:$0xff]
    %v1485 = vld [vmem:[#allocation5 + $0xa0] sm:$0xff]
    %v1486 = vld [vmem:[#allocation5 + $0xa8] sm:$0xff]
    %v1487 = vld [vmem:[#allocation5 + $0xb0] sm:$0xff]
    %v1488 = vld [vmem:[#allocation5 + $0xb8] sm:$0xff]
    %v1489 = vld [vmem:[#allocation5 + $0xc0] sm:$0xff]
    %v1490 = vld [vmem:[#allocation5 + $0xc8] sm:$0xff]
    %v1491 = vld [vmem:[#allocation5 + $0xd0] sm:$0xff]
    %v1492 = vld [vmem:[#allocation5 + $0xd8] sm:$0xff]
    %v1493 = vld [vmem:[#allocation5 + $0xe0] sm:$0xff]
    %v1494 = vld [vmem:[#allocation5 + $0xe8] sm:$0xff]
    %v1495 = vld [vmem:[#allocation5 + $0xf0] sm:$0xff]
    %v1496 = vld [vmem:[#allocation5 + $0xf8] sm:$0xff]
    %v1497 = vld [vmem:[%s4] sm:$0xf]
    %v1499 = vperm.slane %v1497, 0
    %v1500 = vperm.slane %v1497, 1
    %v1501 = vperm.slane %v1497, 2
    %v1502 = vperm.slane %v1497, 3
    %v1539 = vunpack.c.l.b16 %v1465
    %v1540 = vunpack.c.h.b16 %v1465
    %v1541 = vunpack.c.l.b16 %v1466
    %v1542 = vunpack.c.h.b16 %v1466
    %v1543 = vunpack.c.l.b16 %v1467
    %v1544 = vunpack.c.h.b16 %v1467
    %v1545 = vunpack.c.l.b16 %v1468
    %v1546 = vunpack.c.h.b16 %v1468
    %v1547 = vunpack.c.l.b16 %v1469
    %v1548 = vunpack.c.h.b16 %v1469
    %v1549 = vunpack.c.l.b16 %v1470
    %v1550 = vunpack.c.h.b16 %v1470
    %v1551 = vunpack.c.l.b16 %v1471
    %v1552 = vunpack.c.h.b16 %v1471
    %v1553 = vunpack.c.l.b16 %v1472
    %v1554 = vunpack.c.h.b16 %v1472
    %v1555 = vunpack.c.l.b16 %v1473
    %v1556 = vunpack.c.h.b16 %v1473
    %v1557 = vunpack.c.l.b16 %v1474
    %v1558 = vunpack.c.h.b16 %v1474
    %v1559 = vunpack.c.l.b16 %v1475
    %v1560 = vunpack.c.h.b16 %v1475
    %v1561 = vunpack.c.l.b16 %v1476
    %v1562 = vunpack.c.h.b16 %v1476
    %v1563 = vunpack.c.l.b16 %v1477
    %v1564 = vunpack.c.h.b16 %v1477
    %v1565 = vunpack.c.l.b16 %v1478
    %v1566 = vunpack.c.h.b16 %v1478
    %v1567 = vunpack.c.l.b16 %v1479
    %v1568 = vunpack.c.h.b16 %v1479
    %v1569 = vunpack.c.l.b16 %v1480
    %v1570 = vunpack.c.h.b16 %v1480
    %v1571 = vunpack.c.l.b16 %v1481
    %v1572 = vunpack.c.h.b16 %v1481
    %v1573 = vunpack.c.l.b16 %v1482
    %v1574 = vunpack.c.h.b16 %v1482
    %v1575 = vunpack.c.l.b16 %v1483
    %v1576 = vunpack.c.h.b16 %v1483
    %v1577 = vunpack.c.l.b16 %v1484
    %v1578 = vunpack.c.h.b16 %v1484
    %v1579 = vunpack.c.l.b16 %v1485
    %v1580 = vunpack.c.h.b16 %v1485
    %v1581 = vunpack.c.l.b16 %v1486
    %v1582 = vunpack.c.h.b16 %v1486
    %v1583 = vunpack.c.l.b16 %v1487
    %v1584 = vunpack.c.h.b16 %v1487
    %v1585 = vunpack.c.l.b16 %v1488
    %v1586 = vunpack.c.h.b16 %v1488
    %v1587 = vunpack.c.l.b16 %v1489
    %v1588 = vunpack.c.h.b16 %v1489
    %v1589 = vunpack.c.l.b16 %v1490
    %v1590 = vunpack.c.h.b16 %v1490
    %v1591 = vunpack.c.l.b16 %v1491
    %v1592 = vunpack.c.h.b16 %v1491
    %v1593 = vunpack.c.l.b16 %v1492
    %v1594 = vunpack.c.h.b16 %v1492
    %v1595 = vunpack.c.l.b16 %v1493
    %v1596 = vunpack.c.h.b16 %v1493
    %v1597 = vunpack.c.l.b16 %v1494
    %v1598 = vunpack.c.h.b16 %v1494
    %v1599 = vunpack.c.l.b16 %v1495
    %v1600 = vunpack.c.h.b16 %v1495
    %v1601 = vunpack.c.l.b16 %v1496
    %v1602 = vunpack.c.h.b16 %v1496
    %v1603 = vpack.c.b16 %v1543, %v1539
    %v1604 = vpack.c.b16 %v1544, %v1540
    %v1605 = vpack.c.b16 %v1545, %v1541
    %v1606 = vpack.c.b16 %v1546, %v1542
    %v1607 = vpack.c.b16 %v1551, %v1547
    %v1608 = vpack.c.b16 %v1552, %v1548
    %v1609 = vpack.c.b16 %v1553, %v1549
    %v1610 = vpack.c.b16 %v1554, %v1550
    %v1611 = vpack.c.b16 %v1559, %v1555
    %v1612 = vpack.c.b16 %v1560, %v1556
    %v1613 = vpack.c.b16 %v1561, %v1557
    %v1614 = vpack.c.b16 %v1562, %v1558
    %v1615 = vpack.c.b16 %v1567, %v1563
    %v1616 = vpack.c.b16 %v1568, %v1564
    %v1617 = vpack.c.b16 %v1569, %v1565
    %v1618 = vpack.c.b16 %v1570, %v1566
    %v1619 = vpack.c.b16 %v1575, %v1571
    %v1620 = vpack.c.b16 %v1576, %v1572
    %v1621 = vpack.c.b16 %v1577, %v1573
    %v1622 = vpack.c.b16 %v1578, %v1574
    %v1623 = vpack.c.b16 %v1583, %v1579
    %v1624 = vpack.c.b16 %v1584, %v1580
    %v1625 = vpack.c.b16 %v1585, %v1581
    %v1626 = vpack.c.b16 %v1586, %v1582
    %v1627 = vpack.c.b16 %v1591, %v1587
    %v1628 = vpack.c.b16 %v1592, %v1588
    %v1629 = vpack.c.b16 %v1593, %v1589
    %v1630 = vpack.c.b16 %v1594, %v1590
    %v1631 = vpack.c.b16 %v1599, %v1595
    %v1632 = vpack.c.b16 %v1600, %v1596
    %v1633 = vpack.c.b16 %v1601, %v1597
    %v1634 = vpack.c.b16 %v1602, %v1598
    %1667 = vmatpush.bf16.msra.mxu0 %v1631
    %1668 = vmatpush.bf16.msra.mxu0 %v1627
    %1669 = vmatpush.bf16.msra.mxu0 %v1623
    %1670 = vmatpush.bf16.msra.mxu0 %v1619
    %1671 = vmatpush.bf16.msra.mxu0 %v1615
    %1672 = vmatpush.bf16.msra.mxu0 %v1611
    %1673 = vmatpush.bf16.msra.mxu0 %v1607
    %1674 = vmatpush.bf16.msra.mxu0 %v1603
    %1675 = vmatmul.bf16.gmra.mxu0 %v1457
    %v1676 = vpop.f32.mrf.mxu0
    %v1677 = vadd.f32 %v1499, %v1676
    %v1678 = vpop.f32.mrf.mxu0
    %v1679 = vadd.f32 %v1499, %v1678
    %1680 = vmatmul.bf16.gmra.mxu0 %v1458
    %v1681 = vpop.f32.mrf.mxu0
    %v1682 = vadd.f32 %v1499, %v1681
    %v1683 = vpop.f32.mrf.mxu0
    %v1684 = vadd.f32 %v1499, %v1683
    %1685 = vmatmul.bf16.gmra.mxu0 %v1459
    %v1686 = vpop.f32.mrf.mxu0
    %v1687 = vadd.f32 %v1499, %v1686
    %v1688 = vpop.f32.mrf.mxu0
    %v1689 = vadd.f32 %v1499, %v1688
    %1690 = vmatmul.bf16.gmra.mxu0 %v1460
    %v1691 = vpop.f32.mrf.mxu0
    %v1692 = vadd.f32 %v1499, %v1691
    %v1693 = vpop.f32.mrf.mxu0
    %v1694 = vadd.f32 %v1499, %v1693
    %1695 = vmatmul.bf16.gmra.mxu0 %v1461
    %v1696 = vpop.f32.mrf.mxu0
    %v1697 = vadd.f32 %v1499, %v1696
    %v1698 = vpop.f32.mrf.mxu0
    %v1699 = vadd.f32 %v1499, %v1698
    %1700 = vmatmul.bf16.gmra.mxu0 %v1462
    %v1701 = vpop.f32.mrf.mxu0
    %v1702 = vadd.f32 %v1499, %v1701
    %v1703 = vpop.f32.mrf.mxu0
    %v1704 = vadd.f32 %v1499, %v1703
    %1705 = vmatmul.bf16.gmra.mxu0 %v1463
    %v1706 = vpop.f32.mrf.mxu0
    %v1707 = vadd.f32 %v1499, %v1706
    %v1708 = vpop.f32.mrf.mxu0
    %v1709 = vadd.f32 %v1499, %v1708
    %1710 = vmatmul.bf16.gmra.mxu0 %v1464
    %v1711 = vpop.f32.mrf.mxu0
    %v1712 = vadd.f32 %v1499, %v1711
    %v1713 = vpop.f32.mrf.mxu0
    %v1714 = vadd.f32 %v1499, %v1713
    %1715 = vdwg.mxu0
    %1716 = vmatpush.bf16.msra.mxu0 %v1632
    %1717 = vmatpush.bf16.msra.mxu0 %v1628
    %1718 = vmatpush.bf16.msra.mxu0 %v1624
    %1719 = vmatpush.bf16.msra.mxu0 %v1620
    %1720 = vmatpush.bf16.msra.mxu0 %v1616
    %1721 = vmatpush.bf16.msra.mxu0 %v1612
    %1722 = vmatpush.bf16.msra.mxu0 %v1608
    %1723 = vmatpush.bf16.msra.mxu0 %v1604
    %1724 = vmatmul.bf16.gmra.mxu0 %v1457
    %v1725 = vpop.f32.mrf.mxu0
    %v1726 = vadd.f32 %v1500, %v1725
    %v1727 = vpop.f32.mrf.mxu0
    %v1728 = vadd.f32 %v1500, %v1727
    %1729 = vmatmul.bf16.gmra.mxu0 %v1458
    %v1730 = vpop.f32.mrf.mxu0
    %v1731 = vadd.f32 %v1500, %v1730
    %v1732 = vpop.f32.mrf.mxu0
    %v1733 = vadd.f32 %v1500, %v1732
    %1734 = vmatmul.bf16.gmra.mxu0 %v1459
    %v1735 = vpop.f32.mrf.mxu0
    %v1736 = vadd.f32 %v1500, %v1735
    %v1737 = vpop.f32.mrf.mxu0
    %v1738 = vadd.f32 %v1500, %v1737
    %1739 = vmatmul.bf16.gmra.mxu0 %v1460
    %v1740 = vpop.f32.mrf.mxu0
    %v1741 = vadd.f32 %v1500, %v1740
    %v1742 = vpop.f32.mrf.mxu0
    %v1743 = vadd.f32 %v1500, %v1742
    %1744 = vmatmul.bf16.gmra.mxu0 %v1461
    %v1745 = vpop.f32.mrf.mxu0
    %v1746 = vadd.f32 %v1500, %v1745
    %v1747 = vpop.f32.mrf.mxu0
    %v1748 = vadd.f32 %v1500, %v1747
    %1749 = vmatmul.bf16.gmra.mxu0 %v1462
    %v1750 = vpop.f32.mrf.mxu0
    %v1751 = vadd.f32 %v1500, %v1750
    %v1752 = vpop.f32.mrf.mxu0
    %v1753 = vadd.f32 %v1500, %v1752
    %1754 = vmatmul.bf16.gmra.mxu0 %v1463
    %v1755 = vpop.f32.mrf.mxu0
    %v1756 = vadd.f32 %v1500, %v1755
    %v1757 = vpop.f32.mrf.mxu0
    %v1758 = vadd.f32 %v1500, %v1757
    %1759 = vmatmul.bf16.gmra.mxu0 %v1464
    %v1760 = vpop.f32.mrf.mxu0
    %v1761 = vadd.f32 %v1500, %v1760
    %v1762 = vpop.f32.mrf.mxu0
    %v1763 = vadd.f32 %v1500, %v1762
    %1764 = vdwg.mxu0
    %1765 = vmatpush.bf16.msra.mxu0 %v1633
    %1766 = vmatpush.bf16.msra.mxu0 %v1629
    %1767 = vmatpush.bf16.msra.mxu0 %v1625
    %1768 = vmatpush.bf16.msra.mxu0 %v1621
    %1769 = vmatpush.bf16.msra.mxu0 %v1617
    %1770 = vmatpush.bf16.msra.mxu0 %v1613
    %1771 = vmatpush.bf16.msra.mxu0 %v1609
    %1772 = vmatpush.bf16.msra.mxu0 %v1605
    %1773 = vmatmul.bf16.gmra.mxu0 %v1457
    %v1774 = vpop.f32.mrf.mxu0
    %v1775 = vadd.f32 %v1501, %v1774
    %v1776 = vpop.f32.mrf.mxu0
    %v1777 = vadd.f32 %v1501, %v1776
    %1778 = vmatmul.bf16.gmra.mxu0 %v1458
    %v1779 = vpop.f32.mrf.mxu0
    %v1780 = vadd.f32 %v1501, %v1779
    %v1781 = vpop.f32.mrf.mxu0
    %v1782 = vadd.f32 %v1501, %v1781
    %1783 = vmatmul.bf16.gmra.mxu0 %v1459
    %v1784 = vpop.f32.mrf.mxu0
    %v1785 = vadd.f32 %v1501, %v1784
    %v1786 = vpop.f32.mrf.mxu0
    %v1787 = vadd.f32 %v1501, %v1786
    %1788 = vmatmul.bf16.gmra.mxu0 %v1460
    %v1789 = vpop.f32.mrf.mxu0
    %v1790 = vadd.f32 %v1501, %v1789
    %v1791 = vpop.f32.mrf.mxu0
    %v1792 = vadd.f32 %v1501, %v1791
    %1793 = vmatmul.bf16.gmra.mxu0 %v1461
    %v1794 = vpop.f32.mrf.mxu0
    %v1795 = vadd.f32 %v1501, %v1794
    %v1796 = vpop.f32.mrf.mxu0
    %v1797 = vadd.f32 %v1501, %v1796
    %1798 = vmatmul.bf16.gmra.mxu0 %v1462
    %v1799 = vpop.f32.mrf.mxu0
    %v1800 = vadd.f32 %v1501, %v1799
    %v1801 = vpop.f32.mrf.mxu0
    %v1802 = vadd.f32 %v1501, %v1801
    %1803 = vmatmul.bf16.gmra.mxu0 %v1463
    %v1804 = vpop.f32.mrf.mxu0
    %v1805 = vadd.f32 %v1501, %v1804
    %v1806 = vpop.f32.mrf.mxu0
    %v1807 = vadd.f32 %v1501, %v1806
    %1808 = vmatmul.bf16.gmra.mxu0 %v1464
    %v1809 = vpop.f32.mrf.mxu0
    %v1810 = vadd.f32 %v1501, %v1809
    %v1811 = vpop.f32.mrf.mxu0
    %v1812 = vadd.f32 %v1501, %v1811
    %1813 = vdwg.mxu0
    %1814 = vmatpush.bf16.msra.mxu0 %v1634
    %1815 = vmatpush.bf16.msra.mxu0 %v1630
    %1816 = vmatpush.bf16.msra.mxu0 %v1626
    %1817 = vmatpush.bf16.msra.mxu0 %v1622
    %1818 = vmatpush.bf16.msra.mxu0 %v1618
    %1819 = vmatpush.bf16.msra.mxu0 %v1614
    %1820 = vmatpush.bf16.msra.mxu0 %v1610
    %1821 = vmatpush.bf16.msra.mxu0 %v1606
    %1822 = vmatmul.bf16.gmra.mxu0 %v1457
    %v1823 = vpop.f32.mrf.mxu0
    %v1824 = vadd.f32 %v1502, %v1823
    %v1825 = vpop.f32.mrf.mxu0
    %v1826 = vadd.f32 %v1502, %v1825
    %1827 = vmatmul.bf16.gmra.mxu0 %v1458
    %v1828 = vpop.f32.mrf.mxu0
    %v1829 = vadd.f32 %v1502, %v1828
    %v1830 = vpop.f32.mrf.mxu0
    %v1831 = vadd.f32 %v1502, %v1830
    %1832 = vmatmul.bf16.gmra.mxu0 %v1459
    %v1833 = vpop.f32.mrf.mxu0
    %v1834 = vadd.f32 %v1502, %v1833
    %v1835 = vpop.f32.mrf.mxu0
    %v1836 = vadd.f32 %v1502, %v1835
    %1837 = vmatmul.bf16.gmra.mxu0 %v1460
    %v1838 = vpop.f32.mrf.mxu0
    %v1839 = vadd.f32 %v1502, %v1838
    %v1840 = vpop.f32.mrf.mxu0
    %v1841 = vadd.f32 %v1502, %v1840
    %1842 = vmatmul.bf16.gmra.mxu0 %v1461
    %v1843 = vpop.f32.mrf.mxu0
    %v1844 = vadd.f32 %v1502, %v1843
    %v1845 = vpop.f32.mrf.mxu0
    %v1846 = vadd.f32 %v1502, %v1845
    %1847 = vmatmul.bf16.gmra.mxu0 %v1462
    %v1848 = vpop.f32.mrf.mxu0
    %v1849 = vadd.f32 %v1502, %v1848
    %v1850 = vpop.f32.mrf.mxu0
    %v1851 = vadd.f32 %v1502, %v1850
    %1852 = vmatmul.bf16.gmra.mxu0 %v1463
    %v1853 = vpop.f32.mrf.mxu0
    %v1854 = vadd.f32 %v1502, %v1853
    %v1855 = vpop.f32.mrf.mxu0
    %v1856 = vadd.f32 %v1502, %v1855
    %1857 = vmatmul.bf16.gmra.mxu0 %v1464
    %v1858 = vpop.f32.mrf.mxu0
    %v1859 = vadd.f32 %v1502, %v1858
    %v1860 = vpop.f32.mrf.mxu0
    %v1861 = vadd.f32 %v1502, %v1860
    %1862 = vdwg.mxu0
    %vm1863 = vcmp.gt.f32.partialorder %v1677, 0.0
    %vm1864 = vcmp.gt.f32.partialorder %v1726, 0.0
    %vm1865 = vcmp.gt.f32.partialorder %v1775, 0.0
    %vm1866 = vcmp.gt.f32.partialorder %v1824, 0.0
    %vm1867 = vcmp.gt.f32.partialorder %v1679, 0.0
    %vm1868 = vcmp.gt.f32.partialorder %v1728, 0.0
    %vm1869 = vcmp.gt.f32.partialorder %v1777, 0.0
    %vm1870 = vcmp.gt.f32.partialorder %v1826, 0.0
    %vm1871 = vcmp.gt.f32.partialorder %v1682, 0.0
    %vm1872 = vcmp.gt.f32.partialorder %v1731, 0.0
    %vm1873 = vcmp.gt.f32.partialorder %v1780, 0.0
    %vm1874 = vcmp.gt.f32.partialorder %v1829, 0.0
    %vm1875 = vcmp.gt.f32.partialorder %v1684, 0.0
    %vm1876 = vcmp.gt.f32.partialorder %v1733, 0.0
    %vm1877 = vcmp.gt.f32.partialorder %v1782, 0.0
    %vm1878 = vcmp.gt.f32.partialorder %v1831, 0.0
    %vm1879 = vcmp.gt.f32.partialorder %v1687, 0.0
    %vm1880 = vcmp.gt.f32.partialorder %v1736, 0.0
    %vm1881 = vcmp.gt.f32.partialorder %v1785, 0.0
    %vm1882 = vcmp.gt.f32.partialorder %v1834, 0.0
    %vm1883 = vcmp.gt.f32.partialorder %v1689, 0.0
    %vm1884 = vcmp.gt.f32.partialorder %v1738, 0.0
    %vm1885 = vcmp.gt.f32.partialorder %v1787, 0.0
    %vm1886 = vcmp.gt.f32.partialorder %v1836, 0.0
    %vm1887 = vcmp.gt.f32.partialorder %v1692, 0.0
    %vm1888 = vcmp.gt.f32.partialorder %v1741, 0.0
    %vm1889 = vcmp.gt.f32.partialorder %v1790, 0.0
    %vm1890 = vcmp.gt.f32.partialorder %v1839, 0.0
    %vm1891 = vcmp.gt.f32.partialorder %v1694, 0.0
    %vm1892 = vcmp.gt.f32.partialorder %v1743, 0.0
    %vm1893 = vcmp.gt.f32.partialorder %v1792, 0.0
    %vm1894 = vcmp.gt.f32.partialorder %v1841, 0.0
    %vm1895 = vcmp.gt.f32.partialorder %v1697, 0.0
    %vm1896 = vcmp.gt.f32.partialorder %v1746, 0.0
    %vm1897 = vcmp.gt.f32.partialorder %v1795, 0.0
    %vm1898 = vcmp.gt.f32.partialorder %v1844, 0.0
    %vm1899 = vcmp.gt.f32.partialorder %v1699, 0.0
    %vm1900 = vcmp.gt.f32.partialorder %v1748, 0.0
    %vm1901 = vcmp.gt.f32.partialorder %v1797, 0.0
    %vm1902 = vcmp.gt.f32.partialorder %v1846, 0.0
    %vm1903 = vcmp.gt.f32.partialorder %v1702, 0.0
    %vm1904 = vcmp.gt.f32.partialorder %v1751, 0.0
    %vm1905 = vcmp.gt.f32.partialorder %v1800, 0.0
    %vm1906 = vcmp.gt.f32.partialorder %v1849, 0.0
    %vm1907 = vcmp.gt.f32.partialorder %v1704, 0.0
    %vm1908 = vcmp.gt.f32.partialorder %v1753, 0.0
    %vm1909 = vcmp.gt.f32.partialorder %v1802, 0.0
    %vm1910 = vcmp.gt.f32.partialorder %v1851, 0.0
    %vm1911 = vcmp.gt.f32.partialorder %v1707, 0.0
    %vm1912 = vcmp.gt.f32.partialorder %v1756, 0.0
    %vm1913 = vcmp.gt.f32.partialorder %v1805, 0.0
    %vm1914 = vcmp.gt.f32.partialorder %v1854, 0.0
    %vm1915 = vcmp.gt.f32.partialorder %v1709, 0.0
    %vm1916 = vcmp.gt.f32.partialorder %v1758, 0.0
    %vm1917 = vcmp.gt.f32.partialorder %v1807, 0.0
    %vm1918 = vcmp.gt.f32.partialorder %v1856, 0.0
    %vm1919 = vcmp.gt.f32.partialorder %v1712, 0.0
    %vm1920 = vcmp.gt.f32.partialorder %v1761, 0.0
    %vm1921 = vcmp.gt.f32.partialorder %v1810, 0.0
    %vm1922 = vcmp.gt.f32.partialorder %v1859, 0.0
    %vm1923 = vcmp.gt.f32.partialorder %v1714, 0.0
    %vm1924 = vcmp.gt.f32.partialorder %v1763, 0.0
    %vm1925 = vcmp.gt.f32.partialorder %v1812, 0.0
    %vm1926 = vcmp.gt.f32.partialorder %v1861, 0.0
    %v1927 = vmul.f32 %v1677, 0.2
    %v1928 = vmul.f32 %v1726, 0.2
    %v1929 = vmul.f32 %v1775, 0.2
    %v1930 = vmul.f32 %v1824, 0.2
    %v1931 = vmul.f32 %v1679, 0.2
    %v1932 = vmul.f32 %v1728, 0.2
    %v1933 = vmul.f32 %v1777, 0.2
    %v1934 = vmul.f32 %v1826, 0.2
    %v1935 = vmul.f32 %v1682, 0.2
    %v1936 = vmul.f32 %v1731, 0.2
    %v1937 = vmul.f32 %v1780, 0.2
    %v1938 = vmul.f32 %v1829, 0.2
    %v1939 = vmul.f32 %v1684, 0.2
    %v1940 = vmul.f32 %v1733, 0.2
    %v1941 = vmul.f32 %v1782, 0.2
    %v1942 = vmul.f32 %v1831, 0.2
    %v1943 = vmul.f32 %v1687, 0.2
    %v1944 = vmul.f32 %v1736, 0.2
    %v1945 = vmul.f32 %v1785, 0.2
    %v1946 = vmul.f32 %v1834, 0.2
    %v1947 = vmul.f32 %v1689, 0.2
    %v1948 = vmul.f32 %v1738, 0.2
    %v1949 = vmul.f32 %v1787, 0.2
    %v1950 = vmul.f32 %v1836, 0.2
    %v1951 = vmul.f32 %v1692, 0.2
    %v1952 = vmul.f32 %v1741, 0.2
    %v1953 = vmul.f32 %v1790, 0.2
    %v1954 = vmul.f32 %v1839, 0.2
    %v1955 = vmul.f32 %v1694, 0.2
    %v1956 = vmul.f32 %v1743, 0.2
    %v1957 = vmul.f32 %v1792, 0.2
    %v1958 = vmul.f32 %v1841, 0.2
    %v1959 = vmul.f32 %v1697, 0.2
    %v1960 = vmul.f32 %v1746, 0.2
    %v1961 = vmul.f32 %v1795, 0.2
    %v1962 = vmul.f32 %v1844, 0.2
    %v1963 = vmul.f32 %v1699, 0.2
    %v1964 = vmul.f32 %v1748, 0.2
    %v1965 = vmul.f32 %v1797, 0.2
    %v1966 = vmul.f32 %v1846, 0.2
    %v1967 = vmul.f32 %v1702, 0.2
    %v1968 = vmul.f32 %v1751, 0.2
    %v1969 = vmul.f32 %v1800, 0.2
    %v1970 = vmul.f32 %v1849, 0.2
    %v1971 = vmul.f32 %v1704, 0.2
    %v1972 = vmul.f32 %v1753, 0.2
    %v1973 = vmul.f32 %v1802, 0.2
    %v1974 = vmul.f32 %v1851, 0.2
    %v1975 = vmul.f32 %v1707, 0.2
    %v1976 = vmul.f32 %v1756, 0.2
    %v1977 = vmul.f32 %v1805, 0.2
    %v1978 = vmul.f32 %v1854, 0.2
    %v1979 = vmul.f32 %v1709, 0.2
    %v1980 = vmul.f32 %v1758, 0.2
    %v1981 = vmul.f32 %v1807, 0.2
    %v1982 = vmul.f32 %v1856, 0.2
    %v1983 = vmul.f32 %v1712, 0.2
    %v1984 = vmul.f32 %v1761, 0.2
    %v1985 = vmul.f32 %v1810, 0.2
    %v1986 = vmul.f32 %v1859, 0.2
    %v1987 = vmul.f32 %v1714, 0.2
    %v1988 = vmul.f32 %v1763, 0.2
    %v1989 = vmul.f32 %v1812, 0.2
    %v1990 = vmul.f32 %v1861, 0.2
    %v1991 = vsel %vm1863, %v1677, %v1927
    %v1992 = vsel %vm1864, %v1726, %v1928
    %v1993 = vsel %vm1865, %v1775, %v1929
    %v1994 = vsel %vm1866, %v1824, %v1930
    %v1995 = vsel %vm1867, %v1679, %v1931
    %v1996 = vsel %vm1868, %v1728, %v1932
    %v1997 = vsel %vm1869, %v1777, %v1933
    %v1998 = vsel %vm1870, %v1826, %v1934
    %v1999 = vsel %vm1871, %v1682, %v1935
    %v2000 = vsel %vm1872, %v1731, %v1936
    %v2001 = vsel %vm1873, %v1780, %v1937
    %v2002 = vsel %vm1874, %v1829, %v1938
    %v2003 = vsel %vm1875, %v1684, %v1939
    %v2004 = vsel %vm1876, %v1733, %v1940
    %v2005 = vsel %vm1877, %v1782, %v1941
    %v2006 = vsel %vm1878, %v1831, %v1942
    %v2007 = vsel %vm1879, %v1687, %v1943
    %v2008 = vsel %vm1880, %v1736, %v1944
    %v2009 = vsel %vm1881, %v1785, %v1945
    %v2010 = vsel %vm1882, %v1834, %v1946
    %v2011 = vsel %vm1883, %v1689, %v1947
    %v2012 = vsel %vm1884, %v1738, %v1948
    %v2013 = vsel %vm1885, %v1787, %v1949
    %v2014 = vsel %vm1886, %v1836, %v1950
    %v2015 = vsel %vm1887, %v1692, %v1951
    %v2016 = vsel %vm1888, %v1741, %v1952
    %v2017 = vsel %vm1889, %v1790, %v1953
    %v2018 = vsel %vm1890, %v1839, %v1954
    %v2019 = vsel %vm1891, %v1694, %v1955
    %v2020 = vsel %vm1892, %v1743, %v1956
    %v2021 = vsel %vm1893, %v1792, %v1957
    %v2022 = vsel %vm1894, %v1841, %v1958
    %v2023 = vsel %vm1895, %v1697, %v1959
    %v2024 = vsel %vm1896, %v1746, %v1960
    %v2025 = vsel %vm1897, %v1795, %v1961
    %v2026 = vsel %vm1898, %v1844, %v1962
    %v2027 = vsel %vm1899, %v1699, %v1963
    %v2028 = vsel %vm1900, %v1748, %v1964
    %v2029 = vsel %vm1901, %v1797, %v1965
    %v2030 = vsel %vm1902, %v1846, %v1966
    %v2031 = vsel %vm1903, %v1702, %v1967
    %v2032 = vsel %vm1904, %v1751, %v1968
    %v2033 = vsel %vm1905, %v1800, %v1969
    %v2034 = vsel %vm1906, %v1849, %v1970
    %v2035 = vsel %vm1907, %v1704, %v1971
    %v2036 = vsel %vm1908, %v1753, %v1972
    %v2037 = vsel %vm1909, %v1802, %v1973
    %v2038 = vsel %vm1910, %v1851, %v1974
    %v2039 = vsel %vm1911, %v1707, %v1975
    %v2040 = vsel %vm1912, %v1756, %v1976
    %v2041 = vsel %vm1913, %v1805, %v1977
    %v2042 = vsel %vm1914, %v1854, %v1978
    %v2043 = vsel %vm1915, %v1709, %v1979
    %v2044 = vsel %vm1916, %v1758, %v1980
    %v2045 = vsel %vm1917, %v1807, %v1981
    %v2046 = vsel %vm1918, %v1856, %v1982
    %v2047 = vsel %vm1919, %v1712, %v1983
    %v2048 = vsel %vm1920, %v1761, %v1984
    %v2049 = vsel %vm1921, %v1810, %v1985
    %v2050 = vsel %vm1922, %v1859, %v1986
    %v2051 = vsel %vm1923, %v1714, %v1987
    %v2052 = vsel %vm1924, %v1763, %v1988
    %v2053 = vsel %vm1925, %v1812, %v1989
    %v2054 = vsel %vm1926, %v1861, %v1990
    %v2055 = vpack.c.bf16 %v1995, %v1991
    %v2056 = vpack.c.bf16 %v1996, %v1992
    %v2057 = vpack.c.bf16 %v1997, %v1993
    %v2058 = vpack.c.bf16 %v1998, %v1994
    %v2059 = vpack.c.bf16 %v2003, %v1999
    %v2060 = vpack.c.bf16 %v2004, %v2000
    %v2061 = vpack.c.bf16 %v2005, %v2001
    %v2062 = vpack.c.bf16 %v2006, %v2002
    %v2063 = vpack.c.bf16 %v2011, %v2007
    %v2064 = vpack.c.bf16 %v2012, %v2008
    %v2065 = vpack.c.bf16 %v2013, %v2009
    %v2066 = vpack.c.bf16 %v2014, %v2010
    %v2067 = vpack.c.bf16 %v2019, %v2015
    %v2068 = vpack.c.bf16 %v2020, %v2016
    %v2069 = vpack.c.bf16 %v2021, %v2017
    %v2070 = vpack.c.bf16 %v2022, %v2018
    %v2071 = vpack.c.bf16 %v2027, %v2023
    %v2072 = vpack.c.bf16 %v2028, %v2024
    %v2073 = vpack.c.bf16 %v2029, %v2025
    %v2074 = vpack.c.bf16 %v2030, %v2026
    %v2075 = vpack.c.bf16 %v2035, %v2031
    %v2076 = vpack.c.bf16 %v2036, %v2032
    %v2077 = vpack.c.bf16 %v2037, %v2033
    %v2078 = vpack.c.bf16 %v2038, %v2034
    %v2079 = vpack.c.bf16 %v2043, %v2039
    %v2080 = vpack.c.bf16 %v2044, %v2040
    %v2081 = vpack.c.bf16 %v2045, %v2041
    %v2082 = vpack.c.bf16 %v2046, %v2042
    %v2083 = vpack.c.bf16 %v2051, %v2047
    %v2084 = vpack.c.bf16 %v2052, %v2048
    %v2085 = vpack.c.bf16 %v2053, %v2049
    %v2086 = vpack.c.bf16 %v2054, %v2050
    %v2087 = vld [vmem:[#allocation7] sm:$0xff]
    %v2088 = vld [vmem:[#allocation7 + $0x8] sm:$0xff]
    %v2089 = vld [vmem:[#allocation7 + $0x10] sm:$0xff]
    %v2090 = vld [vmem:[#allocation7 + $0x18] sm:$0xff]
    %v2091 = vld [vmem:[#allocation7 + $0x20] sm:$0xff]
    %v2092 = vld [vmem:[#allocation7 + $0x28] sm:$0xff]
    %v2093 = vld [vmem:[#allocation7 + $0x30] sm:$0xff]
    %v2094 = vld [vmem:[#allocation7 + $0x38] sm:$0xff]
    %v2095 = vld [vmem:[#allocation7 + $0x40] sm:$0xff]
    %v2096 = vld [vmem:[#allocation7 + $0x48] sm:$0xff]
    %v2097 = vld [vmem:[#allocation7 + $0x50] sm:$0xff]
    %v2098 = vld [vmem:[#allocation7 + $0x58] sm:$0xff]
    %v2099 = vld [vmem:[#allocation7 + $0x60] sm:$0xff]
    %v2100 = vld [vmem:[#allocation7 + $0x68] sm:$0xff]
    %v2101 = vld [vmem:[#allocation7 + $0x70] sm:$0xff]
    %v2102 = vld [vmem:[#allocation7 + $0x78] sm:$0xff]
    %v2103 = vld [vmem:[#allocation7 + $0x80] sm:$0xff]
    %v2104 = vld [vmem:[#allocation7 + $0x88] sm:$0xff]
    %v2105 = vld [vmem:[#allocation7 + $0x90] sm:$0xff]
    %v2106 = vld [vmem:[#allocation7 + $0x98] sm:$0xff]
    %v2107 = vld [vmem:[#allocation7 + $0xa0] sm:$0xff]
    %v2108 = vld [vmem:[#allocation7 + $0xa8] sm:$0xff]
    %v2109 = vld [vmem:[#allocation7 + $0xb0] sm:$0xff]
    %v2110 = vld [vmem:[#allocation7 + $0xb8] sm:$0xff]
    %v2111 = vld [vmem:[#allocation7 + $0xc0] sm:$0xff]
    %v2112 = vld [vmem:[#allocation7 + $0xc8] sm:$0xff]
    %v2113 = vld [vmem:[#allocation7 + $0xd0] sm:$0xff]
    %v2114 = vld [vmem:[#allocation7 + $0xd8] sm:$0xff]
    %v2115 = vld [vmem:[#allocation7 + $0xe0] sm:$0xff]
    %v2116 = vld [vmem:[#allocation7 + $0xe8] sm:$0xff]
    %v2117 = vld [vmem:[#allocation7 + $0xf0] sm:$0xff]
    %v2118 = vld [vmem:[#allocation7 + $0xf8] sm:$0xff]
    %v2119 = vld [vmem:[#allocation7 + $0x100] sm:$0xff]
    %v2120 = vld [vmem:[#allocation7 + $0x108] sm:$0xff]
    %v2121 = vld [vmem:[#allocation7 + $0x110] sm:$0xff]
    %v2122 = vld [vmem:[#allocation7 + $0x118] sm:$0xff]
    %v2123 = vld [vmem:[#allocation7 + $0x120] sm:$0xff]
    %v2124 = vld [vmem:[#allocation7 + $0x128] sm:$0xff]
    %v2125 = vld [vmem:[#allocation7 + $0x130] sm:$0xff]
    %v2126 = vld [vmem:[#allocation7 + $0x138] sm:$0xff]
    %v2127 = vld [vmem:[#allocation7 + $0x140] sm:$0xff]
    %v2128 = vld [vmem:[#allocation7 + $0x148] sm:$0xff]
    %v2129 = vld [vmem:[#allocation7 + $0x150] sm:$0xff]
    %v2130 = vld [vmem:[#allocation7 + $0x158] sm:$0xff]
    %v2131 = vld [vmem:[#allocation7 + $0x160] sm:$0xff]
    %v2132 = vld [vmem:[#allocation7 + $0x168] sm:$0xff]
    %v2133 = vld [vmem:[#allocation7 + $0x170] sm:$0xff]
    %v2134 = vld [vmem:[#allocation7 + $0x178] sm:$0xff]
    %v2135 = vld [vmem:[#allocation7 + $0x180] sm:$0xff]
    %v2136 = vld [vmem:[#allocation7 + $0x188] sm:$0xff]
    %v2137 = vld [vmem:[#allocation7 + $0x190] sm:$0xff]
    %v2138 = vld [vmem:[#allocation7 + $0x198] sm:$0xff]
    %v2139 = vld [vmem:[#allocation7 + $0x1a0] sm:$0xff]
    %v2140 = vld [vmem:[#allocation7 + $0x1a8] sm:$0xff]
    %v2141 = vld [vmem:[#allocation7 + $0x1b0] sm:$0xff]
    %v2142 = vld [vmem:[#allocation7 + $0x1b8] sm:$0xff]
    %v2143 = vld [vmem:[#allocation7 + $0x1c0] sm:$0xff]
    %v2144 = vld [vmem:[#allocation7 + $0x1c8] sm:$0xff]
    %v2145 = vld [vmem:[#allocation7 + $0x1d0] sm:$0xff]
    %v2146 = vld [vmem:[#allocation7 + $0x1d8] sm:$0xff]
    %v2147 = vld [vmem:[#allocation7 + $0x1e0] sm:$0xff]
    %v2148 = vld [vmem:[#allocation7 + $0x1e8] sm:$0xff]
    %v2149 = vld [vmem:[#allocation7 + $0x1f0] sm:$0xff]
    %v2150 = vld [vmem:[#allocation7 + $0x1f8] sm:$0xff]
    %v2151 = vld [vmem:[%s6] sm:$0x3]
    %v2153 = vperm.slane %v2151, 0
    %v2154 = vperm.slane %v2151, 1
    %v2221 = vunpack.c.l.b16 %v2087
    %v2222 = vunpack.c.h.b16 %v2087
    %v2223 = vunpack.c.l.b16 %v2088
    %v2224 = vunpack.c.h.b16 %v2088
    %v2225 = vunpack.c.l.b16 %v2089
    %v2226 = vunpack.c.h.b16 %v2089
    %v2227 = vunpack.c.l.b16 %v2090
    %v2228 = vunpack.c.h.b16 %v2090
    %v2229 = vunpack.c.l.b16 %v2091
    %v2230 = vunpack.c.h.b16 %v2091
    %v2231 = vunpack.c.l.b16 %v2092
    %v2232 = vunpack.c.h.b16 %v2092
    %v2233 = vunpack.c.l.b16 %v2093
    %v2234 = vunpack.c.h.b16 %v2093
    %v2235 = vunpack.c.l.b16 %v2094
    %v2236 = vunpack.c.h.b16 %v2094
    %v2237 = vunpack.c.l.b16 %v2095
    %v2238 = vunpack.c.h.b16 %v2095
    %v2239 = vunpack.c.l.b16 %v2096
    %v2240 = vunpack.c.h.b16 %v2096
    %v2241 = vunpack.c.l.b16 %v2097
    %v2242 = vunpack.c.h.b16 %v2097
    %v2243 = vunpack.c.l.b16 %v2098
    %v2244 = vunpack.c.h.b16 %v2098
    %v2245 = vunpack.c.l.b16 %v2099
    %v2246 = vunpack.c.h.b16 %v2099
    %v2247 = vunpack.c.l.b16 %v2100
    %v2248 = vunpack.c.h.b16 %v2100
    %v2249 = vunpack.c.l.b16 %v2101
    %v2250 = vunpack.c.h.b16 %v2101
    %v2251 = vunpack.c.l.b16 %v2102
    %v2252 = vunpack.c.h.b16 %v2102
    %v2253 = vunpack.c.l.b16 %v2103
    %v2254 = vunpack.c.h.b16 %v2103
    %v2255 = vunpack.c.l.b16 %v2104
    %v2256 = vunpack.c.h.b16 %v2104
    %v2257 = vunpack.c.l.b16 %v2105
    %v2258 = vunpack.c.h.b16 %v2105
    %v2259 = vunpack.c.l.b16 %v2106
    %v2260 = vunpack.c.h.b16 %v2106
    %v2261 = vunpack.c.l.b16 %v2107
    %v2262 = vunpack.c.h.b16 %v2107
    %v2263 = vunpack.c.l.b16 %v2108
    %v2264 = vunpack.c.h.b16 %v2108
    %v2265 = vunpack.c.l.b16 %v2109
    %v2266 = vunpack.c.h.b16 %v2109
    %v2267 = vunpack.c.l.b16 %v2110
    %v2268 = vunpack.c.h.b16 %v2110
    %v2269 = vunpack.c.l.b16 %v2111
    %v2270 = vunpack.c.h.b16 %v2111
    %v2271 = vunpack.c.l.b16 %v2112
    %v2272 = vunpack.c.h.b16 %v2112
    %v2273 = vunpack.c.l.b16 %v2113
    %v2274 = vunpack.c.h.b16 %v2113
    %v2275 = vunpack.c.l.b16 %v2114
    %v2276 = vunpack.c.h.b16 %v2114
    %v2277 = vunpack.c.l.b16 %v2115
    %v2278 = vunpack.c.h.b16 %v2115
    %v2279 = vunpack.c.l.b16 %v2116
    %v2280 = vunpack.c.h.b16 %v2116
    %v2281 = vunpack.c.l.b16 %v2117
    %v2282 = vunpack.c.h.b16 %v2117
    %v2283 = vunpack.c.l.b16 %v2118
    %v2284 = vunpack.c.h.b16 %v2118
    %v2285 = vunpack.c.l.b16 %v2119
    %v2286 = vunpack.c.h.b16 %v2119
    %v2287 = vunpack.c.l.b16 %v2120
    %v2288 = vunpack.c.h.b16 %v2120
    %v2289 = vunpack.c.l.b16 %v2121
    %v2290 = vunpack.c.h.b16 %v2121
    %v2291 = vunpack.c.l.b16 %v2122
    %v2292 = vunpack.c.h.b16 %v2122
    %v2293 = vunpack.c.l.b16 %v2123
    %v2294 = vunpack.c.h.b16 %v2123
    %v2295 = vunpack.c.l.b16 %v2124
    %v2296 = vunpack.c.h.b16 %v2124
    %v2297 = vunpack.c.l.b16 %v2125
    %v2298 = vunpack.c.h.b16 %v2125
    %v2299 = vunpack.c.l.b16 %v2126
    %v2300 = vunpack.c.h.b16 %v2126
    %v2301 = vunpack.c.l.b16 %v2127
    %v2302 = vunpack.c.h.b16 %v2127
    %v2303 = vunpack.c.l.b16 %v2128
    %v2304 = vunpack.c.h.b16 %v2128
    %v2305 = vunpack.c.l.b16 %v2129
    %v2306 = vunpack.c.h.b16 %v2129
    %v2307 = vunpack.c.l.b16 %v2130
    %v2308 = vunpack.c.h.b16 %v2130
    %v2309 = vunpack.c.l.b16 %v2131
    %v2310 = vunpack.c.h.b16 %v2131
    %v2311 = vunpack.c.l.b16 %v2132
    %v2312 = vunpack.c.h.b16 %v2132
    %v2313 = vunpack.c.l.b16 %v2133
    %v2314 = vunpack.c.h.b16 %v2133
    %v2315 = vunpack.c.l.b16 %v2134
    %v2316 = vunpack.c.h.b16 %v2134
    %v2317 = vunpack.c.l.b16 %v2135
    %v2318 = vunpack.c.h.b16 %v2135
    %v2319 = vunpack.c.l.b16 %v2136
    %v2320 = vunpack.c.h.b16 %v2136
    %v2321 = vunpack.c.l.b16 %v2137
    %v2322 = vunpack.c.h.b16 %v2137
    %v2323 = vunpack.c.l.b16 %v2138
    %v2324 = vunpack.c.h.b16 %v2138
    %v2325 = vunpack.c.l.b16 %v2139
    %v2326 = vunpack.c.h.b16 %v2139
    %v2327 = vunpack.c.l.b16 %v2140
    %v2328 = vunpack.c.h.b16 %v2140
    %v2329 = vunpack.c.l.b16 %v2141
    %v2330 = vunpack.c.h.b16 %v2141
    %v2331 = vunpack.c.l.b16 %v2142
    %v2332 = vunpack.c.h.b16 %v2142
    %v2333 = vunpack.c.l.b16 %v2143
    %v2334 = vunpack.c.h.b16 %v2143
    %v2335 = vunpack.c.l.b16 %v2144
    %v2336 = vunpack.c.h.b16 %v2144
    %v2337 = vunpack.c.l.b16 %v2145
    %v2338 = vunpack.c.h.b16 %v2145
    %v2339 = vunpack.c.l.b16 %v2146
    %v2340 = vunpack.c.h.b16 %v2146
    %v2341 = vunpack.c.l.b16 %v2147
    %v2342 = vunpack.c.h.b16 %v2147
    %v2343 = vunpack.c.l.b16 %v2148
    %v2344 = vunpack.c.h.b16 %v2148
    %v2345 = vunpack.c.l.b16 %v2149
    %v2346 = vunpack.c.h.b16 %v2149
    %v2347 = vunpack.c.l.b16 %v2150
    %v2348 = vunpack.c.h.b16 %v2150
    %v2349 = vpack.c.b16 %v2223, %v2221
    %v2350 = vpack.c.b16 %v2224, %v2222
    %v2351 = vpack.c.b16 %v2227, %v2225
    %v2352 = vpack.c.b16 %v2228, %v2226
    %v2353 = vpack.c.b16 %v2231, %v2229
    %v2354 = vpack.c.b16 %v2232, %v2230
    %v2355 = vpack.c.b16 %v2235, %v2233
    %v2356 = vpack.c.b16 %v2236, %v2234
    %v2357 = vpack.c.b16 %v2239, %v2237
    %v2358 = vpack.c.b16 %v2240, %v2238
    %v2359 = vpack.c.b16 %v2243, %v2241
    %v2360 = vpack.c.b16 %v2244, %v2242
    %v2361 = vpack.c.b16 %v2247, %v2245
    %v2362 = vpack.c.b16 %v2248, %v2246
    %v2363 = vpack.c.b16 %v2251, %v2249
    %v2364 = vpack.c.b16 %v2252, %v2250
    %v2365 = vpack.c.b16 %v2255, %v2253
    %v2366 = vpack.c.b16 %v2256, %v2254
    %v2367 = vpack.c.b16 %v2259, %v2257
    %v2368 = vpack.c.b16 %v2260, %v2258
    %v2369 = vpack.c.b16 %v2263, %v2261
    %v2370 = vpack.c.b16 %v2264, %v2262
    %v2371 = vpack.c.b16 %v2267, %v2265
    %v2372 = vpack.c.b16 %v2268, %v2266
    %v2373 = vpack.c.b16 %v2271, %v2269
    %v2374 = vpack.c.b16 %v2272, %v2270
    %v2375 = vpack.c.b16 %v2275, %v2273
    %v2376 = vpack.c.b16 %v2276, %v2274
    %v2377 = vpack.c.b16 %v2279, %v2277
    %v2378 = vpack.c.b16 %v2280, %v2278
    %v2379 = vpack.c.b16 %v2283, %v2281
    %v2380 = vpack.c.b16 %v2284, %v2282
    %v2381 = vpack.c.b16 %v2287, %v2285
    %v2382 = vpack.c.b16 %v2288, %v2286
    %v2383 = vpack.c.b16 %v2291, %v2289
    %v2384 = vpack.c.b16 %v2292, %v2290
    %v2385 = vpack.c.b16 %v2295, %v2293
    %v2386 = vpack.c.b16 %v2296, %v2294
    %v2387 = vpack.c.b16 %v2299, %v2297
    %v2388 = vpack.c.b16 %v2300, %v2298
    %v2389 = vpack.c.b16 %v2303, %v2301
    %v2390 = vpack.c.b16 %v2304, %v2302
    %v2391 = vpack.c.b16 %v2307, %v2305
    %v2392 = vpack.c.b16 %v2308, %v2306
    %v2393 = vpack.c.b16 %v2311, %v2309
    %v2394 = vpack.c.b16 %v2312, %v2310
    %v2395 = vpack.c.b16 %v2315, %v2313
    %v2396 = vpack.c.b16 %v2316, %v2314
    %v2397 = vpack.c.b16 %v2319, %v2317
    %v2398 = vpack.c.b16 %v2320, %v2318
    %v2399 = vpack.c.b16 %v2323, %v2321
    %v2400 = vpack.c.b16 %v2324, %v2322
    %v2401 = vpack.c.b16 %v2327, %v2325
    %v2402 = vpack.c.b16 %v2328, %v2326
    %v2403 = vpack.c.b16 %v2331, %v2329
    %v2404 = vpack.c.b16 %v2332, %v2330
    %v2405 = vpack.c.b16 %v2335, %v2333
    %v2406 = vpack.c.b16 %v2336, %v2334
    %v2407 = vpack.c.b16 %v2339, %v2337
    %v2408 = vpack.c.b16 %v2340, %v2338
    %v2409 = vpack.c.b16 %v2343, %v2341
    %v2410 = vpack.c.b16 %v2344, %v2342
    %v2411 = vpack.c.b16 %v2347, %v2345
    %v2412 = vpack.c.b16 %v2348, %v2346
    %2477 = vmatpush.bf16.msra.mxu0 %v2363
    %2478 = vmatpush.bf16.msra.mxu0 %v2361
    %2479 = vmatpush.bf16.msra.mxu0 %v2359
    %2480 = vmatpush.bf16.msra.mxu0 %v2357
    %2481 = vmatpush.bf16.msra.mxu0 %v2355
    %2482 = vmatpush.bf16.msra.mxu0 %v2353
    %2483 = vmatpush.bf16.msra.mxu0 %v2351
    %2484 = vmatpush.bf16.msra.mxu0 %v2349
    %2485 = vmatmul.bf16.gmra.mxu0 %v2055
    %v2486 = vpop.f32.mrf.mxu0
    %v2487 = vadd.f32 %v2153, %v2486
    %v2488 = vpop.f32.mrf.mxu0
    %v2489 = vadd.f32 %v2153, %v2488
    %2490 = vmatmul.bf16.gmra.mxu0 %v2059
    %v2491 = vpop.f32.mrf.mxu0
    %v2492 = vadd.f32 %v2153, %v2491
    %v2493 = vpop.f32.mrf.mxu0
    %v2494 = vadd.f32 %v2153, %v2493
    %2495 = vmatmul.bf16.gmra.mxu0 %v2063
    %v2496 = vpop.f32.mrf.mxu0
    %v2497 = vadd.f32 %v2153, %v2496
    %v2498 = vpop.f32.mrf.mxu0
    %v2499 = vadd.f32 %v2153, %v2498
    %2500 = vmatmul.bf16.gmra.mxu0 %v2067
    %v2501 = vpop.f32.mrf.mxu0
    %v2502 = vadd.f32 %v2153, %v2501
    %v2503 = vpop.f32.mrf.mxu0
    %v2504 = vadd.f32 %v2153, %v2503
    %2505 = vmatmul.bf16.gmra.mxu0 %v2071
    %v2506 = vpop.f32.mrf.mxu0
    %v2507 = vadd.f32 %v2153, %v2506
    %v2508 = vpop.f32.mrf.mxu0
    %v2509 = vadd.f32 %v2153, %v2508
    %2510 = vmatmul.bf16.gmra.mxu0 %v2075
    %v2511 = vpop.f32.mrf.mxu0
    %v2512 = vadd.f32 %v2153, %v2511
    %v2513 = vpop.f32.mrf.mxu0
    %v2514 = vadd.f32 %v2153, %v2513
    %2515 = vmatmul.bf16.gmra.mxu0 %v2079
    %v2516 = vpop.f32.mrf.mxu0
    %v2517 = vadd.f32 %v2153, %v2516
    %v2518 = vpop.f32.mrf.mxu0
    %v2519 = vadd.f32 %v2153, %v2518
    %2520 = vmatmul.bf16.gmra.mxu0 %v2083
    %v2521 = vpop.f32.mrf.mxu0
    %v2522 = vadd.f32 %v2153, %v2521
    %v2523 = vpop.f32.mrf.mxu0
    %v2524 = vadd.f32 %v2153, %v2523
    %2525 = vdwg.mxu0
    %2526 = vmatpush.bf16.msra.mxu0 %v2379
    %2527 = vmatpush.bf16.msra.mxu0 %v2377
    %2528 = vmatpush.bf16.msra.mxu0 %v2375
    %2529 = vmatpush.bf16.msra.mxu0 %v2373
    %2530 = vmatpush.bf16.msra.mxu0 %v2371
    %2531 = vmatpush.bf16.msra.mxu0 %v2369
    %2532 = vmatpush.bf16.msra.mxu0 %v2367
    %2533 = vmatpush.bf16.msra.mxu0 %v2365
    %2534 = vmatmul.bf16.gmra.mxu0 %v2056
    %v2535 = vpop.f32.mrf.mxu0
    %v2536 = vadd.f32 %v2487, %v2535
    %v2537 = vpop.f32.mrf.mxu0
    %v2538 = vadd.f32 %v2489, %v2537
    %2539 = vmatmul.bf16.gmra.mxu0 %v2060
    %v2540 = vpop.f32.mrf.mxu0
    %v2541 = vadd.f32 %v2492, %v2540
    %v2542 = vpop.f32.mrf.mxu0
    %v2543 = vadd.f32 %v2494, %v2542
    %2544 = vmatmul.bf16.gmra.mxu0 %v2064
    %v2545 = vpop.f32.mrf.mxu0
    %v2546 = vadd.f32 %v2497, %v2545
    %v2547 = vpop.f32.mrf.mxu0
    %v2548 = vadd.f32 %v2499, %v2547
    %2549 = vmatmul.bf16.gmra.mxu0 %v2068
    %v2550 = vpop.f32.mrf.mxu0
    %v2551 = vadd.f32 %v2502, %v2550
    %v2552 = vpop.f32.mrf.mxu0
    %v2553 = vadd.f32 %v2504, %v2552
    %2554 = vmatmul.bf16.gmra.mxu0 %v2072
    %v2555 = vpop.f32.mrf.mxu0
    %v2556 = vadd.f32 %v2507, %v2555
    %v2557 = vpop.f32.mrf.mxu0
    %v2558 = vadd.f32 %v2509, %v2557
    %2559 = vmatmul.bf16.gmra.mxu0 %v2076
    %v2560 = vpop.f32.mrf.mxu0
    %v2561 = vadd.f32 %v2512, %v2560
    %v2562 = vpop.f32.mrf.mxu0
    %v2563 = vadd.f32 %v2514, %v2562
    %2564 = vmatmul.bf16.gmra.mxu0 %v2080
    %v2565 = vpop.f32.mrf.mxu0
    %v2566 = vadd.f32 %v2517, %v2565
    %v2567 = vpop.f32.mrf.mxu0
    %v2568 = vadd.f32 %v2519, %v2567
    %2569 = vmatmul.bf16.gmra.mxu0 %v2084
    %v2570 = vpop.f32.mrf.mxu0
    %v2571 = vadd.f32 %v2522, %v2570
    %v2572 = vpop.f32.mrf.mxu0
    %v2573 = vadd.f32 %v2524, %v2572
    %2574 = vdwg.mxu0
    %2575 = vmatpush.bf16.msra.mxu0 %v2395
    %2576 = vmatpush.bf16.msra.mxu0 %v2393
    %2577 = vmatpush.bf16.msra.mxu0 %v2391
    %2578 = vmatpush.bf16.msra.mxu0 %v2389
    %2579 = vmatpush.bf16.msra.mxu0 %v2387
    %2580 = vmatpush.bf16.msra.mxu0 %v2385
    %2581 = vmatpush.bf16.msra.mxu0 %v2383
    %2582 = vmatpush.bf16.msra.mxu0 %v2381
    %2583 = vmatmul.bf16.gmra.mxu0 %v2057
    %v2584 = vpop.f32.mrf.mxu0
    %v2585 = vadd.f32 %v2536, %v2584
    %v2586 = vpop.f32.mrf.mxu0
    %v2587 = vadd.f32 %v2538, %v2586
    %2588 = vmatmul.bf16.gmra.mxu0 %v2061
    %v2589 = vpop.f32.mrf.mxu0
    %v2590 = vadd.f32 %v2541, %v2589
    %v2591 = vpop.f32.mrf.mxu0
    %v2592 = vadd.f32 %v2543, %v2591
    %2593 = vmatmul.bf16.gmra.mxu0 %v2065
    %v2594 = vpop.f32.mrf.mxu0
    %v2595 = vadd.f32 %v2546, %v2594
    %v2596 = vpop.f32.mrf.mxu0
    %v2597 = vadd.f32 %v2548, %v2596
    %2598 = vmatmul.bf16.gmra.mxu0 %v2069
    %v2599 = vpop.f32.mrf.mxu0
    %v2600 = vadd.f32 %v2551, %v2599
    %v2601 = vpop.f32.mrf.mxu0
    %v2602 = vadd.f32 %v2553, %v2601
    %2603 = vmatmul.bf16.gmra.mxu0 %v2073
    %v2604 = vpop.f32.mrf.mxu0
    %v2605 = vadd.f32 %v2556, %v2604
    %v2606 = vpop.f32.mrf.mxu0
    %v2607 = vadd.f32 %v2558, %v2606
    %2608 = vmatmul.bf16.gmra.mxu0 %v2077
    %v2609 = vpop.f32.mrf.mxu0
    %v2610 = vadd.f32 %v2561, %v2609
    %v2611 = vpop.f32.mrf.mxu0
    %v2612 = vadd.f32 %v2563, %v2611
    %2613 = vmatmul.bf16.gmra.mxu0 %v2081
    %v2614 = vpop.f32.mrf.mxu0
    %v2615 = vadd.f32 %v2566, %v2614
    %v2616 = vpop.f32.mrf.mxu0
    %v2617 = vadd.f32 %v2568, %v2616
    %2618 = vmatmul.bf16.gmra.mxu0 %v2085
    %v2619 = vpop.f32.mrf.mxu0
    %v2620 = vadd.f32 %v2571, %v2619
    %v2621 = vpop.f32.mrf.mxu0
    %v2622 = vadd.f32 %v2573, %v2621
    %2623 = vdwg.mxu0
    %2624 = vmatpush.bf16.msra.mxu0 %v2411
    %2625 = vmatpush.bf16.msra.mxu0 %v2409
    %2626 = vmatpush.bf16.msra.mxu0 %v2407
    %2627 = vmatpush.bf16.msra.mxu0 %v2405
    %2628 = vmatpush.bf16.msra.mxu0 %v2403
    %2629 = vmatpush.bf16.msra.mxu0 %v2401
    %2630 = vmatpush.bf16.msra.mxu0 %v2399
    %2631 = vmatpush.bf16.msra.mxu0 %v2397
    %2632 = vmatmul.bf16.gmra.mxu0 %v2058
    %v2633 = vpop.f32.mrf.mxu0
    %v2634 = vadd.f32 %v2585, %v2633
    %v2635 = vpop.f32.mrf.mxu0
    %v2636 = vadd.f32 %v2587, %v2635
    %2637 = vmatmul.bf16.gmra.mxu0 %v2062
    %v2638 = vpop.f32.mrf.mxu0
    %v2639 = vadd.f32 %v2590, %v2638
    %v2640 = vpop.f32.mrf.mxu0
    %v2641 = vadd.f32 %v2592, %v2640
    %2642 = vmatmul.bf16.gmra.mxu0 %v2066
    %v2643 = vpop.f32.mrf.mxu0
    %v2644 = vadd.f32 %v2595, %v2643
    %v2645 = vpop.f32.mrf.mxu0
    %v2646 = vadd.f32 %v2597, %v2645
    %2647 = vmatmul.bf16.gmra.mxu0 %v2070
    %v2648 = vpop.f32.mrf.mxu0
    %v2649 = vadd.f32 %v2600, %v2648
    %v2650 = vpop.f32.mrf.mxu0
    %v2651 = vadd.f32 %v2602, %v2650
    %2652 = vmatmul.bf16.gmra.mxu0 %v2074
    %v2653 = vpop.f32.mrf.mxu0
    %v2654 = vadd.f32 %v2605, %v2653
    %v2655 = vpop.f32.mrf.mxu0
    %v2656 = vadd.f32 %v2607, %v2655
    %2657 = vmatmul.bf16.gmra.mxu0 %v2078
    %v2658 = vpop.f32.mrf.mxu0
    %v2659 = vadd.f32 %v2610, %v2658
    %v2660 = vpop.f32.mrf.mxu0
    %v2661 = vadd.f32 %v2612, %v2660
    %2662 = vmatmul.bf16.gmra.mxu0 %v2082
    %v2663 = vpop.f32.mrf.mxu0
    %v2664 = vadd.f32 %v2615, %v2663
    %v2665 = vpop.f32.mrf.mxu0
    %v2666 = vadd.f32 %v2617, %v2665
    %2667 = vmatmul.bf16.gmra.mxu0 %v2086
    %v2668 = vpop.f32.mrf.mxu0
    %v2669 = vadd.f32 %v2620, %v2668
    %v2670 = vpop.f32.mrf.mxu0
    %v2671 = vadd.f32 %v2622, %v2670
    %2672 = vdwg.mxu0
    %2673 = vmatpush.bf16.msra.mxu0 %v2364
    %2674 = vmatpush.bf16.msra.mxu0 %v2362
    %2675 = vmatpush.bf16.msra.mxu0 %v2360
    %2676 = vmatpush.bf16.msra.mxu0 %v2358
    %2677 = vmatpush.bf16.msra.mxu0 %v2356
    %2678 = vmatpush.bf16.msra.mxu0 %v2354
    %2679 = vmatpush.bf16.msra.mxu0 %v2352
    %2680 = vmatpush.bf16.msra.mxu0 %v2350
    %2681 = vmatmul.bf16.gmra.mxu0 %v2055
    %v2682 = vpop.f32.mrf.mxu0
    %v2683 = vadd.f32 %v2154, %v2682
    %v2684 = vpop.f32.mrf.mxu0
    %v2685 = vadd.f32 %v2154, %v2684
    %2686 = vmatmul.bf16.gmra.mxu0 %v2059
    %v2687 = vpop.f32.mrf.mxu0
    %v2688 = vadd.f32 %v2154, %v2687
    %v2689 = vpop.f32.mrf.mxu0
    %v2690 = vadd.f32 %v2154, %v2689
    %2691 = vmatmul.bf16.gmra.mxu0 %v2063
    %v2692 = vpop.f32.mrf.mxu0
    %v2693 = vadd.f32 %v2154, %v2692
    %v2694 = vpop.f32.mrf.mxu0
    %v2695 = vadd.f32 %v2154, %v2694
    %2696 = vmatmul.bf16.gmra.mxu0 %v2067
    %v2697 = vpop.f32.mrf.mxu0
    %v2698 = vadd.f32 %v2154, %v2697
    %v2699 = vpop.f32.mrf.mxu0
    %v2700 = vadd.f32 %v2154, %v2699
    %2701 = vmatmul.bf16.gmra.mxu0 %v2071
    %v2702 = vpop.f32.mrf.mxu0
    %v2703 = vadd.f32 %v2154, %v2702
    %v2704 = vpop.f32.mrf.mxu0
    %v2705 = vadd.f32 %v2154, %v2704
    %2706 = vmatmul.bf16.gmra.mxu0 %v2075
    %v2707 = vpop.f32.mrf.mxu0
    %v2708 = vadd.f32 %v2154, %v2707
    %v2709 = vpop.f32.mrf.mxu0
    %v2710 = vadd.f32 %v2154, %v2709
    %2711 = vmatmul.bf16.gmra.mxu0 %v2079
    %v2712 = vpop.f32.mrf.mxu0
    %v2713 = vadd.f32 %v2154, %v2712
    %v2714 = vpop.f32.mrf.mxu0
    %v2715 = vadd.f32 %v2154, %v2714
    %2716 = vmatmul.bf16.gmra.mxu0 %v2083
    %v2717 = vpop.f32.mrf.mxu0
    %v2718 = vadd.f32 %v2154, %v2717
    %v2719 = vpop.f32.mrf.mxu0
    %v2720 = vadd.f32 %v2154, %v2719
    %2721 = vdwg.mxu0
    %2722 = vmatpush.bf16.msra.mxu0 %v2380
    %2723 = vmatpush.bf16.msra.mxu0 %v2378
    %2724 = vmatpush.bf16.msra.mxu0 %v2376
    %2725 = vmatpush.bf16.msra.mxu0 %v2374
    %2726 = vmatpush.bf16.msra.mxu0 %v2372
    %2727 = vmatpush.bf16.msra.mxu0 %v2370
    %2728 = vmatpush.bf16.msra.mxu0 %v2368
    %2729 = vmatpush.bf16.msra.mxu0 %v2366
    %2730 = vmatmul.bf16.gmra.mxu0 %v2056
    %v2731 = vpop.f32.mrf.mxu0
    %v2732 = vadd.f32 %v2683, %v2731
    %v2733 = vpop.f32.mrf.mxu0
    %v2734 = vadd.f32 %v2685, %v2733
    %2735 = vmatmul.bf16.gmra.mxu0 %v2060
    %v2736 = vpop.f32.mrf.mxu0
    %v2737 = vadd.f32 %v2688, %v2736
    %v2738 = vpop.f32.mrf.mxu0
    %v2739 = vadd.f32 %v2690, %v2738
    %2740 = vmatmul.bf16.gmra.mxu0 %v2064
    %v2741 = vpop.f32.mrf.mxu0
    %v2742 = vadd.f32 %v2693, %v2741
    %v2743 = vpop.f32.mrf.mxu0
    %v2744 = vadd.f32 %v2695, %v2743
    %2745 = vmatmul.bf16.gmra.mxu0 %v2068
    %v2746 = vpop.f32.mrf.mxu0
    %v2747 = vadd.f32 %v2698, %v2746
    %v2748 = vpop.f32.mrf.mxu0
    %v2749 = vadd.f32 %v2700, %v2748
    %2750 = vmatmul.bf16.gmra.mxu0 %v2072
    %v2751 = vpop.f32.mrf.mxu0
    %v2752 = vadd.f32 %v2703, %v2751
    %v2753 = vpop.f32.mrf.mxu0
    %v2754 = vadd.f32 %v2705, %v2753
    %2755 = vmatmul.bf16.gmra.mxu0 %v2076
    %v2756 = vpop.f32.mrf.mxu0
    %v2757 = vadd.f32 %v2708, %v2756
    %v2758 = vpop.f32.mrf.mxu0
    %v2759 = vadd.f32 %v2710, %v2758
    %2760 = vmatmul.bf16.gmra.mxu0 %v2080
    %v2761 = vpop.f32.mrf.mxu0
    %v2762 = vadd.f32 %v2713, %v2761
    %v2763 = vpop.f32.mrf.mxu0
    %v2764 = vadd.f32 %v2715, %v2763
    %2765 = vmatmul.bf16.gmra.mxu0 %v2084
    %v2766 = vpop.f32.mrf.mxu0
    %v2767 = vadd.f32 %v2718, %v2766
    %v2768 = vpop.f32.mrf.mxu0
    %v2769 = vadd.f32 %v2720, %v2768
    %2770 = vdwg.mxu0
    %2771 = vmatpush.bf16.msra.mxu0 %v2396
    %2772 = vmatpush.bf16.msra.mxu0 %v2394
    %2773 = vmatpush.bf16.msra.mxu0 %v2392
    %2774 = vmatpush.bf16.msra.mxu0 %v2390
    %2775 = vmatpush.bf16.msra.mxu0 %v2388
    %2776 = vmatpush.bf16.msra.mxu0 %v2386
    %2777 = vmatpush.bf16.msra.mxu0 %v2384
    %2778 = vmatpush.bf16.msra.mxu0 %v2382
    %2779 = vmatmul.bf16.gmra.mxu0 %v2057
    %v2780 = vpop.f32.mrf.mxu0
    %v2781 = vadd.f32 %v2732, %v2780
    %v2782 = vpop.f32.mrf.mxu0
    %v2783 = vadd.f32 %v2734, %v2782
    %2784 = vmatmul.bf16.gmra.mxu0 %v2061
    %v2785 = vpop.f32.mrf.mxu0
    %v2786 = vadd.f32 %v2737, %v2785
    %v2787 = vpop.f32.mrf.mxu0
    %v2788 = vadd.f32 %v2739, %v2787
    %2789 = vmatmul.bf16.gmra.mxu0 %v2065
    %v2790 = vpop.f32.mrf.mxu0
    %v2791 = vadd.f32 %v2742, %v2790
    %v2792 = vpop.f32.mrf.mxu0
    %v2793 = vadd.f32 %v2744, %v2792
    %2794 = vmatmul.bf16.gmra.mxu0 %v2069
    %v2795 = vpop.f32.mrf.mxu0
    %v2796 = vadd.f32 %v2747, %v2795
    %v2797 = vpop.f32.mrf.mxu0
    %v2798 = vadd.f32 %v2749, %v2797
    %2799 = vmatmul.bf16.gmra.mxu0 %v2073
    %v2800 = vpop.f32.mrf.mxu0
    %v2801 = vadd.f32 %v2752, %v2800
    %v2802 = vpop.f32.mrf.mxu0
    %v2803 = vadd.f32 %v2754, %v2802
    %2804 = vmatmul.bf16.gmra.mxu0 %v2077
    %v2805 = vpop.f32.mrf.mxu0
    %v2806 = vadd.f32 %v2757, %v2805
    %v2807 = vpop.f32.mrf.mxu0
    %v2808 = vadd.f32 %v2759, %v2807
    %2809 = vmatmul.bf16.gmra.mxu0 %v2081
    %v2810 = vpop.f32.mrf.mxu0
    %v2811 = vadd.f32 %v2762, %v2810
    %v2812 = vpop.f32.mrf.mxu0
    %v2813 = vadd.f32 %v2764, %v2812
    %2814 = vmatmul.bf16.gmra.mxu0 %v2085
    %v2815 = vpop.f32.mrf.mxu0
    %v2816 = vadd.f32 %v2767, %v2815
    %v2817 = vpop.f32.mrf.mxu0
    %v2818 = vadd.f32 %v2769, %v2817
    %2819 = vdwg.mxu0
    %2820 = vmatpush.bf16.msra.mxu0 %v2412
    %2821 = vmatpush.bf16.msra.mxu0 %v2410
    %2822 = vmatpush.bf16.msra.mxu0 %v2408
    %2823 = vmatpush.bf16.msra.mxu0 %v2406
    %2824 = vmatpush.bf16.msra.mxu0 %v2404
    %2825 = vmatpush.bf16.msra.mxu0 %v2402
    %2826 = vmatpush.bf16.msra.mxu0 %v2400
    %2827 = vmatpush.bf16.msra.mxu0 %v2398
    %2828 = vmatmul.bf16.gmra.mxu0 %v2058
    %v2829 = vpop.f32.mrf.mxu0
    %v2830 = vadd.f32 %v2781, %v2829
    %v2831 = vpop.f32.mrf.mxu0
    %v2832 = vadd.f32 %v2783, %v2831
    %2833 = vmatmul.bf16.gmra.mxu0 %v2062
    %v2834 = vpop.f32.mrf.mxu0
    %v2835 = vadd.f32 %v2786, %v2834
    %v2836 = vpop.f32.mrf.mxu0
    %v2837 = vadd.f32 %v2788, %v2836
    %2838 = vmatmul.bf16.gmra.mxu0 %v2066
    %v2839 = vpop.f32.mrf.mxu0
    %v2840 = vadd.f32 %v2791, %v2839
    %v2841 = vpop.f32.mrf.mxu0
    %v2842 = vadd.f32 %v2793, %v2841
    %2843 = vmatmul.bf16.gmra.mxu0 %v2070
    %v2844 = vpop.f32.mrf.mxu0
    %v2845 = vadd.f32 %v2796, %v2844
    %v2846 = vpop.f32.mrf.mxu0
    %v2847 = vadd.f32 %v2798, %v2846
    %2848 = vmatmul.bf16.gmra.mxu0 %v2074
    %v2849 = vpop.f32.mrf.mxu0
    %v2850 = vadd.f32 %v2801, %v2849
    %v2851 = vpop.f32.mrf.mxu0
    %v2852 = vadd.f32 %v2803, %v2851
    %2853 = vmatmul.bf16.gmra.mxu0 %v2078
    %v2854 = vpop.f32.mrf.mxu0
    %v2855 = vadd.f32 %v2806, %v2854
    %v2856 = vpop.f32.mrf.mxu0
    %v2857 = vadd.f32 %v2808, %v2856
    %2858 = vmatmul.bf16.gmra.mxu0 %v2082
    %v2859 = vpop.f32.mrf.mxu0
    %v2860 = vadd.f32 %v2811, %v2859
    %v2861 = vpop.f32.mrf.mxu0
    %v2862 = vadd.f32 %v2813, %v2861
    %2863 = vmatmul.bf16.gmra.mxu0 %v2086
    %v2864 = vpop.f32.mrf.mxu0
    %v2865 = vadd.f32 %v2816, %v2864
    %v2866 = vpop.f32.mrf.mxu0
    %v2867 = vadd.f32 %v2818, %v2866
    %2868 = vdwg.mxu0
    %vm2869 = vcmp.gt.f32.partialorder %v2634, 0.0
    %vm2870 = vcmp.gt.f32.partialorder %v2830, 0.0
    %vm2871 = vcmp.gt.f32.partialorder %v2636, 0.0
    %vm2872 = vcmp.gt.f32.partialorder %v2832, 0.0
    %vm2873 = vcmp.gt.f32.partialorder %v2639, 0.0
    %vm2874 = vcmp.gt.f32.partialorder %v2835, 0.0
    %vm2875 = vcmp.gt.f32.partialorder %v2641, 0.0
    %vm2876 = vcmp.gt.f32.partialorder %v2837, 0.0
    %vm2877 = vcmp.gt.f32.partialorder %v2644, 0.0
    %vm2878 = vcmp.gt.f32.partialorder %v2840, 0.0
    %vm2879 = vcmp.gt.f32.partialorder %v2646, 0.0
    %vm2880 = vcmp.gt.f32.partialorder %v2842, 0.0
    %vm2881 = vcmp.gt.f32.partialorder %v2649, 0.0
    %vm2882 = vcmp.gt.f32.partialorder %v2845, 0.0
    %vm2883 = vcmp.gt.f32.partialorder %v2651, 0.0
    %vm2884 = vcmp.gt.f32.partialorder %v2847, 0.0
    %vm2885 = vcmp.gt.f32.partialorder %v2654, 0.0
    %vm2886 = vcmp.gt.f32.partialorder %v2850, 0.0
    %vm2887 = vcmp.gt.f32.partialorder %v2656, 0.0
    %vm2888 = vcmp.gt.f32.partialorder %v2852, 0.0
    %vm2889 = vcmp.gt.f32.partialorder %v2659, 0.0
    %vm2890 = vcmp.gt.f32.partialorder %v2855, 0.0
    %vm2891 = vcmp.gt.f32.partialorder %v2661, 0.0
    %vm2892 = vcmp.gt.f32.partialorder %v2857, 0.0
    %vm2893 = vcmp.gt.f32.partialorder %v2664, 0.0
    %vm2894 = vcmp.gt.f32.partialorder %v2860, 0.0
    %vm2895 = vcmp.gt.f32.partialorder %v2666, 0.0
    %vm2896 = vcmp.gt.f32.partialorder %v2862, 0.0
    %vm2897 = vcmp.gt.f32.partialorder %v2669, 0.0
    %vm2898 = vcmp.gt.f32.partialorder %v2865, 0.0
    %vm2899 = vcmp.gt.f32.partialorder %v2671, 0.0
    %vm2900 = vcmp.gt.f32.partialorder %v2867, 0.0
    %v2901 = vmul.f32 %v2634, 0.2
    %v2902 = vmul.f32 %v2830, 0.2
    %v2903 = vmul.f32 %v2636, 0.2
    %v2904 = vmul.f32 %v2832, 0.2
    %v2905 = vmul.f32 %v2639, 0.2
    %v2906 = vmul.f32 %v2835, 0.2
    %v2907 = vmul.f32 %v2641, 0.2
    %v2908 = vmul.f32 %v2837, 0.2
    %v2909 = vmul.f32 %v2644, 0.2
    %v2910 = vmul.f32 %v2840, 0.2
    %v2911 = vmul.f32 %v2646, 0.2
    %v2912 = vmul.f32 %v2842, 0.2
    %v2913 = vmul.f32 %v2649, 0.2
    %v2914 = vmul.f32 %v2845, 0.2
    %v2915 = vmul.f32 %v2651, 0.2
    %v2916 = vmul.f32 %v2847, 0.2
    %v2917 = vmul.f32 %v2654, 0.2
    %v2918 = vmul.f32 %v2850, 0.2
    %v2919 = vmul.f32 %v2656, 0.2
    %v2920 = vmul.f32 %v2852, 0.2
    %v2921 = vmul.f32 %v2659, 0.2
    %v2922 = vmul.f32 %v2855, 0.2
    %v2923 = vmul.f32 %v2661, 0.2
    %v2924 = vmul.f32 %v2857, 0.2
    %v2925 = vmul.f32 %v2664, 0.2
    %v2926 = vmul.f32 %v2860, 0.2
    %v2927 = vmul.f32 %v2666, 0.2
    %v2928 = vmul.f32 %v2862, 0.2
    %v2929 = vmul.f32 %v2669, 0.2
    %v2930 = vmul.f32 %v2865, 0.2
    %v2931 = vmul.f32 %v2671, 0.2
    %v2932 = vmul.f32 %v2867, 0.2
    %v2933 = vsel %vm2869, %v2634, %v2901
    %v2934 = vsel %vm2870, %v2830, %v2902
    %v2935 = vsel %vm2871, %v2636, %v2903
    %v2936 = vsel %vm2872, %v2832, %v2904
    %v2937 = vsel %vm2873, %v2639, %v2905
    %v2938 = vsel %vm2874, %v2835, %v2906
    %v2939 = vsel %vm2875, %v2641, %v2907
    %v2940 = vsel %vm2876, %v2837, %v2908
    %v2941 = vsel %vm2877, %v2644, %v2909
    %v2942 = vsel %vm2878, %v2840, %v2910
    %v2943 = vsel %vm2879, %v2646, %v2911
    %v2944 = vsel %vm2880, %v2842, %v2912
    %v2945 = vsel %vm2881, %v2649, %v2913
    %v2946 = vsel %vm2882, %v2845, %v2914
    %v2947 = vsel %vm2883, %v2651, %v2915
    %v2948 = vsel %vm2884, %v2847, %v2916
    %v2949 = vsel %vm2885, %v2654, %v2917
    %v2950 = vsel %vm2886, %v2850, %v2918
    %v2951 = vsel %vm2887, %v2656, %v2919
    %v2952 = vsel %vm2888, %v2852, %v2920
    %v2953 = vsel %vm2889, %v2659, %v2921
    %v2954 = vsel %vm2890, %v2855, %v2922
    %v2955 = vsel %vm2891, %v2661, %v2923
    %v2956 = vsel %vm2892, %v2857, %v2924
    %v2957 = vsel %vm2893, %v2664, %v2925
    %v2958 = vsel %vm2894, %v2860, %v2926
    %v2959 = vsel %vm2895, %v2666, %v2927
    %v2960 = vsel %vm2896, %v2862, %v2928
    %v2961 = vsel %vm2897, %v2669, %v2929
    %v2962 = vsel %vm2898, %v2865, %v2930
    %v2963 = vsel %vm2899, %v2671, %v2931
    %v2964 = vsel %vm2900, %v2867, %v2932
    %v2965 = vpack.c.bf16 %v2935, %v2933
    %v2966 = vpack.c.bf16 %v2936, %v2934
    %v2967 = vpack.c.bf16 %v2939, %v2937
    %v2968 = vpack.c.bf16 %v2940, %v2938
    %v2969 = vpack.c.bf16 %v2943, %v2941
    %v2970 = vpack.c.bf16 %v2944, %v2942
    %v2971 = vpack.c.bf16 %v2947, %v2945
    %v2972 = vpack.c.bf16 %v2948, %v2946
    %v2973 = vpack.c.bf16 %v2951, %v2949
    %v2974 = vpack.c.bf16 %v2952, %v2950
    %v2975 = vpack.c.bf16 %v2955, %v2953
    %v2976 = vpack.c.bf16 %v2956, %v2954
    %v2977 = vpack.c.bf16 %v2959, %v2957
    %v2978 = vpack.c.bf16 %v2960, %v2958
    %v2979 = vpack.c.bf16 %v2963, %v2961
    %v2980 = vpack.c.bf16 %v2964, %v2962
    %v2981 = vld [vmem:[#allocation8] sm:$0xf]
    %v2982 = vld [vmem:[#allocation8 + $0x4] sm:$0xf]
    %v2983 = vld [vmem:[#allocation8 + $0x8] sm:$0xf]
    %v2984 = vld [vmem:[#allocation8 + $0xc] sm:$0xf]
    %v2985 = vld [vmem:[#allocation8 + $0x10] sm:$0xf]
    %v2986 = vld [vmem:[#allocation8 + $0x14] sm:$0xf]
    %v2987 = vld [vmem:[#allocation8 + $0x18] sm:$0xf]
    %v2988 = vld [vmem:[#allocation8 + $0x1c] sm:$0xf]
    %v2989 = vld [vmem:[#allocation8 + $0x20] sm:$0xf]
    %v2990 = vld [vmem:[#allocation8 + $0x24] sm:$0xf]
    %v2991 = vld [vmem:[#allocation8 + $0x28] sm:$0xf]
    %v2992 = vld [vmem:[#allocation8 + $0x2c] sm:$0xf]
    %v2993 = vld [vmem:[#allocation8 + $0x30] sm:$0xf]
    %v2994 = vld [vmem:[#allocation8 + $0x34] sm:$0xf]
    %v2995 = vld [vmem:[#allocation8 + $0x38] sm:$0xf]
    %v2996 = vld [vmem:[#allocation8 + $0x3c] sm:$0xf]
    %v2997 = vld [vmem:[#allocation8 + $0x40] sm:$0xf]
    %v2998 = vld [vmem:[#allocation8 + $0x44] sm:$0xf]
    %v2999 = vld [vmem:[#allocation8 + $0x48] sm:$0xf]
    %v3000 = vld [vmem:[#allocation8 + $0x4c] sm:$0xf]
    %v3001 = vld [vmem:[#allocation8 + $0x50] sm:$0xf]
    %v3002 = vld [vmem:[#allocation8 + $0x54] sm:$0xf]
    %v3003 = vld [vmem:[#allocation8 + $0x58] sm:$0xf]
    %v3004 = vld [vmem:[#allocation8 + $0x5c] sm:$0xf]
    %v3005 = vld [vmem:[#allocation8 + $0x60] sm:$0xf]
    %v3006 = vld [vmem:[#allocation8 + $0x64] sm:$0xf]
    %v3007 = vld [vmem:[#allocation8 + $0x68] sm:$0xf]
    %v3008 = vld [vmem:[#allocation8 + $0x6c] sm:$0xf]
    %v3009 = vld [vmem:[#allocation8 + $0x70] sm:$0xf]
    %v3010 = vld [vmem:[#allocation8 + $0x74] sm:$0xf]
    %v3011 = vld [vmem:[#allocation8 + $0x78] sm:$0xf]
    %v3012 = vld [vmem:[#allocation8 + $0x7c] sm:$0xf]
    %v3013 = vld [vmem:[%s8] sm:$0x1]
    %v3015 = vperm.slane %v3013, 0
    %v3049 = vunpack.c.l.b16 %v2981
    %v3050 = vunpack.c.l.b16 %v2982
    %v3051 = vunpack.c.l.b16 %v2983
    %v3052 = vunpack.c.l.b16 %v2984
    %v3053 = vunpack.c.l.b16 %v2985
    %v3054 = vunpack.c.l.b16 %v2986
    %v3055 = vunpack.c.l.b16 %v2987
    %v3056 = vunpack.c.l.b16 %v2988
    %v3057 = vunpack.c.l.b16 %v2989
    %v3058 = vunpack.c.l.b16 %v2990
    %v3059 = vunpack.c.l.b16 %v2991
    %v3060 = vunpack.c.l.b16 %v2992
    %v3061 = vunpack.c.l.b16 %v2993
    %v3062 = vunpack.c.l.b16 %v2994
    %v3063 = vunpack.c.l.b16 %v2995
    %v3064 = vunpack.c.l.b16 %v2996
    %v3065 = vunpack.c.l.b16 %v2997
    %v3066 = vunpack.c.l.b16 %v2998
    %v3067 = vunpack.c.l.b16 %v2999
    %v3068 = vunpack.c.l.b16 %v3000
    %v3069 = vunpack.c.l.b16 %v3001
    %v3070 = vunpack.c.l.b16 %v3002
    %v3071 = vunpack.c.l.b16 %v3003
    %v3072 = vunpack.c.l.b16 %v3004
    %v3073 = vunpack.c.l.b16 %v3005
    %v3074 = vunpack.c.l.b16 %v3006
    %v3075 = vunpack.c.l.b16 %v3007
    %v3076 = vunpack.c.l.b16 %v3008
    %v3077 = vunpack.c.l.b16 %v3009
    %v3078 = vunpack.c.l.b16 %v3010
    %v3079 = vunpack.c.l.b16 %v3011
    %v3080 = vunpack.c.l.b16 %v3012
    %v3081 = vpack.c.b16 %v3050, %v3049
    %v3082 = vpack.c.b16 %v3052, %v3051
    %v3083 = vpack.c.b16 %v3054, %v3053
    %v3084 = vpack.c.b16 %v3056, %v3055
    %v3085 = vpack.c.b16 %v3058, %v3057
    %v3086 = vpack.c.b16 %v3060, %v3059
    %v3087 = vpack.c.b16 %v3062, %v3061
    %v3088 = vpack.c.b16 %v3064, %v3063
    %v3089 = vpack.c.b16 %v3066, %v3065
    %v3090 = vpack.c.b16 %v3068, %v3067
    %v3091 = vpack.c.b16 %v3070, %v3069
    %v3092 = vpack.c.b16 %v3072, %v3071
    %v3093 = vpack.c.b16 %v3074, %v3073
    %v3094 = vpack.c.b16 %v3076, %v3075
    %v3095 = vpack.c.b16 %v3078, %v3077
    %v3096 = vpack.c.b16 %v3080, %v3079
    %3113 = vmatpush.bf16.msra.mxu0 %v3088
    %3114 = vmatpush.bf16.msra.mxu0 %v3087
    %3115 = vmatpush.bf16.msra.mxu0 %v3086
    %3116 = vmatpush.bf16.msra.mxu0 %v3085
    %3117 = vmatpush.bf16.msra.mxu0 %v3084
    %3118 = vmatpush.bf16.msra.mxu0 %v3083
    %3119 = vmatpush.bf16.msra.mxu0 %v3082
    %3120 = vmatpush.bf16.msra.mxu0 %v3081
    %3121 = vmatmul.bf16.gmra.mxu0 %v2965
    %v3122 = vpop.f32.mrf.mxu0
    %v3123 = vadd.f32 %v3015, %v3122
    %v3124 = vpop.f32.mrf.mxu0
    %v3125 = vadd.f32 %v3015, %v3124
    %3126 = vmatmul.bf16.gmra.mxu0 %v2967
    %v3127 = vpop.f32.mrf.mxu0
    %v3128 = vadd.f32 %v3015, %v3127
    %v3129 = vpop.f32.mrf.mxu0
    %v3130 = vadd.f32 %v3015, %v3129
    %3131 = vmatmul.bf16.gmra.mxu0 %v2969
    %v3132 = vpop.f32.mrf.mxu0
    %v3133 = vadd.f32 %v3015, %v3132
    %v3134 = vpop.f32.mrf.mxu0
    %v3135 = vadd.f32 %v3015, %v3134
    %3136 = vmatmul.bf16.gmra.mxu0 %v2971
    %v3137 = vpop.f32.mrf.mxu0
    %v3138 = vadd.f32 %v3015, %v3137
    %v3139 = vpop.f32.mrf.mxu0
    %v3140 = vadd.f32 %v3015, %v3139
    %3141 = vmatmul.bf16.gmra.mxu0 %v2973
    %v3142 = vpop.f32.mrf.mxu0
    %v3143 = vadd.f32 %v3015, %v3142
    %v3144 = vpop.f32.mrf.mxu0
    %v3145 = vadd.f32 %v3015, %v3144
    %3146 = vmatmul.bf16.gmra.mxu0 %v2975
    %v3147 = vpop.f32.mrf.mxu0
    %v3148 = vadd.f32 %v3015, %v3147
    %v3149 = vpop.f32.mrf.mxu0
    %v3150 = vadd.f32 %v3015, %v3149
    %3151 = vmatmul.bf16.gmra.mxu0 %v2977
    %v3152 = vpop.f32.mrf.mxu0
    %v3153 = vadd.f32 %v3015, %v3152
    %v3154 = vpop.f32.mrf.mxu0
    %v3155 = vadd.f32 %v3015, %v3154
    %3156 = vmatmul.bf16.gmra.mxu0 %v2979
    %v3157 = vpop.f32.mrf.mxu0
    %v3158 = vadd.f32 %v3015, %v3157
    %v3159 = vpop.f32.mrf.mxu0
    %v3160 = vadd.f32 %v3015, %v3159
    %3161 = vdwg.mxu0
    %3162 = vmatpush.bf16.msra.mxu0 %v3096
    %3163 = vmatpush.bf16.msra.mxu0 %v3095
    %3164 = vmatpush.bf16.msra.mxu0 %v3094
    %3165 = vmatpush.bf16.msra.mxu0 %v3093
    %3166 = vmatpush.bf16.msra.mxu0 %v3092
    %3167 = vmatpush.bf16.msra.mxu0 %v3091
    %3168 = vmatpush.bf16.msra.mxu0 %v3090
    %3169 = vmatpush.bf16.msra.mxu0 %v3089
    %3170 = vmatmul.bf16.gmra.mxu0 %v2966
    %v3171 = vpop.f32.mrf.mxu0
    %v3172 = vadd.f32 %v3123, %v3171
    %v3173 = vpop.f32.mrf.mxu0
    %v3174 = vadd.f32 %v3125, %v3173
    %3175 = vmatmul.bf16.gmra.mxu0 %v2968
    %v3176 = vpop.f32.mrf.mxu0
    %v3177 = vadd.f32 %v3128, %v3176
    %v3178 = vpop.f32.mrf.mxu0
    %v3179 = vadd.f32 %v3130, %v3178
    %3180 = vmatmul.bf16.gmra.mxu0 %v2970
    %v3181 = vpop.f32.mrf.mxu0
    %v3182 = vadd.f32 %v3133, %v3181
    %v3183 = vpop.f32.mrf.mxu0
    %v3184 = vadd.f32 %v3135, %v3183
    %3185 = vmatmul.bf16.gmra.mxu0 %v2972
    %v3186 = vpop.f32.mrf.mxu0
    %v3187 = vadd.f32 %v3138, %v3186
    %v3188 = vpop.f32.mrf.mxu0
    %v3189 = vadd.f32 %v3140, %v3188
    %3190 = vmatmul.bf16.gmra.mxu0 %v2974
    %v3191 = vpop.f32.mrf.mxu0
    %v3192 = vadd.f32 %v3143, %v3191
    %v3193 = vpop.f32.mrf.mxu0
    %v3194 = vadd.f32 %v3145, %v3193
    %3195 = vmatmul.bf16.gmra.mxu0 %v2976
    %v3196 = vpop.f32.mrf.mxu0
    %v3197 = vadd.f32 %v3148, %v3196
    %v3198 = vpop.f32.mrf.mxu0
    %v3199 = vadd.f32 %v3150, %v3198
    %3200 = vmatmul.bf16.gmra.mxu0 %v2978
    %v3201 = vpop.f32.mrf.mxu0
    %v3202 = vadd.f32 %v3153, %v3201
    %v3203 = vpop.f32.mrf.mxu0
    %v3204 = vadd.f32 %v3155, %v3203
    %3205 = vmatmul.bf16.gmra.mxu0 %v2980
    %v3206 = vpop.f32.mrf.mxu0
    %v3207 = vadd.f32 %v3158, %v3206
    %v3208 = vpop.f32.mrf.mxu0
    %v3209 = vadd.f32 %v3160, %v3208
    %3210 = vdwg.mxu0
    %vm3211 = vcmp.gt.f32.partialorder %v3172, 0.0
    %vm3212 = vcmp.gt.f32.partialorder %v3174, 0.0
    %vm3213 = vcmp.gt.f32.partialorder %v3177, 0.0
    %vm3214 = vcmp.gt.f32.partialorder %v3179, 0.0
    %vm3215 = vcmp.gt.f32.partialorder %v3182, 0.0
    %vm3216 = vcmp.gt.f32.partialorder %v3184, 0.0
    %vm3217 = vcmp.gt.f32.partialorder %v3187, 0.0
    %vm3218 = vcmp.gt.f32.partialorder %v3189, 0.0
    %vm3219 = vcmp.gt.f32.partialorder %v3192, 0.0
    %vm3220 = vcmp.gt.f32.partialorder %v3194, 0.0
    %vm3221 = vcmp.gt.f32.partialorder %v3197, 0.0
    %vm3222 = vcmp.gt.f32.partialorder %v3199, 0.0
    %vm3223 = vcmp.gt.f32.partialorder %v3202, 0.0
    %vm3224 = vcmp.gt.f32.partialorder %v3204, 0.0
    %vm3225 = vcmp.gt.f32.partialorder %v3207, 0.0
    %vm3226 = vcmp.gt.f32.partialorder %v3209, 0.0
    %v3227 = vmul.f32 %v3172, 0.2
    %v3228 = vmul.f32 %v3174, 0.2
    %v3229 = vmul.f32 %v3177, 0.2
    %v3230 = vmul.f32 %v3179, 0.2
    %v3231 = vmul.f32 %v3182, 0.2
    %v3232 = vmul.f32 %v3184, 0.2
    %v3233 = vmul.f32 %v3187, 0.2
    %v3234 = vmul.f32 %v3189, 0.2
    %v3235 = vmul.f32 %v3192, 0.2
    %v3236 = vmul.f32 %v3194, 0.2
    %v3237 = vmul.f32 %v3197, 0.2
    %v3238 = vmul.f32 %v3199, 0.2
    %v3239 = vmul.f32 %v3202, 0.2
    %v3240 = vmul.f32 %v3204, 0.2
    %v3241 = vmul.f32 %v3207, 0.2
    %v3242 = vmul.f32 %v3209, 0.2
    %v3243 = vsel %vm3211, %v3172, %v3227
    %v3244 = vsel %vm3212, %v3174, %v3228
    %v3245 = vsel %vm3213, %v3177, %v3229
    %v3246 = vsel %vm3214, %v3179, %v3230
    %v3247 = vsel %vm3215, %v3182, %v3231
    %v3248 = vsel %vm3216, %v3184, %v3232
    %v3249 = vsel %vm3217, %v3187, %v3233
    %v3250 = vsel %vm3218, %v3189, %v3234
    %v3251 = vsel %vm3219, %v3192, %v3235
    %v3252 = vsel %vm3220, %v3194, %v3236
    %v3253 = vsel %vm3221, %v3197, %v3237
    %v3254 = vsel %vm3222, %v3199, %v3238
    %v3255 = vsel %vm3223, %v3202, %v3239
    %v3256 = vsel %vm3224, %v3204, %v3240
    %v3257 = vsel %vm3225, %v3207, %v3241
    %v3258 = vsel %vm3226, %v3209, %v3242
    %v3259 = vpack.c.bf16 %v3244, %v3243
    %v3260 = vpack.c.bf16 %v3246, %v3245
    %v3261 = vpack.c.bf16 %v3248, %v3247
    %v3262 = vpack.c.bf16 %v3250, %v3249
    %v3263 = vpack.c.bf16 %v3252, %v3251
    %v3264 = vpack.c.bf16 %v3254, %v3253
    %v3265 = vpack.c.bf16 %v3256, %v3255
    %v3266 = vpack.c.bf16 %v3258, %v3257
    %v3267 = vld [vmem:[#allocation10] sm:$0xf]
    %v3268 = vld [vmem:[#allocation10 + $0x4] sm:$0xf]
    %v3269 = vld [vmem:[#allocation10 + $0x8] sm:$0xf]
    %v3270 = vld [vmem:[#allocation10 + $0xc] sm:$0xf]
    %v3271 = vld [vmem:[#allocation10 + $0x10] sm:$0xf]
    %v3272 = vld [vmem:[#allocation10 + $0x14] sm:$0xf]
    %v3273 = vld [vmem:[#allocation10 + $0x18] sm:$0xf]
    %v3274 = vld [vmem:[#allocation10 + $0x1c] sm:$0xf]
    %v3275 = vld [vmem:[#allocation10 + $0x20] sm:$0xf]
    %v3276 = vld [vmem:[#allocation10 + $0x24] sm:$0xf]
    %v3277 = vld [vmem:[#allocation10 + $0x28] sm:$0xf]
    %v3278 = vld [vmem:[#allocation10 + $0x2c] sm:$0xf]
    %v3279 = vld [vmem:[#allocation10 + $0x30] sm:$0xf]
    %v3280 = vld [vmem:[#allocation10 + $0x34] sm:$0xf]
    %v3281 = vld [vmem:[#allocation10 + $0x38] sm:$0xf]
    %v3282 = vld [vmem:[#allocation10 + $0x3c] sm:$0xf]
    %v3283 = vld [vmem:[%s10] sm:$0x1]
    %v3285 = vperm.slane %v3283, 0
    %v3303 = vunpack.c.l.b16 %v3267
    %v3304 = vunpack.c.l.b16 %v3268
    %v3305 = vunpack.c.l.b16 %v3269
    %v3306 = vunpack.c.l.b16 %v3270
    %v3307 = vunpack.c.l.b16 %v3271
    %v3308 = vunpack.c.l.b16 %v3272
    %v3309 = vunpack.c.l.b16 %v3273
    %v3310 = vunpack.c.l.b16 %v3274
    %v3311 = vunpack.c.l.b16 %v3275
    %v3312 = vunpack.c.l.b16 %v3276
    %v3313 = vunpack.c.l.b16 %v3277
    %v3314 = vunpack.c.l.b16 %v3278
    %v3315 = vunpack.c.l.b16 %v3279
    %v3316 = vunpack.c.l.b16 %v3280
    %v3317 = vunpack.c.l.b16 %v3281
    %v3318 = vunpack.c.l.b16 %v3282
    %v3319 = vpack.c.b16 %v3304, %v3303
    %v3320 = vpack.c.b16 %v3306, %v3305
    %v3321 = vpack.c.b16 %v3308, %v3307
    %v3322 = vpack.c.b16 %v3310, %v3309
    %v3323 = vpack.c.b16 %v3312, %v3311
    %v3324 = vpack.c.b16 %v3314, %v3313
    %v3325 = vpack.c.b16 %v3316, %v3315
    %v3326 = vpack.c.b16 %v3318, %v3317
    %3335 = vmatpush.bf16.msra.mxu0 %v3326
    %3336 = vmatpush.bf16.msra.mxu0 %v3325
    %3337 = vmatpush.bf16.msra.mxu0 %v3324
    %3338 = vmatpush.bf16.msra.mxu0 %v3323
    %3339 = vmatpush.bf16.msra.mxu0 %v3322
    %3340 = vmatpush.bf16.msra.mxu0 %v3321
    %3341 = vmatpush.bf16.msra.mxu0 %v3320
    %3342 = vmatpush.bf16.msra.mxu0 %v3319
    %3343 = vmatmul.bf16.gmra.mxu0 %v3259
    %v3344 = vpop.f32.mrf.mxu0
    %v3345 = vadd.f32 %v3285, %v3344
    %v3346 = vpop.f32.mrf.mxu0
    %v3347 = vadd.f32 %v3285, %v3346
    %3348 = vmatmul.bf16.gmra.mxu0 %v3260
    %v3349 = vpop.f32.mrf.mxu0
    %v3350 = vadd.f32 %v3285, %v3349
    %v3351 = vpop.f32.mrf.mxu0
    %v3352 = vadd.f32 %v3285, %v3351
    %3353 = vmatmul.bf16.gmra.mxu0 %v3261
    %v3354 = vpop.f32.mrf.mxu0
    %v3355 = vadd.f32 %v3285, %v3354
    %v3356 = vpop.f32.mrf.mxu0
    %v3357 = vadd.f32 %v3285, %v3356
    %3358 = vmatmul.bf16.gmra.mxu0 %v3262
    %v3359 = vpop.f32.mrf.mxu0
    %v3360 = vadd.f32 %v3285, %v3359
    %v3361 = vpop.f32.mrf.mxu0
    %v3362 = vadd.f32 %v3285, %v3361
    %3363 = vmatmul.bf16.gmra.mxu0 %v3263
    %v3364 = vpop.f32.mrf.mxu0
    %v3365 = vadd.f32 %v3285, %v3364
    %v3366 = vpop.f32.mrf.mxu0
    %v3367 = vadd.f32 %v3285, %v3366
    %3368 = vmatmul.bf16.gmra.mxu0 %v3264
    %v3369 = vpop.f32.mrf.mxu0
    %v3370 = vadd.f32 %v3285, %v3369
    %v3371 = vpop.f32.mrf.mxu0
    %v3372 = vadd.f32 %v3285, %v3371
    %3373 = vmatmul.bf16.gmra.mxu0 %v3265
    %v3374 = vpop.f32.mrf.mxu0
    %v3375 = vadd.f32 %v3285, %v3374
    %v3376 = vpop.f32.mrf.mxu0
    %v3377 = vadd.f32 %v3285, %v3376
    %3378 = vmatmul.bf16.gmra.mxu0 %v3266
    %v3379 = vpop.f32.mrf.mxu0
    %v3380 = vadd.f32 %v3285, %v3379
    %v3381 = vpop.f32.mrf.mxu0
    %v3382 = vadd.f32 %v3285, %v3381
    %3383 = vdwg.mxu0
    %v3384 = vand.u32 2147483647, %v3345
    %v3385 = vand.u32 2147483647, %v3347
    %v3386 = vand.u32 2147483647, %v3350
    %v3387 = vand.u32 2147483647, %v3352
    %v3388 = vand.u32 2147483647, %v3355
    %v3389 = vand.u32 2147483647, %v3357
    %v3390 = vand.u32 2147483647, %v3360
    %v3391 = vand.u32 2147483647, %v3362
    %v3392 = vand.u32 2147483647, %v3365
    %v3393 = vand.u32 2147483647, %v3367
    %v3394 = vand.u32 2147483647, %v3370
    %v3395 = vand.u32 2147483647, %v3372
    %v3396 = vand.u32 2147483647, %v3375
    %v3397 = vand.u32 2147483647, %v3377
    %v3398 = vand.u32 2147483647, %v3380
    %v3399 = vand.u32 2147483647, %v3382
    %v3400 = vsub.f32 0.0, %v3384
    %v3401 = vsub.f32 0.0, %v3385
    %v3402 = vsub.f32 0.0, %v3386
    %v3403 = vsub.f32 0.0, %v3387
    %v3404 = vsub.f32 0.0, %v3388
    %v3405 = vsub.f32 0.0, %v3389
    %v3406 = vsub.f32 0.0, %v3390
    %v3407 = vsub.f32 0.0, %v3391
    %v3408 = vsub.f32 0.0, %v3392
    %v3409 = vsub.f32 0.0, %v3393
    %v3410 = vsub.f32 0.0, %v3394
    %v3411 = vsub.f32 0.0, %v3395
    %v3412 = vsub.f32 0.0, %v3396
    %v3413 = vsub.f32 0.0, %v3397
    %v3414 = vsub.f32 0.0, %v3398
    %v3415 = vsub.f32 0.0, %v3399
    %v3416 = vmul.f32 %v3400, 1.442695
    %v3417 = vpow.pop %v3416
    %v3418 = vmul.f32 %v3401, 1.442695
    %v3419 = vpow.pop %v3418
    %v3420 = vmul.f32 %v3402, 1.442695
    %v3421 = vpow.pop %v3420
    %v3422 = vmul.f32 %v3403, 1.442695
    %v3423 = vpow.pop %v3422
    %v3424 = vmul.f32 %v3404, 1.442695
    %v3425 = vpow.pop %v3424
    %v3426 = vmul.f32 %v3405, 1.442695
    %v3427 = vpow.pop %v3426
    %v3428 = vmul.f32 %v3406, 1.442695
    %v3429 = vpow.pop %v3428
    %v3430 = vmul.f32 %v3407, 1.442695
    %v3431 = vpow.pop %v3430
    %v3432 = vmul.f32 %v3408, 1.442695
    %v3433 = vpow.pop %v3432
    %v3434 = vmul.f32 %v3409, 1.442695
    %v3435 = vpow.pop %v3434
    %v3436 = vmul.f32 %v3410, 1.442695
    %v3437 = vpow.pop %v3436
    %v3438 = vmul.f32 %v3411, 1.442695
    %v3439 = vpow.pop %v3438
    %v3440 = vmul.f32 %v3412, 1.442695
    %v3441 = vpow.pop %v3440
    %v3442 = vmul.f32 %v3413, 1.442695
    %v3443 = vpow.pop %v3442
    %v3444 = vmul.f32 %v3414, 1.442695
    %v3445 = vpow.pop %v3444
    %v3446 = vmul.f32 %v3415, 1.442695
    %v3447 = vpow.pop %v3446
    %vm3448 = vcmp.ge.f32.partialorder %v3345, 0.0
    %vm3449 = vcmp.ge.f32.partialorder %v3347, 0.0
    %vm3450 = vcmp.ge.f32.partialorder %v3350, 0.0
    %vm3451 = vcmp.ge.f32.partialorder %v3352, 0.0
    %vm3452 = vcmp.ge.f32.partialorder %v3355, 0.0
    %vm3453 = vcmp.ge.f32.partialorder %v3357, 0.0
    %vm3454 = vcmp.ge.f32.partialorder %v3360, 0.0
    %vm3455 = vcmp.ge.f32.partialorder %v3362, 0.0
    %vm3456 = vcmp.ge.f32.partialorder %v3365, 0.0
    %vm3457 = vcmp.ge.f32.partialorder %v3367, 0.0
    %vm3458 = vcmp.ge.f32.partialorder %v3370, 0.0
    %vm3459 = vcmp.ge.f32.partialorder %v3372, 0.0
    %vm3460 = vcmp.ge.f32.partialorder %v3375, 0.0
    %vm3461 = vcmp.ge.f32.partialorder %v3377, 0.0
    %vm3462 = vcmp.ge.f32.partialorder %v3380, 0.0
    %vm3463 = vcmp.ge.f32.partialorder %v3382, 0.0
    %v3464 = vadd.f32 %v3417, 1.0
    %v3465 = vadd.f32 %v3419, 1.0
    %v3466 = vadd.f32 %v3421, 1.0
    %v3467 = vadd.f32 %v3423, 1.0
    %v3468 = vadd.f32 %v3425, 1.0
    %v3469 = vadd.f32 %v3427, 1.0
    %v3470 = vadd.f32 %v3429, 1.0
    %v3471 = vadd.f32 %v3431, 1.0
    %v3472 = vadd.f32 %v3433, 1.0
    %v3473 = vadd.f32 %v3435, 1.0
    %v3474 = vadd.f32 %v3437, 1.0
    %v3475 = vadd.f32 %v3439, 1.0
    %v3476 = vadd.f32 %v3441, 1.0
    %v3477 = vadd.f32 %v3443, 1.0
    %v3478 = vadd.f32 %v3445, 1.0
    %v3479 = vadd.f32 %v3447, 1.0
    %v3480 = vrcp.pop %v3464
    %v3481 = vmul.f32 %v3464, %v3480
    %v3482 = vsub.f32 1.0, %v3481
    %v3483 = vmul.f32 %v3480, %v3482
    %v3484 = vadd.f32 %v3480, %v3483
    %vm3485 = vweird.f32 %v3464
    %vm3486 = vweird.f32 %v3480
    %vm3487 = vmor %vm3485, %vm3486
    %v3488 = vsel %vm3487, %v3480, %v3484
    %v3489 = vand.u32 2147483647, %v3464
    %vm3490 = vcmp.eq.f32.partialorder %v3489, 8.507059e+37
    %v3491 = vand.u32 %v3464, 2147483648
    %v3492 = vor.u32 1.1754944e-38, %v3491
    %v3493 = vsel %vm3490, %v3492, %v3488
    %v3494 = vmul.f32 1.0, %v3493
    %v3495 = vrcp.pop %v3465
    %v3496 = vmul.f32 %v3465, %v3495
    %v3497 = vsub.f32 1.0, %v3496
    %v3498 = vmul.f32 %v3495, %v3497
    %v3499 = vadd.f32 %v3495, %v3498
    %vm3500 = vweird.f32 %v3465
    %vm3501 = vweird.f32 %v3495
    %vm3502 = vmor %vm3500, %vm3501
    %v3503 = vsel %vm3502, %v3495, %v3499
    %v3504 = vand.u32 2147483647, %v3465
    %vm3505 = vcmp.eq.f32.partialorder %v3504, 8.507059e+37
    %v3506 = vand.u32 %v3465, 2147483648
    %v3507 = vor.u32 1.1754944e-38, %v3506
    %v3508 = vsel %vm3505, %v3507, %v3503
    %v3509 = vmul.f32 1.0, %v3508
    %v3510 = vrcp.pop %v3466
    %v3511 = vmul.f32 %v3466, %v3510
    %v3512 = vsub.f32 1.0, %v3511
    %v3513 = vmul.f32 %v3510, %v3512
    %v3514 = vadd.f32 %v3510, %v3513
    %vm3515 = vweird.f32 %v3466
    %vm3516 = vweird.f32 %v3510
    %vm3517 = vmor %vm3515, %vm3516
    %v3518 = vsel %vm3517, %v3510, %v3514
    %v3519 = vand.u32 2147483647, %v3466
    %vm3520 = vcmp.eq.f32.partialorder %v3519, 8.507059e+37
    %v3521 = vand.u32 %v3466, 2147483648
    %v3522 = vor.u32 1.1754944e-38, %v3521
    %v3523 = vsel %vm3520, %v3522, %v3518
    %v3524 = vmul.f32 1.0, %v3523
    %v3525 = vrcp.pop %v3467
    %v3526 = vmul.f32 %v3467, %v3525
    %v3527 = vsub.f32 1.0, %v3526
    %v3528 = vmul.f32 %v3525, %v3527
    %v3529 = vadd.f32 %v3525, %v3528
    %vm3530 = vweird.f32 %v3467
    %vm3531 = vweird.f32 %v3525
    %vm3532 = vmor %vm3530, %vm3531
    %v3533 = vsel %vm3532, %v3525, %v3529
    %v3534 = vand.u32 2147483647, %v3467
    %vm3535 = vcmp.eq.f32.partialorder %v3534, 8.507059e+37
    %v3536 = vand.u32 %v3467, 2147483648
    %v3537 = vor.u32 1.1754944e-38, %v3536
    %v3538 = vsel %vm3535, %v3537, %v3533
    %v3539 = vmul.f32 1.0, %v3538
    %v3540 = vrcp.pop %v3468
    %v3541 = vmul.f32 %v3468, %v3540
    %v3542 = vsub.f32 1.0, %v3541
    %v3543 = vmul.f32 %v3540, %v3542
    %v3544 = vadd.f32 %v3540, %v3543
    %vm3545 = vweird.f32 %v3468
    %vm3546 = vweird.f32 %v3540
    %vm3547 = vmor %vm3545, %vm3546
    %v3548 = vsel %vm3547, %v3540, %v3544
    %v3549 = vand.u32 2147483647, %v3468
    %vm3550 = vcmp.eq.f32.partialorder %v3549, 8.507059e+37
    %v3551 = vand.u32 %v3468, 2147483648
    %v3552 = vor.u32 1.1754944e-38, %v3551
    %v3553 = vsel %vm3550, %v3552, %v3548
    %v3554 = vmul.f32 1.0, %v3553
    %v3555 = vrcp.pop %v3469
    %v3556 = vmul.f32 %v3469, %v3555
    %v3557 = vsub.f32 1.0, %v3556
    %v3558 = vmul.f32 %v3555, %v3557
    %v3559 = vadd.f32 %v3555, %v3558
    %vm3560 = vweird.f32 %v3469
    %vm3561 = vweird.f32 %v3555
    %vm3562 = vmor %vm3560, %vm3561
    %v3563 = vsel %vm3562, %v3555, %v3559
    %v3564 = vand.u32 2147483647, %v3469
    %vm3565 = vcmp.eq.f32.partialorder %v3564, 8.507059e+37
    %v3566 = vand.u32 %v3469, 2147483648
    %v3567 = vor.u32 1.1754944e-38, %v3566
    %v3568 = vsel %vm3565, %v3567, %v3563
    %v3569 = vmul.f32 1.0, %v3568
    %v3570 = vrcp.pop %v3470
    %v3571 = vmul.f32 %v3470, %v3570
    %v3572 = vsub.f32 1.0, %v3571
    %v3573 = vmul.f32 %v3570, %v3572
    %v3574 = vadd.f32 %v3570, %v3573
    %vm3575 = vweird.f32 %v3470
    %vm3576 = vweird.f32 %v3570
    %vm3577 = vmor %vm3575, %vm3576
    %v3578 = vsel %vm3577, %v3570, %v3574
    %v3579 = vand.u32 2147483647, %v3470
    %vm3580 = vcmp.eq.f32.partialorder %v3579, 8.507059e+37
    %v3581 = vand.u32 %v3470, 2147483648
    %v3582 = vor.u32 1.1754944e-38, %v3581
    %v3583 = vsel %vm3580, %v3582, %v3578
    %v3584 = vmul.f32 1.0, %v3583
    %v3585 = vrcp.pop %v3471
    %v3586 = vmul.f32 %v3471, %v3585
    %v3587 = vsub.f32 1.0, %v3586
    %v3588 = vmul.f32 %v3585, %v3587
    %v3589 = vadd.f32 %v3585, %v3588
    %vm3590 = vweird.f32 %v3471
    %vm3591 = vweird.f32 %v3585
    %vm3592 = vmor %vm3590, %vm3591
    %v3593 = vsel %vm3592, %v3585, %v3589
    %v3594 = vand.u32 2147483647, %v3471
    %vm3595 = vcmp.eq.f32.partialorder %v3594, 8.507059e+37
    %v3596 = vand.u32 %v3471, 2147483648
    %v3597 = vor.u32 1.1754944e-38, %v3596
    %v3598 = vsel %vm3595, %v3597, %v3593
    %v3599 = vmul.f32 1.0, %v3598
    %v3600 = vrcp.pop %v3472
    %v3601 = vmul.f32 %v3472, %v3600
    %v3602 = vsub.f32 1.0, %v3601
    %v3603 = vmul.f32 %v3600, %v3602
    %v3604 = vadd.f32 %v3600, %v3603
    %vm3605 = vweird.f32 %v3472
    %vm3606 = vweird.f32 %v3600
    %vm3607 = vmor %vm3605, %vm3606
    %v3608 = vsel %vm3607, %v3600, %v3604
    %v3609 = vand.u32 2147483647, %v3472
    %vm3610 = vcmp.eq.f32.partialorder %v3609, 8.507059e+37
    %v3611 = vand.u32 %v3472, 2147483648
    %v3612 = vor.u32 1.1754944e-38, %v3611
    %v3613 = vsel %vm3610, %v3612, %v3608
    %v3614 = vmul.f32 1.0, %v3613
    %v3615 = vrcp.pop %v3473
    %v3616 = vmul.f32 %v3473, %v3615
    %v3617 = vsub.f32 1.0, %v3616
    %v3618 = vmul.f32 %v3615, %v3617
    %v3619 = vadd.f32 %v3615, %v3618
    %vm3620 = vweird.f32 %v3473
    %vm3621 = vweird.f32 %v3615
    %vm3622 = vmor %vm3620, %vm3621
    %v3623 = vsel %vm3622, %v3615, %v3619
    %v3624 = vand.u32 2147483647, %v3473
    %vm3625 = vcmp.eq.f32.partialorder %v3624, 8.507059e+37
    %v3626 = vand.u32 %v3473, 2147483648
    %v3627 = vor.u32 1.1754944e-38, %v3626
    %v3628 = vsel %vm3625, %v3627, %v3623
    %v3629 = vmul.f32 1.0, %v3628
    %v3630 = vrcp.pop %v3474
    %v3631 = vmul.f32 %v3474, %v3630
    %v3632 = vsub.f32 1.0, %v3631
    %v3633 = vmul.f32 %v3630, %v3632
    %v3634 = vadd.f32 %v3630, %v3633
    %vm3635 = vweird.f32 %v3474
    %vm3636 = vweird.f32 %v3630
    %vm3637 = vmor %vm3635, %vm3636
    %v3638 = vsel %vm3637, %v3630, %v3634
    %v3639 = vand.u32 2147483647, %v3474
    %vm3640 = vcmp.eq.f32.partialorder %v3639, 8.507059e+37
    %v3641 = vand.u32 %v3474, 2147483648
    %v3642 = vor.u32 1.1754944e-38, %v3641
    %v3643 = vsel %vm3640, %v3642, %v3638
    %v3644 = vmul.f32 1.0, %v3643
    %v3645 = vrcp.pop %v3475
    %v3646 = vmul.f32 %v3475, %v3645
    %v3647 = vsub.f32 1.0, %v3646
    %v3648 = vmul.f32 %v3645, %v3647
    %v3649 = vadd.f32 %v3645, %v3648
    %vm3650 = vweird.f32 %v3475
    %vm3651 = vweird.f32 %v3645
    %vm3652 = vmor %vm3650, %vm3651
    %v3653 = vsel %vm3652, %v3645, %v3649
    %v3654 = vand.u32 2147483647, %v3475
    %vm3655 = vcmp.eq.f32.partialorder %v3654, 8.507059e+37
    %v3656 = vand.u32 %v3475, 2147483648
    %v3657 = vor.u32 1.1754944e-38, %v3656
    %v3658 = vsel %vm3655, %v3657, %v3653
    %v3659 = vmul.f32 1.0, %v3658
    %v3660 = vrcp.pop %v3476
    %v3661 = vmul.f32 %v3476, %v3660
    %v3662 = vsub.f32 1.0, %v3661
    %v3663 = vmul.f32 %v3660, %v3662
    %v3664 = vadd.f32 %v3660, %v3663
    %vm3665 = vweird.f32 %v3476
    %vm3666 = vweird.f32 %v3660
    %vm3667 = vmor %vm3665, %vm3666
    %v3668 = vsel %vm3667, %v3660, %v3664
    %v3669 = vand.u32 2147483647, %v3476
    %vm3670 = vcmp.eq.f32.partialorder %v3669, 8.507059e+37
    %v3671 = vand.u32 %v3476, 2147483648
    %v3672 = vor.u32 1.1754944e-38, %v3671
    %v3673 = vsel %vm3670, %v3672, %v3668
    %v3674 = vmul.f32 1.0, %v3673
    %v3675 = vrcp.pop %v3477
    %v3676 = vmul.f32 %v3477, %v3675
    %v3677 = vsub.f32 1.0, %v3676
    %v3678 = vmul.f32 %v3675, %v3677
    %v3679 = vadd.f32 %v3675, %v3678
    %vm3680 = vweird.f32 %v3477
    %vm3681 = vweird.f32 %v3675
    %vm3682 = vmor %vm3680, %vm3681
    %v3683 = vsel %vm3682, %v3675, %v3679
    %v3684 = vand.u32 2147483647, %v3477
    %vm3685 = vcmp.eq.f32.partialorder %v3684, 8.507059e+37
    %v3686 = vand.u32 %v3477, 2147483648
    %v3687 = vor.u32 1.1754944e-38, %v3686
    %v3688 = vsel %vm3685, %v3687, %v3683
    %v3689 = vmul.f32 1.0, %v3688
    %v3690 = vrcp.pop %v3478
    %v3691 = vmul.f32 %v3478, %v3690
    %v3692 = vsub.f32 1.0, %v3691
    %v3693 = vmul.f32 %v3690, %v3692
    %v3694 = vadd.f32 %v3690, %v3693
    %vm3695 = vweird.f32 %v3478
    %vm3696 = vweird.f32 %v3690
    %vm3697 = vmor %vm3695, %vm3696
    %v3698 = vsel %vm3697, %v3690, %v3694
    %v3699 = vand.u32 2147483647, %v3478
    %vm3700 = vcmp.eq.f32.partialorder %v3699, 8.507059e+37
    %v3701 = vand.u32 %v3478, 2147483648
    %v3702 = vor.u32 1.1754944e-38, %v3701
    %v3703 = vsel %vm3700, %v3702, %v3698
    %v3704 = vmul.f32 1.0, %v3703
    %v3705 = vrcp.pop %v3479
    %v3706 = vmul.f32 %v3479, %v3705
    %v3707 = vsub.f32 1.0, %v3706
    %v3708 = vmul.f32 %v3705, %v3707
    %v3709 = vadd.f32 %v3705, %v3708
    %vm3710 = vweird.f32 %v3479
    %vm3711 = vweird.f32 %v3705
    %vm3712 = vmor %vm3710, %vm3711
    %v3713 = vsel %vm3712, %v3705, %v3709
    %v3714 = vand.u32 2147483647, %v3479
    %vm3715 = vcmp.eq.f32.partialorder %v3714, 8.507059e+37
    %v3716 = vand.u32 %v3479, 2147483648
    %v3717 = vor.u32 1.1754944e-38, %v3716
    %v3718 = vsel %vm3715, %v3717, %v3713
    %v3719 = vmul.f32 1.0, %v3718
    %v3720 = vmul.f32 %v3417, %v3493
    %v3721 = vmul.f32 %v3419, %v3508
    %v3722 = vmul.f32 %v3421, %v3523
    %v3723 = vmul.f32 %v3423, %v3538
    %v3724 = vmul.f32 %v3425, %v3553
    %v3725 = vmul.f32 %v3427, %v3568
    %v3726 = vmul.f32 %v3429, %v3583
    %v3727 = vmul.f32 %v3431, %v3598
    %v3728 = vmul.f32 %v3433, %v3613
    %v3729 = vmul.f32 %v3435, %v3628
    %v3730 = vmul.f32 %v3437, %v3643
    %v3731 = vmul.f32 %v3439, %v3658
    %v3732 = vmul.f32 %v3441, %v3673
    %v3733 = vmul.f32 %v3443, %v3688
    %v3734 = vmul.f32 %v3445, %v3703
    %v3735 = vmul.f32 %v3447, %v3718
    %v3736 = vsel %vm3448, %v3494, %v3720
    %v3737 = vsel %vm3449, %v3509, %v3721
    %v3738 = vsel %vm3450, %v3524, %v3722
    %v3739 = vsel %vm3451, %v3539, %v3723
    %v3740 = vsel %vm3452, %v3554, %v3724
    %v3741 = vsel %vm3453, %v3569, %v3725
    %v3742 = vsel %vm3454, %v3584, %v3726
    %v3743 = vsel %vm3455, %v3599, %v3727
    %v3744 = vsel %vm3456, %v3614, %v3728
    %v3745 = vsel %vm3457, %v3629, %v3729
    %v3746 = vsel %vm3458, %v3644, %v3730
    %v3747 = vsel %vm3459, %v3659, %v3731
    %v3748 = vsel %vm3460, %v3674, %v3732
    %v3749 = vsel %vm3461, %v3689, %v3733
    %v3750 = vsel %vm3462, %v3704, %v3734
    %v3751 = vsel %vm3463, %v3719, %v3735
    %3752 = vst [vmem:[#allocation11] sm:$0xff] %v3736
    %3753 = vst [vmem:[#allocation11 + $0x8] sm:$0xff] %v3737
    %3754 = vst [vmem:[#allocation11 + $0x10] sm:$0xff] %v3738
    %3755 = vst [vmem:[#allocation11 + $0x18] sm:$0xff] %v3739
    %3756 = vst [vmem:[#allocation11 + $0x20] sm:$0xff] %v3740
    %3757 = vst [vmem:[#allocation11 + $0x28] sm:$0xff] %v3741
    %3758 = vst [vmem:[#allocation11 + $0x30] sm:$0xff] %v3742
    %3759 = vst [vmem:[#allocation11 + $0x38] sm:$0xff] %v3743
    %3760 = vst [vmem:[#allocation11 + $0x40] sm:$0xff] %v3744
    %3761 = vst [vmem:[#allocation11 + $0x48] sm:$0xff] %v3745
    %3762 = vst [vmem:[#allocation11 + $0x50] sm:$0xff] %v3746
    %3763 = vst [vmem:[#allocation11 + $0x58] sm:$0xff] %v3747
    %3764 = vst [vmem:[#allocation11 + $0x60] sm:$0xff] %v3748
    %3765 = vst [vmem:[#allocation11 + $0x68] sm:$0xff] %v3749
    %3766 = vst [vmem:[#allocation11 + $0x70] sm:$0xff] %v3750
    %3767 = vst [vmem:[#allocation11 + $0x78] sm:$0xff] %v3751
    // Predicated region
    $region66: #{tpu_custom_call.1} parent=1 // pred_check
      _
    $region67: #{tpu_custom_call.1} parent=1 // pred_check_branch
      %3769 = sbr.rel (0) target = $region69
    $region68: #{tpu_custom_call.1} parent=1 // pred_region
      %3771 = vsyncadd [#allocation4], 0
      %s3772 = sshll.u32 [#allocation11], 4
      %s3773 = int_to_ptr.vmem [resolvable:$true] %s3772
      %s3774 = sshll.u32 %s11, 4
      %s3775 = int_to_ptr.hbm [resolvable:$true] %s3774
      %3780 = dma.vmem_to_hbm [thread:$0]  %s3773, 2048, %s3775, [#allocation4], 128, 128, 8
    $region69: #{tpu_custom_call.1} parent=1 // pred_fallthru
      _
    // Predicated region
    $region70: #{tpu_custom_call.1} parent=1 // pred_check
      _
    $region71: #{tpu_custom_call.1} parent=1 // pred_check_branch
      %3782 = sbr.rel (0) target = $region73
    $region72: #{tpu_custom_call.1} parent=1 // pred_region
      %3784 = dma.done [#allocation4], 2048
    $region73: #{tpu_custom_call.1} parent=1 // pred_fallthru
      _
    %3785 = vsyncpa [#allocation3], 1
    %3786 = vsyncpa [#allocation6], 1
    %3787 = vsyncpa [#allocation9], 1
    %3788 = vsyncpa [#allocation4], 1

</llo_original>
